<compile_context>
chip_gen: v7x
topology: tpu7x:2x2x1
jax: 0.10.0
libtpu: 0.0.40
codegen_flags: <defaults>
</compile_context>

<pallas_src>
import numpy as np
import jax
import jax.numpy as jnp
from jax import lax
from jax.experimental import pallas as pl
from jax.experimental.pallas import tpu as pltpu

# Model dimensions (small, consistent with the module's constructor).
VOCAB = 1000       # synthetic vocab (BERT's 30522 not needed for a synthetic kernel)
E = 128            # embedding_dim
H = 256            # hidden_dim
OUT = 1            # output_dim
B = 2              # batch
T = 8              # sequence length
BP = 8             # batch rows per timestep, padded to a full (8,128) sublane tile


def _gates_to_hc(gates, c_prev):
    """PyTorch LSTM gate order [i, f, g, o]."""
    i = jax.nn.sigmoid(gates[:, 0 * H:1 * H])
    f = jax.nn.sigmoid(gates[:, 1 * H:2 * H])
    g = jnp.tanh(gates[:, 2 * H:3 * H])
    o = jax.nn.sigmoid(gates[:, 3 * H:4 * H])
    c_new = f * c_prev + i * g
    h_new = o * jnp.tanh(c_new)
    return h_new, c_new


def bilstm_kernel(emb_ref, wih_ref, b_ref, whh_hbm_ref, wfc_ref, bfc_ref,
                  out_ref, whh_vmem, dma_sem):
    """emb_ref:  (T*BP, E) bf16, time-major, zero-padded to BP rows/step.
       wih_ref:  (E, 8H) bf16 = [W_ih_fwd | W_ih_bwd] columns (pre-transposed).
       b_ref:    (1, 8H) f32  = [b_fwd | b_bwd] (b_ih + b_hh folded per dir).
       whh_hbm_ref: (H, 4H) bf16 forward W_hh, left in HBM (pl.ANY), DMA'd here.
       wfc_ref:  (1, 2H) f32.  bfc_ref: (1, 1) f32.  out_ref: (BP, OUT) f32."""

    # Kick off the W_hh DMA first; it is only needed once the recurrence starts,
    # so the copy overlaps the hoisted input projection below.
    whh_cp = pltpu.make_async_copy(whh_hbm_ref, whh_vmem, dma_sem)
    whh_cp.start()

    # ---- hoisted, time-independent input projection for BOTH directions in a
    # single MXU pass; bias folded in once. ----
    x_all = emb_ref[...]                                            # (T*BP, E) bf16
    pre_all = jnp.dot(x_all, wih_ref[...],
                      preferred_element_type=jnp.float32) + b_ref[...]   # (T*BP, 8H) f32

    whh_cp.wait()
    whh_f = whh_vmem[...]                                           # (H, 4H) bf16
    # TODO(synk): replace the per-step jnp.dot below with explicit
    # pltpu.matmul_push_rhs / matmul_acc_lhs / matmul_pop weight pinning on
    # v6e/v7x if the bundle dump shows the RHS being re-streamed every step.

    # ---- forward-direction recurrence, fully unrolled (T = 8 is static);
    # each pre_all row slice is an aligned (8, 128) sublane tile. ----
    h = jnp.zeros((BP, H), jnp.float32)
    c = jnp.zeros((BP, H), jnp.float32)
    for t in range(T):
        gates = pre_all[t * BP:(t + 1) * BP, 0:4 * H] + jnp.dot(
            h.astype(jnp.bfloat16), whh_f,
            preferred_element_type=jnp.float32)                     # (BP, 4H)
        h, c = _gates_to_hc(gates, c)

    # ---- backward direction: only its first step (timestep T-1, zero state)
    # feeds lstm_out[:, -1, H:]; its gates are exactly the hoisted columns
    # 4H..8H of the last timestep slab. ----
    gates_b = pre_all[(T - 1) * BP:T * BP, 4 * H:8 * H]             # (BP, 4H)
    h_b, _ = _gates_to_hc(gates_b, jnp.zeros((BP, H), jnp.float32))

    # ---- fc(2H -> 1) as VPU multiply + lane reduce (avoid N=1 MXU matmuls) ----
    out = (jnp.sum(h * wfc_ref[:, 0:H], axis=-1, keepdims=True)
           + jnp.sum(h_b * wfc_ref[:, H:2 * H], axis=-1, keepdims=True)
           + bfc_ref[...])                                          # (BP, 1)
    out_ref[...] = out


def bilstm_forward(token_ids, params):
    # Only valid for full-length, unpadded sequences: the backward-direction
    # single-step shortcut assumes every sequence covers all T steps.
    batch, seq = token_ids.shape
    assert seq == T and batch <= BP, (batch, seq)

    # Embedding lookup is glue (gather) in plain JAX.
    embedded = jnp.take(params["embedding"], token_ids, axis=0)          # (B, T, E) bf16
    emb_tm = jnp.transpose(embedded, (1, 0, 2))                          # (T, B, E)
    emb_tm = jnp.pad(emb_tm, ((0, 0), (0, BP - batch), (0, 0)))          # (T, BP, E)
    emb_tm = emb_tm.reshape(T * BP, E).astype(jnp.bfloat16)

    # Merge both directions' input weights / biases so one matmul covers them.
    wih_cat = jnp.concatenate([params["wih_f"], params["wih_b"]], axis=1)  # (E, 8H) bf16
    b_cat = jnp.concatenate([params["b_f"], params["b_b"]], axis=1)        # (1, 8H) f32

    vmem = pl.BlockSpec(memory_space=pltpu.MemorySpace.VMEM)
    anyspace = pl.BlockSpec(memory_space=pl.ANY)

    flops = 2 * (T * BP) * E * (8 * H) + 2 * T * BP * H * (4 * H)
    transcendentals = 5 * (T + 1) * BP * H
    bytes_accessed = (emb_tm.size * 2 + wih_cat.size * 2 + b_cat.size * 4
                      + params["whh_f"].size * 2 + params["wfc"].size * 4
                      + params["bfc"].size * 4 + BP * OUT * 4)

    out = pl.pallas_call(
        bilstm_kernel,
        out_shape=jax.ShapeDtypeStruct((BP, OUT), jnp.float32),
        in_specs=[vmem, vmem, vmem, anyspace, vmem, vmem],
        out_specs=vmem,
        scratch_shapes=[pltpu.VMEM((H, 4 * H), jnp.bfloat16),
                        pltpu.SemaphoreType.DMA],
        cost_estimate=pl.CostEstimate(flops=flops,
                                      transcendentals=transcendentals,
                                      bytes_accessed=bytes_accessed),
    )(emb_tm, wih_cat, b_cat, params["whh_f"], params["wfc"], params["bfc"])
    return out[:batch]


def bilstm_reference(token_ids, params):
    """Pure-JAX reference with identical dtypes/semantics, for validation."""
    emb = jnp.take(params["embedding"], token_ids, axis=0).astype(jnp.bfloat16)  # (B,T,E)
    batch = token_ids.shape[0]

    def step(carry, x_t):
        h, c = carry
        gates = (jnp.dot(x_t, params["wih_f"], preferred_element_type=jnp.float32)
                 + jnp.dot(h.astype(jnp.bfloat16), params["whh_f"],
                           preferred_element_type=jnp.float32)
                 + params["b_f"])
        h, c = _gates_to_hc(gates, c)
        return (h, c), None

    h0 = jnp.zeros((batch, H), jnp.float32)
    c0 = jnp.zeros((batch, H), jnp.float32)
    (h_f, _), _ = lax.scan(step, (h0, c0), jnp.transpose(emb, (1, 0, 2)))

    gates_b = (jnp.dot(emb[:, -1, :], params["wih_b"],
                       preferred_element_type=jnp.float32) + params["b_b"])
    h_b, _ = _gates_to_hc(gates_b, jnp.zeros((batch, H), jnp.float32))

    return (jnp.sum(h_f * params["wfc"][:, 0:H], axis=-1, keepdims=True)
            + jnp.sum(h_b * params["wfc"][:, H:2 * H], axis=-1, keepdims=True)
            + params["bfc"])


def init_params(key):
    """Deterministic synthetic init matching nn.LSTM / nn.Linear shapes.
    PyTorch stores W_ih as (4H,E) / W_hh as (4H,H); we keep them transposed
    ((E,4H)/(H,4H)) in bf16 and fold b_ih + b_hh into one f32 bias per
    direction.  whh_b is intentionally not created: never used (the backward
    direction's last-timestep output starts from a zero state)."""
    ks = jax.random.split(key, 12)
    bound = 1.0 / float(np.sqrt(H))

    def u(k, shape, dtype=jnp.float32):
        return jax.random.uniform(k, shape, jnp.float32, -bound, bound).astype(dtype)

    params = {
        "embedding": jax.random.normal(ks[0], (VOCAB, E), jnp.float32).astype(jnp.bfloat16),
        # forward direction
        "wih_f": u(ks[1], (E, 4 * H), jnp.bfloat16),
        "whh_f": u(ks[2], (H, 4 * H), jnp.bfloat16),
        "b_f": u(ks[3], (1, 4 * H)) + u(ks[4], (1, 4 * H)),   # b_ih + b_hh, f32
        # backward direction (whh_b dropped: dead weight)
        "wih_b": u(ks[5], (E, 4 * H), jnp.bfloat16),
        "b_b": u(ks[6], (1, 4 * H)) + u(ks[7], (1, 4 * H)),
        # fc: Linear(2H, 1) -> stored as a (1, 2H) f32 row vector
        "wfc": u(ks[8], (1, 2 * H)),
        "bfc": u(ks[9], (1, OUT)),
    }
    return params


if __name__ == "__main__":
    key = jax.random.PRNGKey(0)
    pkey, xkey = jax.random.split(key)
    params = init_params(pkey)
    token_ids = jax.random.randint(xkey, (B, T), 0, VOCAB, dtype=jnp.int32)

    logits = bilstm_forward(token_ids, params)            # (B, 1)
    jax.block_until_ready(logits)
    assert logits.shape == (B, OUT)
    assert bool(jnp.all(jnp.isfinite(logits)))

    ref = bilstm_reference(token_ids, params)
    jax.block_until_ready(ref)
    assert np.allclose(np.asarray(logits), np.asarray(ref), atol=5e-3, rtol=5e-3), (
        np.asarray(logits), np.asarray(ref))

    print("KERNEL_OK")
</pallas_src>

<mosaic_0001>
module attributes {stable_mosaic.version = 11 : i64} {
  func.func @bilstm_kernel(%arg0: memref<64x128xbf16, #tpu.memory_space<vmem>>, %arg1: memref<128x2048xbf16, #tpu.memory_space<vmem>>, %arg2: memref<1x2048xf32, #tpu.memory_space<vmem>>, %arg3: memref<256x1024xbf16, #tpu.memory_space<any>>, %arg4: memref<1x512xf32, #tpu.memory_space<vmem>>, %arg5: memref<1x1xf32, #tpu.memory_space<vmem>>, %arg6: memref<8x1xf32, #tpu.memory_space<vmem>>, %arg7: memref<256x1024xbf16, #tpu.memory_space<vmem>>, %arg8: memref<!tpu.dma_semaphore, #tpu.memory_space<semaphore_mem>>) attributes {dimension_semantics = [], scalar_prefetch = 0 : i64, scratch_operands = 2 : i64, tpu.core_type = #tpu.core_type<tc>} {
    tpu.enqueue_dma source(%arg3 : memref<256x1024xbf16, #tpu.memory_space<any>>) target(%arg7 : memref<256x1024xbf16, #tpu.memory_space<vmem>>) target_semaphore(%arg8 : memref<!tpu.dma_semaphore, #tpu.memory_space<semaphore_mem>>)
    %c0 = arith.constant 0 : index
    %c0_0 = arith.constant 0 : index
    %0 = vector.load %arg0[%c0, %c0_0] : memref<64x128xbf16, #tpu.memory_space<vmem>>, vector<64x128xbf16>
    %c0_1 = arith.constant 0 : index
    %c0_2 = arith.constant 0 : index
    %1 = vector.load %arg1[%c0_1, %c0_2] : memref<128x2048xbf16, #tpu.memory_space<vmem>>, vector<128x2048xbf16>
    %cst = arith.constant dense<0.000000e+00> : vector<64x2048xf32>
    %2 = tpu.matmul %0, %1, %cst {dimension_numbers = #tpu.dot_dimension_numbers<[1], [0], [0], [1], [0, 0, 1, 1], [], []>} : vector<64x128xbf16>, vector<128x2048xbf16>, vector<64x2048xf32> -> vector<64x2048xf32>
    %c0_3 = arith.constant 0 : index
    %c0_4 = arith.constant 0 : index
    %3 = vector.load %arg2[%c0_3, %c0_4] : memref<1x2048xf32, #tpu.memory_space<vmem>>, vector<1x2048xf32>
    %4 = vector.broadcast %3 : vector<1x2048xf32> to vector<64x2048xf32>
    %5 = arith.addf %2, %4 : vector<64x2048xf32>
    tpu.wait_dma2 semaphore(%arg8 : memref<!tpu.dma_semaphore, #tpu.memory_space<semaphore_mem>>) src(%arg3 : memref<256x1024xbf16, #tpu.memory_space<any>>) dst(%arg7 : memref<256x1024xbf16, #tpu.memory_space<vmem>>)
    %c0_5 = arith.constant 0 : index
    %c0_6 = arith.constant 0 : index
    %6 = vector.load %arg7[%c0_5, %c0_6] : memref<256x1024xbf16, #tpu.memory_space<vmem>>, vector<256x1024xbf16>
    %cst_7 = arith.constant 0.000000e+00 : f32
    %7 = vector.broadcast %cst_7 : f32 to vector<8x256xf32>
    %cst_8 = arith.constant 0.000000e+00 : f32
    %8 = vector.broadcast %cst_8 : f32 to vector<8x256xf32>
    %9 = vector.extract_strided_slice %5 {offsets = [0, 0], sizes = [8, 1024], strides = [1, 1]} : vector<64x2048xf32> to vector<8x1024xf32>
    %10 = arith.truncf %7 : vector<8x256xf32> to vector<8x256xbf16>
    %cst_9 = arith.constant dense<0.000000e+00> : vector<8x1024xf32>
    %11 = tpu.matmul %10, %6, %cst_9 {dimension_numbers = #tpu.dot_dimension_numbers<[1], [0], [0], [1], [0, 0, 1, 1], [], []>} : vector<8x256xbf16>, vector<256x1024xbf16>, vector<8x1024xf32> -> vector<8x1024xf32>
    %12 = arith.addf %9, %11 : vector<8x1024xf32>
    %13 = vector.extract_strided_slice %12 {offsets = [0, 0], sizes = [8, 256], strides = [1, 1]} : vector<8x1024xf32> to vector<8x256xf32>
    %14 = arith.negf %13 : vector<8x256xf32>
    %15 = math.exp %14 : vector<8x256xf32>
    %cst_10 = arith.constant 1.000000e+00 : f32
    %16 = vector.broadcast %cst_10 : f32 to vector<8x256xf32>
    %17 = arith.addf %16, %15 : vector<8x256xf32>
    %18 = arith.divf %16, %17 : vector<8x256xf32>
    %19 = vector.extract_strided_slice %12 {offsets = [0, 256], sizes = [8, 256], strides = [1, 1]} : vector<8x1024xf32> to vector<8x256xf32>
    %20 = arith.negf %19 : vector<8x256xf32>
    %21 = math.exp %20 : vector<8x256xf32>
    %cst_11 = arith.constant 1.000000e+00 : f32
    %22 = vector.broadcast %cst_11 : f32 to vector<8x256xf32>
    %23 = arith.addf %22, %21 : vector<8x256xf32>
    %24 = arith.divf %22, %23 : vector<8x256xf32>
    %25 = vector.extract_strided_slice %12 {offsets = [0, 512], sizes = [8, 256], strides = [1, 1]} : vector<8x1024xf32> to vector<8x256xf32>
    %26 = math.tanh %25 : vector<8x256xf32>
    %27 = vector.extract_strided_slice %12 {offsets = [0, 768], sizes = [8, 256], strides = [1, 1]} : vector<8x1024xf32> to vector<8x256xf32>
    %28 = arith.negf %27 : vector<8x256xf32>
    %29 = math.exp %28 : vector<8x256xf32>
    %cst_12 = arith.constant 1.000000e+00 : f32
    %30 = vector.broadcast %cst_12 : f32 to vector<8x256xf32>
    %31 = arith.addf %30, %29 : vector<8x256xf32>
    %32 = arith.divf %30, %31 : vector<8x256xf32>
    %33 = arith.mulf %24, %8 : vector<8x256xf32>
    %34 = arith.mulf %18, %26 : vector<8x256xf32>
    %35 = arith.addf %33, %34 : vector<8x256xf32>
    %36 = math.tanh %35 : vector<8x256xf32>
    %37 = arith.mulf %32, %36 : vector<8x256xf32>
    %38 = vector.extract_strided_slice %5 {offsets = [8, 0], sizes = [8, 1024], strides = [1, 1]} : vector<64x2048xf32> to vector<8x1024xf32>
    %39 = arith.truncf %37 : vector<8x256xf32> to vector<8x256xbf16>
    %cst_13 = arith.constant dense<0.000000e+00> : vector<8x1024xf32>
    %40 = tpu.matmul %39, %6, %cst_13 {dimension_numbers = #tpu.dot_dimension_numbers<[1], [0], [0], [1], [0, 0, 1, 1], [], []>} : vector<8x256xbf16>, vector<256x1024xbf16>, vector<8x1024xf32> -> vector<8x1024xf32>
    %41 = arith.addf %38, %40 : vector<8x1024xf32>
    %42 = vector.extract_strided_slice %41 {offsets = [0, 0], sizes = [8, 256], strides = [1, 1]} : vector<8x1024xf32> to vector<8x256xf32>
    %43 = arith.negf %42 : vector<8x256xf32>
    %44 = math.exp %43 : vector<8x256xf32>
    %cst_14 = arith.constant 1.000000e+00 : f32
    %45 = vector.broadcast %cst_14 : f32 to vector<8x256xf32>
    %46 = arith.addf %45, %44 : vector<8x256xf32>
    %47 = arith.divf %45, %46 : vector<8x256xf32>
    %48 = vector.extract_strided_slice %41 {offsets = [0, 256], sizes = [8, 256], strides = [1, 1]} : vector<8x1024xf32> to vector<8x256xf32>
    %49 = arith.negf %48 : vector<8x256xf32>
    %50 = math.exp %49 : vector<8x256xf32>
    %cst_15 = arith.constant 1.000000e+00 : f32
    %51 = vector.broadcast %cst_15 : f32 to vector<8x256xf32>
    %52 = arith.addf %51, %50 : vector<8x256xf32>
    %53 = arith.divf %51, %52 : vector<8x256xf32>
    %54 = vector.extract_strided_slice %41 {offsets = [0, 512], sizes = [8, 256], strides = [1, 1]} : vector<8x1024xf32> to vector<8x256xf32>
    %55 = math.tanh %54 : vector<8x256xf32>
    %56 = vector.extract_strided_slice %41 {offsets = [0, 768], sizes = [8, 256], strides = [1, 1]} : vector<8x1024xf32> to vector<8x256xf32>
    %57 = arith.negf %56 : vector<8x256xf32>
    %58 = math.exp %57 : vector<8x256xf32>
    %cst_16 = arith.constant 1.000000e+00 : f32
    %59 = vector.broadcast %cst_16 : f32 to vector<8x256xf32>
    %60 = arith.addf %59, %58 : vector<8x256xf32>
    %61 = arith.divf %59, %60 : vector<8x256xf32>
    %62 = arith.mulf %53, %35 : vector<8x256xf32>
    %63 = arith.mulf %47, %55 : vector<8x256xf32>
    %64 = arith.addf %62, %63 : vector<8x256xf32>
    %65 = math.tanh %64 : vector<8x256xf32>
    %66 = arith.mulf %61, %65 : vector<8x256xf32>
    %67 = vector.extract_strided_slice %5 {offsets = [16, 0], sizes = [8, 1024], strides = [1, 1]} : vector<64x2048xf32> to vector<8x1024xf32>
    %68 = arith.truncf %66 : vector<8x256xf32> to vector<8x256xbf16>
    %cst_17 = arith.constant dense<0.000000e+00> : vector<8x1024xf32>
    %69 = tpu.matmul %68, %6, %cst_17 {dimension_numbers = #tpu.dot_dimension_numbers<[1], [0], [0], [1], [0, 0, 1, 1], [], []>} : vector<8x256xbf16>, vector<256x1024xbf16>, vector<8x1024xf32> -> vector<8x1024xf32>
    %70 = arith.addf %67, %69 : vector<8x1024xf32>
    %71 = vector.extract_strided_slice %70 {offsets = [0, 0], sizes = [8, 256], strides = [1, 1]} : vector<8x1024xf32> to vector<8x256xf32>
    %72 = arith.negf %71 : vector<8x256xf32>
    %73 = math.exp %72 : vector<8x256xf32>
    %cst_18 = arith.constant 1.000000e+00 : f32
    %74 = vector.broadcast %cst_18 : f32 to vector<8x256xf32>
    %75 = arith.addf %74, %73 : vector<8x256xf32>
    %76 = arith.divf %74, %75 : vector<8x256xf32>
    %77 = vector.extract_strided_slice %70 {offsets = [0, 256], sizes = [8, 256], strides = [1, 1]} : vector<8x1024xf32> to vector<8x256xf32>
    %78 = arith.negf %77 : vector<8x256xf32>
    %79 = math.exp %78 : vector<8x256xf32>
    %cst_19 = arith.constant 1.000000e+00 : f32
    %80 = vector.broadcast %cst_19 : f32 to vector<8x256xf32>
    %81 = arith.addf %80, %79 : vector<8x256xf32>
    %82 = arith.divf %80, %81 : vector<8x256xf32>
    %83 = vector.extract_strided_slice %70 {offsets = [0, 512], sizes = [8, 256], strides = [1, 1]} : vector<8x1024xf32> to vector<8x256xf32>
    %84 = math.tanh %83 : vector<8x256xf32>
    %85 = vector.extract_strided_slice %70 {offsets = [0, 768], sizes = [8, 256], strides = [1, 1]} : vector<8x1024xf32> to vector<8x256xf32>
    %86 = arith.negf %85 : vector<8x256xf32>
    %87 = math.exp %86 : vector<8x256xf32>
    %cst_20 = arith.constant 1.000000e+00 : f32
    %88 = vector.broadcast %cst_20 : f32 to vector<8x256xf32>
    %89 = arith.addf %88, %87 : vector<8x256xf32>
    %90 = arith.divf %88, %89 : vector<8x256xf32>
    %91 = arith.mulf %82, %64 : vector<8x256xf32>
    %92 = arith.mulf %76, %84 : vector<8x256xf32>
    %93 = arith.addf %91, %92 : vector<8x256xf32>
    %94 = math.tanh %93 : vector<8x256xf32>
    %95 = arith.mulf %90, %94 : vector<8x256xf32>
    %96 = vector.extract_strided_slice %5 {offsets = [24, 0], sizes = [8, 1024], strides = [1, 1]} : vector<64x2048xf32> to vector<8x1024xf32>
    %97 = arith.truncf %95 : vector<8x256xf32> to vector<8x256xbf16>
    %cst_21 = arith.constant dense<0.000000e+00> : vector<8x1024xf32>
    %98 = tpu.matmul %97, %6, %cst_21 {dimension_numbers = #tpu.dot_dimension_numbers<[1], [0], [0], [1], [0, 0, 1, 1], [], []>} : vector<8x256xbf16>, vector<256x1024xbf16>, vector<8x1024xf32> -> vector<8x1024xf32>
    %99 = arith.addf %96, %98 : vector<8x1024xf32>
    %100 = vector.extract_strided_slice %99 {offsets = [0, 0], sizes = [8, 256], strides = [1, 1]} : vector<8x1024xf32> to vector<8x256xf32>
    %101 = arith.negf %100 : vector<8x256xf32>
    %102 = math.exp %101 : vector<8x256xf32>
    %cst_22 = arith.constant 1.000000e+00 : f32
    %103 = vector.broadcast %cst_22 : f32 to vector<8x256xf32>
    %104 = arith.addf %103, %102 : vector<8x256xf32>
    %105 = arith.divf %103, %104 : vector<8x256xf32>
    %106 = vector.extract_strided_slice %99 {offsets = [0, 256], sizes = [8, 256], strides = [1, 1]} : vector<8x1024xf32> to vector<8x256xf32>
    %107 = arith.negf %106 : vector<8x256xf32>
    %108 = math.exp %107 : vector<8x256xf32>
    %cst_23 = arith.constant 1.000000e+00 : f32
    %109 = vector.broadcast %cst_23 : f32 to vector<8x256xf32>
    %110 = arith.addf %109, %108 : vector<8x256xf32>
    %111 = arith.divf %109, %110 : vector<8x256xf32>
    %112 = vector.extract_strided_slice %99 {offsets = [0, 512], sizes = [8, 256], strides = [1, 1]} : vector<8x1024xf32> to vector<8x256xf32>
    %113 = math.tanh %112 : vector<8x256xf32>
    %114 = vector.extract_strided_slice %99 {offsets = [0, 768], sizes = [8, 256], strides = [1, 1]} : vector<8x1024xf32> to vector<8x256xf32>
    %115 = arith.negf %114 : vector<8x256xf32>
    %116 = math.exp %115 : vector<8x256xf32>
    %cst_24 = arith.constant 1.000000e+00 : f32
    %117 = vector.broadcast %cst_24 : f32 to vector<8x256xf32>
    %118 = arith.addf %117, %116 : vector<8x256xf32>
    %119 = arith.divf %117, %118 : vector<8x256xf32>
    %120 = arith.mulf %111, %93 : vector<8x256xf32>
    %121 = arith.mulf %105, %113 : vector<8x256xf32>
    %122 = arith.addf %120, %121 : vector<8x256xf32>
    %123 = math.tanh %122 : vector<8x256xf32>
    %124 = arith.mulf %119, %123 : vector<8x256xf32>
    %125 = vector.extract_strided_slice %5 {offsets = [32, 0], sizes = [8, 1024], strides = [1, 1]} : vector<64x2048xf32> to vector<8x1024xf32>
    %126 = arith.truncf %124 : vector<8x256xf32> to vector<8x256xbf16>
    %cst_25 = arith.constant dense<0.000000e+00> : vector<8x1024xf32>
    %127 = tpu.matmul %126, %6, %cst_25 {dimension_numbers = #tpu.dot_dimension_numbers<[1], [0], [0], [1], [0, 0, 1, 1], [], []>} : vector<8x256xbf16>, vector<256x1024xbf16>, vector<8x1024xf32> -> vector<8x1024xf32>
    %128 = arith.addf %125, %127 : vector<8x1024xf32>
    %129 = vector.extract_strided_slice %128 {offsets = [0, 0], sizes = [8, 256], strides = [1, 1]} : vector<8x1024xf32> to vector<8x256xf32>
    %130 = arith.negf %129 : vector<8x256xf32>
    %131 = math.exp %130 : vector<8x256xf32>
    %cst_26 = arith.constant 1.000000e+00 : f32
    %132 = vector.broadcast %cst_26 : f32 to vector<8x256xf32>
    %133 = arith.addf %132, %131 : vector<8x256xf32>
    %134 = arith.divf %132, %133 : vector<8x256xf32>
    %135 = vector.extract_strided_slice %128 {offsets = [0, 256], sizes = [8, 256], strides = [1, 1]} : vector<8x1024xf32> to vector<8x256xf32>
    %136 = arith.negf %135 : vector<8x256xf32>
    %137 = math.exp %136 : vector<8x256xf32>
    %cst_27 = arith.constant 1.000000e+00 : f32
    %138 = vector.broadcast %cst_27 : f32 to vector<8x256xf32>
    %139 = arith.addf %138, %137 : vector<8x256xf32>
    %140 = arith.divf %138, %139 : vector<8x256xf32>
    %141 = vector.extract_strided_slice %128 {offsets = [0, 512], sizes = [8, 256], strides = [1, 1]} : vector<8x1024xf32> to vector<8x256xf32>
    %142 = math.tanh %141 : vector<8x256xf32>
    %143 = vector.extract_strided_slice %128 {offsets = [0, 768], sizes = [8, 256], strides = [1, 1]} : vector<8x1024xf32> to vector<8x256xf32>
    %144 = arith.negf %143 : vector<8x256xf32>
    %145 = math.exp %144 : vector<8x256xf32>
    %cst_28 = arith.constant 1.000000e+00 : f32
    %146 = vector.broadcast %cst_28 : f32 to vector<8x256xf32>
    %147 = arith.addf %146, %145 : vector<8x256xf32>
    %148 = arith.divf %146, %147 : vector<8x256xf32>
    %149 = arith.mulf %140, %122 : vector<8x256xf32>
    %150 = arith.mulf %134, %142 : vector<8x256xf32>
    %151 = arith.addf %149, %150 : vector<8x256xf32>
    %152 = math.tanh %151 : vector<8x256xf32>
    %153 = arith.mulf %148, %152 : vector<8x256xf32>
    %154 = vector.extract_strided_slice %5 {offsets = [40, 0], sizes = [8, 1024], strides = [1, 1]} : vector<64x2048xf32> to vector<8x1024xf32>
    %155 = arith.truncf %153 : vector<8x256xf32> to vector<8x256xbf16>
    %cst_29 = arith.constant dense<0.000000e+00> : vector<8x1024xf32>
    %156 = tpu.matmul %155, %6, %cst_29 {dimension_numbers = #tpu.dot_dimension_numbers<[1], [0], [0], [1], [0, 0, 1, 1], [], []>} : vector<8x256xbf16>, vector<256x1024xbf16>, vector<8x1024xf32> -> vector<8x1024xf32>
    %157 = arith.addf %154, %156 : vector<8x1024xf32>
    %158 = vector.extract_strided_slice %157 {offsets = [0, 0], sizes = [8, 256], strides = [1, 1]} : vector<8x1024xf32> to vector<8x256xf32>
    %159 = arith.negf %158 : vector<8x256xf32>
    %160 = math.exp %159 : vector<8x256xf32>
    %cst_30 = arith.constant 1.000000e+00 : f32
    %161 = vector.broadcast %cst_30 : f32 to vector<8x256xf32>
    %162 = arith.addf %161, %160 : vector<8x256xf32>
    %163 = arith.divf %161, %162 : vector<8x256xf32>
    %164 = vector.extract_strided_slice %157 {offsets = [0, 256], sizes = [8, 256], strides = [1, 1]} : vector<8x1024xf32> to vector<8x256xf32>
    %165 = arith.negf %164 : vector<8x256xf32>
    %166 = math.exp %165 : vector<8x256xf32>
    %cst_31 = arith.constant 1.000000e+00 : f32
    %167 = vector.broadcast %cst_31 : f32 to vector<8x256xf32>
    %168 = arith.addf %167, %166 : vector<8x256xf32>
    %169 = arith.divf %167, %168 : vector<8x256xf32>
    %170 = vector.extract_strided_slice %157 {offsets = [0, 512], sizes = [8, 256], strides = [1, 1]} : vector<8x1024xf32> to vector<8x256xf32>
    %171 = math.tanh %170 : vector<8x256xf32>
    %172 = vector.extract_strided_slice %157 {offsets = [0, 768], sizes = [8, 256], strides = [1, 1]} : vector<8x1024xf32> to vector<8x256xf32>
    %173 = arith.negf %172 : vector<8x256xf32>
    %174 = math.exp %173 : vector<8x256xf32>
    %cst_32 = arith.constant 1.000000e+00 : f32
    %175 = vector.broadcast %cst_32 : f32 to vector<8x256xf32>
    %176 = arith.addf %175, %174 : vector<8x256xf32>
    %177 = arith.divf %175, %176 : vector<8x256xf32>
    %178 = arith.mulf %169, %151 : vector<8x256xf32>
    %179 = arith.mulf %163, %171 : vector<8x256xf32>
    %180 = arith.addf %178, %179 : vector<8x256xf32>
    %181 = math.tanh %180 : vector<8x256xf32>
    %182 = arith.mulf %177, %181 : vector<8x256xf32>
    %183 = vector.extract_strided_slice %5 {offsets = [48, 0], sizes = [8, 1024], strides = [1, 1]} : vector<64x2048xf32> to vector<8x1024xf32>
    %184 = arith.truncf %182 : vector<8x256xf32> to vector<8x256xbf16>
    %cst_33 = arith.constant dense<0.000000e+00> : vector<8x1024xf32>
    %185 = tpu.matmul %184, %6, %cst_33 {dimension_numbers = #tpu.dot_dimension_numbers<[1], [0], [0], [1], [0, 0, 1, 1], [], []>} : vector<8x256xbf16>, vector<256x1024xbf16>, vector<8x1024xf32> -> vector<8x1024xf32>
    %186 = arith.addf %183, %185 : vector<8x1024xf32>
    %187 = vector.extract_strided_slice %186 {offsets = [0, 0], sizes = [8, 256], strides = [1, 1]} : vector<8x1024xf32> to vector<8x256xf32>
    %188 = arith.negf %187 : vector<8x256xf32>
    %189 = math.exp %188 : vector<8x256xf32>
    %cst_34 = arith.constant 1.000000e+00 : f32
    %190 = vector.broadcast %cst_34 : f32 to vector<8x256xf32>
    %191 = arith.addf %190, %189 : vector<8x256xf32>
    %192 = arith.divf %190, %191 : vector<8x256xf32>
    %193 = vector.extract_strided_slice %186 {offsets = [0, 256], sizes = [8, 256], strides = [1, 1]} : vector<8x1024xf32> to vector<8x256xf32>
    %194 = arith.negf %193 : vector<8x256xf32>
    %195 = math.exp %194 : vector<8x256xf32>
    %cst_35 = arith.constant 1.000000e+00 : f32
    %196 = vector.broadcast %cst_35 : f32 to vector<8x256xf32>
    %197 = arith.addf %196, %195 : vector<8x256xf32>
    %198 = arith.divf %196, %197 : vector<8x256xf32>
    %199 = vector.extract_strided_slice %186 {offsets = [0, 512], sizes = [8, 256], strides = [1, 1]} : vector<8x1024xf32> to vector<8x256xf32>
    %200 = math.tanh %199 : vector<8x256xf32>
    %201 = vector.extract_strided_slice %186 {offsets = [0, 768], sizes = [8, 256], strides = [1, 1]} : vector<8x1024xf32> to vector<8x256xf32>
    %202 = arith.negf %201 : vector<8x256xf32>
    %203 = math.exp %202 : vector<8x256xf32>
    %cst_36 = arith.constant 1.000000e+00 : f32
    %204 = vector.broadcast %cst_36 : f32 to vector<8x256xf32>
    %205 = arith.addf %204, %203 : vector<8x256xf32>
    %206 = arith.divf %204, %205 : vector<8x256xf32>
    %207 = arith.mulf %198, %180 : vector<8x256xf32>
    %208 = arith.mulf %192, %200 : vector<8x256xf32>
    %209 = arith.addf %207, %208 : vector<8x256xf32>
    %210 = math.tanh %209 : vector<8x256xf32>
    %211 = arith.mulf %206, %210 : vector<8x256xf32>
    %212 = vector.extract_strided_slice %5 {offsets = [56, 0], sizes = [8, 1024], strides = [1, 1]} : vector<64x2048xf32> to vector<8x1024xf32>
    %213 = arith.truncf %211 : vector<8x256xf32> to vector<8x256xbf16>
    %cst_37 = arith.constant dense<0.000000e+00> : vector<8x1024xf32>
    %214 = tpu.matmul %213, %6, %cst_37 {dimension_numbers = #tpu.dot_dimension_numbers<[1], [0], [0], [1], [0, 0, 1, 1], [], []>} : vector<8x256xbf16>, vector<256x1024xbf16>, vector<8x1024xf32> -> vector<8x1024xf32>
    %215 = arith.addf %212, %214 : vector<8x1024xf32>
    %216 = vector.extract_strided_slice %215 {offsets = [0, 0], sizes = [8, 256], strides = [1, 1]} : vector<8x1024xf32> to vector<8x256xf32>
    %217 = arith.negf %216 : vector<8x256xf32>
    %218 = math.exp %217 : vector<8x256xf32>
    %cst_38 = arith.constant 1.000000e+00 : f32
    %219 = vector.broadcast %cst_38 : f32 to vector<8x256xf32>
    %220 = arith.addf %219, %218 : vector<8x256xf32>
    %221 = arith.divf %219, %220 : vector<8x256xf32>
    %222 = vector.extract_strided_slice %215 {offsets = [0, 256], sizes = [8, 256], strides = [1, 1]} : vector<8x1024xf32> to vector<8x256xf32>
    %223 = arith.negf %222 : vector<8x256xf32>
    %224 = math.exp %223 : vector<8x256xf32>
    %cst_39 = arith.constant 1.000000e+00 : f32
    %225 = vector.broadcast %cst_39 : f32 to vector<8x256xf32>
    %226 = arith.addf %225, %224 : vector<8x256xf32>
    %227 = arith.divf %225, %226 : vector<8x256xf32>
    %228 = vector.extract_strided_slice %215 {offsets = [0, 512], sizes = [8, 256], strides = [1, 1]} : vector<8x1024xf32> to vector<8x256xf32>
    %229 = math.tanh %228 : vector<8x256xf32>
    %230 = vector.extract_strided_slice %215 {offsets = [0, 768], sizes = [8, 256], strides = [1, 1]} : vector<8x1024xf32> to vector<8x256xf32>
    %231 = arith.negf %230 : vector<8x256xf32>
    %232 = math.exp %231 : vector<8x256xf32>
    %cst_40 = arith.constant 1.000000e+00 : f32
    %233 = vector.broadcast %cst_40 : f32 to vector<8x256xf32>
    %234 = arith.addf %233, %232 : vector<8x256xf32>
    %235 = arith.divf %233, %234 : vector<8x256xf32>
    %236 = arith.mulf %227, %209 : vector<8x256xf32>
    %237 = arith.mulf %221, %229 : vector<8x256xf32>
    %238 = arith.addf %236, %237 : vector<8x256xf32>
    %239 = math.tanh %238 : vector<8x256xf32>
    %240 = arith.mulf %235, %239 : vector<8x256xf32>
    %241 = vector.extract_strided_slice %5 {offsets = [56, 1024], sizes = [8, 1024], strides = [1, 1]} : vector<64x2048xf32> to vector<8x1024xf32>
    %cst_41 = arith.constant 0.000000e+00 : f32
    %242 = vector.broadcast %cst_41 : f32 to vector<8x256xf32>
    %243 = vector.extract_strided_slice %241 {offsets = [0, 0], sizes = [8, 256], strides = [1, 1]} : vector<8x1024xf32> to vector<8x256xf32>
    %244 = arith.negf %243 : vector<8x256xf32>
    %245 = math.exp %244 : vector<8x256xf32>
    %cst_42 = arith.constant 1.000000e+00 : f32
    %246 = vector.broadcast %cst_42 : f32 to vector<8x256xf32>
    %247 = arith.addf %246, %245 : vector<8x256xf32>
    %248 = arith.divf %246, %247 : vector<8x256xf32>
    %249 = vector.extract_strided_slice %241 {offsets = [0, 256], sizes = [8, 256], strides = [1, 1]} : vector<8x1024xf32> to vector<8x256xf32>
    %250 = arith.negf %249 : vector<8x256xf32>
    %251 = math.exp %250 : vector<8x256xf32>
    %cst_43 = arith.constant 1.000000e+00 : f32
    %252 = vector.broadcast %cst_43 : f32 to vector<8x256xf32>
    %253 = arith.addf %252, %251 : vector<8x256xf32>
    %254 = arith.divf %252, %253 : vector<8x256xf32>
    %255 = vector.extract_strided_slice %241 {offsets = [0, 512], sizes = [8, 256], strides = [1, 1]} : vector<8x1024xf32> to vector<8x256xf32>
    %256 = math.tanh %255 : vector<8x256xf32>
    %257 = vector.extract_strided_slice %241 {offsets = [0, 768], sizes = [8, 256], strides = [1, 1]} : vector<8x1024xf32> to vector<8x256xf32>
    %258 = arith.negf %257 : vector<8x256xf32>
    %259 = math.exp %258 : vector<8x256xf32>
    %cst_44 = arith.constant 1.000000e+00 : f32
    %260 = vector.broadcast %cst_44 : f32 to vector<8x256xf32>
    %261 = arith.addf %260, %259 : vector<8x256xf32>
    %262 = arith.divf %260, %261 : vector<8x256xf32>
    %263 = arith.mulf %254, %242 : vector<8x256xf32>
    %264 = arith.mulf %248, %256 : vector<8x256xf32>
    %265 = arith.addf %263, %264 : vector<8x256xf32>
    %266 = math.tanh %265 : vector<8x256xf32>
    %267 = arith.mulf %262, %266 : vector<8x256xf32>
    %c0_45 = arith.constant 0 : index
    %c0_46 = arith.constant 0 : index
    %268 = vector.load %arg4[%c0_45, %c0_46] : memref<1x512xf32, #tpu.memory_space<vmem>>, vector<1x256xf32>
    %269 = vector.broadcast %268 : vector<1x256xf32> to vector<8x256xf32>
    %270 = arith.mulf %240, %269 : vector<8x256xf32>
    %cst_47 = arith.constant dense<0.000000e+00> : vector<8xf32>
    %271 = vector.multi_reduction <add>, %270, %cst_47 [1] : vector<8x256xf32> to vector<8xf32>
    %272 = vector.shape_cast %271 : vector<8xf32> to vector<8x1xf32>
    %c0_48 = arith.constant 0 : index
    %c256 = arith.constant 256 : index
    %273 = vector.load %arg4[%c0_48, %c256] : memref<1x512xf32, #tpu.memory_space<vmem>>, vector<1x256xf32>
    %274 = vector.broadcast %273 : vector<1x256xf32> to vector<8x256xf32>
    %275 = arith.mulf %267, %274 : vector<8x256xf32>
    %cst_49 = arith.constant dense<0.000000e+00> : vector<8xf32>
    %276 = vector.multi_reduction <add>, %275, %cst_49 [1] : vector<8x256xf32> to vector<8xf32>
    %277 = vector.shape_cast %276 : vector<8xf32> to vector<8x1xf32>
    %278 = arith.addf %272, %277 : vector<8x1xf32>
    %c0_50 = arith.constant 0 : index
    %c0_51 = arith.constant 0 : index
    %279 = vector.load %arg5[%c0_50, %c0_51] : memref<1x1xf32, #tpu.memory_space<vmem>>, vector<1x1xf32>
    %280 = vector.broadcast %279 : vector<1x1xf32> to vector<8x1xf32>
    %281 = arith.addf %278, %280 : vector<8x1xf32>
    %c0_52 = arith.constant 0 : index
    %c0_53 = arith.constant 0 : index
    %282 = vector.load %arg6[%c0_52, %c0_53] : memref<8x1xf32, #tpu.memory_space<vmem>>, vector<8x1xf32>
    tpu.vector_store %arg6[%c0_52, %c0_53], %281 {strides = array<i32>} : memref<8x1xf32, #tpu.memory_space<vmem>>, vector<8x1xf32>,
    return
  }
}

</mosaic_0001>

<llo_original>
// kernel: tpu_custom_call.1
$region0: #{tpu_custom_call.1}
  #allocation0 [shape = 'u32[]', space=smem, size = 0x4, offset = 0x4, fixed_abs, tag = 'smem constant byte address 0x4 - core index']
  #allocation1 [shape = 'u32[144,128]{1,0:T(1,128)}', space=vmem, size = 0x12000, scoped, tag = 'internal scratch']
  #allocation2 [shape = 'bf16[256,1024]{1,0:T(16,128)(2,1)}', space=vmem, size = 0x80000, scoped, tag = 'scratch operand']
  #allocation3 [shape = 's32[1]{0}', space=sflag, size = 0x4, scoped, tag = 'scratch operand']
  #allocation4 [shape = 'f32[1,1]{1,0:T(1,128)S(1)}', space=vmem, size = 0x200, scoped, tag = 'scoped memory for tpu_custom_call.1']
  #allocation10 [shape = 's32[]', space=sflag, size = 0x4, offset = 0, fixed_abs, tag = 'sflag constant byte address 0x0 - dummy sync flag']
  %s0 = inlined_call_operand.hbm [shape: bf16[64,128], index: 0, kind: input, shape index: {}]
  %s1 = inlined_call_operand.hbm [shape: bf16[128,2048], index: 1, kind: input, shape index: {}]
  %s2 = inlined_call_operand.hbm [shape: f32[1,2048], index: 2, kind: input, shape index: {}]
  %s3 = inlined_call_operand.hbm [shape: bf16[256,1024], index: 3, kind: input, shape index: {}]
  %s4 = inlined_call_operand.vmem [shape: f32[1,512], index: 4, kind: input, shape index: {}]
  %s5 = inlined_call_operand.<no memory space> [shape: f32[1,1], index: 5, kind: input, shape index: {}]
  %s6 = inlined_call_operand.vmem [shape: f32[8,1], index: 6, kind: output, shape index: {}]
  %s7 = sld [smem:[#allocation0]]
  $region42: #{tpu_custom_call.1} parent=0
    _
  %s9 = ssub.s32 1, %s7
  %s10 = scalar_select 0, %s9, %s7
  %v11 = vstv %s5
  %12 = vst [vmem:[#allocation4] sm:$0x1] %v11
  $region1: #{tpu_custom_call.1} parent=0
    #allocation5 [shape = 'u8[16384]{0}', space=vmem, size = 0x4000, scoped, tag = 'input window, operand 0, single buffered']
    #allocation6 [shape = 's32[1]{0}', space=sflag, size = 0x4, scoped, tag = 'scoped memory for tpu_custom_call.1']
    #allocation7 [shape = 'u8[524288]{0}', space=vmem, size = 0x80000, scoped, tag = 'input window, operand 1, single buffered']
    #allocation8 [shape = 's32[1]{0}', space=sflag, size = 0x4, scoped, tag = 'scoped memory for tpu_custom_call.1']
    #allocation9 [shape = 'u8[8192]{0}', space=vmem, size = 0x2000, scoped, tag = 'input window, operand 2, single buffered']
    #allocation11 [shape = 'u32[9]{0}', space=smem, size = 0x24, scoped, tag = 'DMA stride descriptor']
    %13 = vsyncpa [#allocation6], 0
    %14 = vsyncpa [#allocation8], 0
    // Predicated region
    $region2: #{tpu_custom_call.1} parent=1 // pred_check
      _
    $region3: #{tpu_custom_call.1} parent=1 // pred_check_branch
      %16 = sbr.rel (0) target = $region5
    $region4: #{tpu_custom_call.1} parent=1 // pred_region
      %s18 = ssub.s32 512, 512
      %19 = vsyncadd [#allocation6], %s18
      %s20 = sshll.u32 [#allocation5], 4
      %s21 = int_to_ptr.vmem [resolvable:$true] %s20
      %26 = dma.hbm_to_vmem [thread:$0]  %s0, 512, %s21, [#allocation6], 64, 64, 4
    $region5: #{tpu_custom_call.1} parent=1 // pred_fallthru
      _
    // Predicated region
    $region6: #{tpu_custom_call.1} parent=1 // pred_check
      _
    $region7: #{tpu_custom_call.1} parent=1 // pred_check_branch
      %28 = sbr.rel (0) target = $region9
    $region8: #{tpu_custom_call.1} parent=1 // pred_region
      %s30 = ssub.s32 16384, 16384
      %31 = vsyncadd [#allocation8], %s30
      %s32 = sshll.u32 [#allocation7], 4
      %s33 = int_to_ptr.vmem [resolvable:$true] %s32
      %38 = dma.hbm_to_vmem [thread:$0]  %s1, 16384, %s33, [#allocation8], 1024, 1024, 64
    $region9: #{tpu_custom_call.1} parent=1 // pred_fallthru
      _
    // Predicated region
    $region10: #{tpu_custom_call.1} parent=1 // pred_check
      _
    $region11: #{tpu_custom_call.1} parent=1 // pred_check_branch
      %40 = sbr.rel (0) target = $region13
    $region12: #{tpu_custom_call.1} parent=1 // pred_region
      %s42 = ssub.s32 256, 256
      %43 = vsyncadd [#allocation8], %s42
      %s45 = sshll.u32 [#allocation9], 4
      %s46 = int_to_ptr.vmem [resolvable:$true] %s45
      %48 = dma.hbm_to_vmem [thread:$0]  %s2, 256, %s46, [#allocation8]
    $region13: #{tpu_custom_call.1} parent=1 // pred_fallthru
      _
    // Predicated region
    $region14: #{tpu_custom_call.1} parent=1 // pred_check
      _
    $region15: #{tpu_custom_call.1} parent=1 // pred_check_branch
      %50 = sbr.rel (0) target = $region17
    $region16: #{tpu_custom_call.1} parent=1 // pred_region
      _
    $region17: #{tpu_custom_call.1} parent=1 // pred_fallthru
      _
    // Predicated region
    $region18: #{tpu_custom_call.1} parent=1 // pred_check
      _
    $region19: #{tpu_custom_call.1} parent=1 // pred_check_branch
      %52 = sbr.rel (0) target = $region21
    $region20: #{tpu_custom_call.1} parent=1 // pred_region
      _
    $region21: #{tpu_custom_call.1} parent=1 // pred_fallthru
      _
    // Predicated region
    $region22: #{tpu_custom_call.1} parent=1 // pred_check
      _
    $region23: #{tpu_custom_call.1} parent=1 // pred_check_branch
      %54 = sbr.rel (0) target = $region25
    $region24: #{tpu_custom_call.1} parent=1 // pred_region
      %55 = dma.done [#allocation6], 512
    $region25: #{tpu_custom_call.1} parent=1 // pred_fallthru
      _
    // Predicated region
    $region26: #{tpu_custom_call.1} parent=1 // pred_check
      _
    $region27: #{tpu_custom_call.1} parent=1 // pred_check_branch
      %57 = sbr.rel (0) target = $region29
    $region28: #{tpu_custom_call.1} parent=1 // pred_region
      %58 = dma.done [#allocation8], 16384
    $region29: #{tpu_custom_call.1} parent=1 // pred_fallthru
      _
    // Predicated region
    $region30: #{tpu_custom_call.1} parent=1 // pred_check
      _
    $region31: #{tpu_custom_call.1} parent=1 // pred_check_branch
      %60 = sbr.rel (0) target = $region33
    $region32: #{tpu_custom_call.1} parent=1 // pred_region
      %61 = dma.done [#allocation8], 256
    $region33: #{tpu_custom_call.1} parent=1 // pred_fallthru
      _
    %s64 = sshll.u32 1, 14
    %s65 = sxor.u32 4294967295, %s64
    %s67 = sld [smem:[#allocation0]]
    %s68 = sadd.s32 2, %s67
    %s70 = sshll.u32 7, 26
    %s71 = sxor.u32 4294967295, %s70
    %s72 = sand.u32 0, %s71
    %s73 = sshll.u32 %s68, 26
    %s74 = sor.u32 %s72, %s73
    %s75 = sshll.u32 [#allocation2], 4
    %s76 = int_to_ptr.vmem [resolvable:$true] %s75
    %79 = sst [smem:[#allocation11]] 1024
    %s80 = scalar_lea.smem [#allocation11], 1
    %81 = sst [smem:[%s80]] 1024
    %s82 = scalar_lea.smem [#allocation11], 2
    %83 = sst [smem:[%s82]] 8
    %s84 = scalar_lea.smem [#allocation11], 3
    %85 = sst [smem:[%s84]] 64
    %s86 = scalar_lea.smem [#allocation11], 4
    %87 = sst [smem:[%s86]] 128
    %s88 = scalar_lea.smem [#allocation11], 5
    %89 = sst [smem:[%s88]] 2
    %s90 = scalar_lea.smem [#allocation11], 6
    %91 = sst [smem:[%s90]] 512
    %s92 = scalar_lea.smem [#allocation11], 7
    %93 = sst [smem:[%s92]] 64
    %s94 = scalar_lea.smem [#allocation11], 8
    %95 = sst [smem:[%s94]] 4
    %97 = dma.general %s3, 16384, %s76, [#allocation3], [#allocation10], [#allocation11], %s74, 0
    %v98 = vld [vmem:[#allocation5] sm:$0xf]
    %v99 = vld [vmem:[#allocation5 + $0x4] sm:$0xf]
    %v100 = vld [vmem:[#allocation5 + $0x8] sm:$0xf]
    %v101 = vld [vmem:[#allocation5 + $0xc] sm:$0xf]
    %v102 = vld [vmem:[#allocation5 + $0x10] sm:$0xf]
    %v103 = vld [vmem:[#allocation5 + $0x14] sm:$0xf]
    %v104 = vld [vmem:[#allocation5 + $0x18] sm:$0xf]
    %v105 = vld [vmem:[#allocation5 + $0x1c] sm:$0xf]
    %v106 = vld [vmem:[#allocation7] sm:$0xff]
    %v107 = vld [vmem:[#allocation7 + $0x8] sm:$0xff]
    %v108 = vld [vmem:[#allocation7 + $0x10] sm:$0xff]
    %v109 = vld [vmem:[#allocation7 + $0x18] sm:$0xff]
    %v110 = vld [vmem:[#allocation7 + $0x20] sm:$0xff]
    %v111 = vld [vmem:[#allocation7 + $0x28] sm:$0xff]
    %v112 = vld [vmem:[#allocation7 + $0x30] sm:$0xff]
    %v113 = vld [vmem:[#allocation7 + $0x38] sm:$0xff]
    %v114 = vld [vmem:[#allocation7 + $0x40] sm:$0xff]
    %v115 = vld [vmem:[#allocation7 + $0x48] sm:$0xff]
    %v116 = vld [vmem:[#allocation7 + $0x50] sm:$0xff]
    %v117 = vld [vmem:[#allocation7 + $0x58] sm:$0xff]
    %v118 = vld [vmem:[#allocation7 + $0x60] sm:$0xff]
    %v119 = vld [vmem:[#allocation7 + $0x68] sm:$0xff]
    %v120 = vld [vmem:[#allocation7 + $0x70] sm:$0xff]
    %v121 = vld [vmem:[#allocation7 + $0x78] sm:$0xff]
    %v122 = vld [vmem:[#allocation7 + $0x80] sm:$0xff]
    %v123 = vld [vmem:[#allocation7 + $0x88] sm:$0xff]
    %v124 = vld [vmem:[#allocation7 + $0x90] sm:$0xff]
    %v125 = vld [vmem:[#allocation7 + $0x98] sm:$0xff]
    %v126 = vld [vmem:[#allocation7 + $0xa0] sm:$0xff]
    %v127 = vld [vmem:[#allocation7 + $0xa8] sm:$0xff]
    %v128 = vld [vmem:[#allocation7 + $0xb0] sm:$0xff]
    %v129 = vld [vmem:[#allocation7 + $0xb8] sm:$0xff]
    %v130 = vld [vmem:[#allocation7 + $0xc0] sm:$0xff]
    %v131 = vld [vmem:[#allocation7 + $0xc8] sm:$0xff]
    %v132 = vld [vmem:[#allocation7 + $0xd0] sm:$0xff]
    %v133 = vld [vmem:[#allocation7 + $0xd8] sm:$0xff]
    %v134 = vld [vmem:[#allocation7 + $0xe0] sm:$0xff]
    %v135 = vld [vmem:[#allocation7 + $0xe8] sm:$0xff]
    %v136 = vld [vmem:[#allocation7 + $0xf0] sm:$0xff]
    %v137 = vld [vmem:[#allocation7 + $0xf8] sm:$0xff]
    %v138 = vld [vmem:[#allocation7 + $0x100] sm:$0xff]
    %v139 = vld [vmem:[#allocation7 + $0x108] sm:$0xff]
    %v140 = vld [vmem:[#allocation7 + $0x110] sm:$0xff]
    %v141 = vld [vmem:[#allocation7 + $0x118] sm:$0xff]
    %v142 = vld [vmem:[#allocation7 + $0x120] sm:$0xff]
    %v143 = vld [vmem:[#allocation7 + $0x128] sm:$0xff]
    %v144 = vld [vmem:[#allocation7 + $0x130] sm:$0xff]
    %v145 = vld [vmem:[#allocation7 + $0x138] sm:$0xff]
    %v146 = vld [vmem:[#allocation7 + $0x140] sm:$0xff]
    %v147 = vld [vmem:[#allocation7 + $0x148] sm:$0xff]
    %v148 = vld [vmem:[#allocation7 + $0x150] sm:$0xff]
    %v149 = vld [vmem:[#allocation7 + $0x158] sm:$0xff]
    %v150 = vld [vmem:[#allocation7 + $0x160] sm:$0xff]
    %v151 = vld [vmem:[#allocation7 + $0x168] sm:$0xff]
    %v152 = vld [vmem:[#allocation7 + $0x170] sm:$0xff]
    %v153 = vld [vmem:[#allocation7 + $0x178] sm:$0xff]
    %v154 = vld [vmem:[#allocation7 + $0x180] sm:$0xff]
    %v155 = vld [vmem:[#allocation7 + $0x188] sm:$0xff]
    %v156 = vld [vmem:[#allocation7 + $0x190] sm:$0xff]
    %v157 = vld [vmem:[#allocation7 + $0x198] sm:$0xff]
    %v158 = vld [vmem:[#allocation7 + $0x1a0] sm:$0xff]
    %v159 = vld [vmem:[#allocation7 + $0x1a8] sm:$0xff]
    %v160 = vld [vmem:[#allocation7 + $0x1b0] sm:$0xff]
    %v161 = vld [vmem:[#allocation7 + $0x1b8] sm:$0xff]
    %v162 = vld [vmem:[#allocation7 + $0x1c0] sm:$0xff]
    %v163 = vld [vmem:[#allocation7 + $0x1c8] sm:$0xff]
    %v164 = vld [vmem:[#allocation7 + $0x1d0] sm:$0xff]
    %v165 = vld [vmem:[#allocation7 + $0x1d8] sm:$0xff]
    %v166 = vld [vmem:[#allocation7 + $0x1e0] sm:$0xff]
    %v167 = vld [vmem:[#allocation7 + $0x1e8] sm:$0xff]
    %v168 = vld [vmem:[#allocation7 + $0x1f0] sm:$0xff]
    %v169 = vld [vmem:[#allocation7 + $0x1f8] sm:$0xff]
    %v170 = vld [vmem:[#allocation7 + $0x200] sm:$0xff]
    %v171 = vld [vmem:[#allocation7 + $0x208] sm:$0xff]
    %v172 = vld [vmem:[#allocation7 + $0x210] sm:$0xff]
    %v173 = vld [vmem:[#allocation7 + $0x218] sm:$0xff]
    %v174 = vld [vmem:[#allocation7 + $0x220] sm:$0xff]
    %v175 = vld [vmem:[#allocation7 + $0x228] sm:$0xff]
    %v176 = vld [vmem:[#allocation7 + $0x230] sm:$0xff]
    %v177 = vld [vmem:[#allocation7 + $0x238] sm:$0xff]
    %v178 = vld [vmem:[#allocation7 + $0x240] sm:$0xff]
    %v179 = vld [vmem:[#allocation7 + $0x248] sm:$0xff]
    %v180 = vld [vmem:[#allocation7 + $0x250] sm:$0xff]
    %v181 = vld [vmem:[#allocation7 + $0x258] sm:$0xff]
    %v182 = vld [vmem:[#allocation7 + $0x260] sm:$0xff]
    %v183 = vld [vmem:[#allocation7 + $0x268] sm:$0xff]
    %v184 = vld [vmem:[#allocation7 + $0x270] sm:$0xff]
    %v185 = vld [vmem:[#allocation7 + $0x278] sm:$0xff]
    %v186 = vld [vmem:[#allocation7 + $0x280] sm:$0xff]
    %v187 = vld [vmem:[#allocation7 + $0x288] sm:$0xff]
    %v188 = vld [vmem:[#allocation7 + $0x290] sm:$0xff]
    %v189 = vld [vmem:[#allocation7 + $0x298] sm:$0xff]
    %v190 = vld [vmem:[#allocation7 + $0x2a0] sm:$0xff]
    %v191 = vld [vmem:[#allocation7 + $0x2a8] sm:$0xff]
    %v192 = vld [vmem:[#allocation7 + $0x2b0] sm:$0xff]
    %v193 = vld [vmem:[#allocation7 + $0x2b8] sm:$0xff]
    %v194 = vld [vmem:[#allocation7 + $0x2c0] sm:$0xff]
    %v195 = vld [vmem:[#allocation7 + $0x2c8] sm:$0xff]
    %v196 = vld [vmem:[#allocation7 + $0x2d0] sm:$0xff]
    %v197 = vld [vmem:[#allocation7 + $0x2d8] sm:$0xff]
    %v198 = vld [vmem:[#allocation7 + $0x2e0] sm:$0xff]
    %v199 = vld [vmem:[#allocation7 + $0x2e8] sm:$0xff]
    %v200 = vld [vmem:[#allocation7 + $0x2f0] sm:$0xff]
    %v201 = vld [vmem:[#allocation7 + $0x2f8] sm:$0xff]
    %v202 = vld [vmem:[#allocation7 + $0x300] sm:$0xff]
    %v203 = vld [vmem:[#allocation7 + $0x308] sm:$0xff]
    %v204 = vld [vmem:[#allocation7 + $0x310] sm:$0xff]
    %v205 = vld [vmem:[#allocation7 + $0x318] sm:$0xff]
    %v206 = vld [vmem:[#allocation7 + $0x320] sm:$0xff]
    %v207 = vld [vmem:[#allocation7 + $0x328] sm:$0xff]
    %v208 = vld [vmem:[#allocation7 + $0x330] sm:$0xff]
    %v209 = vld [vmem:[#allocation7 + $0x338] sm:$0xff]
    %v210 = vld [vmem:[#allocation7 + $0x340] sm:$0xff]
    %v211 = vld [vmem:[#allocation7 + $0x348] sm:$0xff]
    %v212 = vld [vmem:[#allocation7 + $0x350] sm:$0xff]
    %v213 = vld [vmem:[#allocation7 + $0x358] sm:$0xff]
    %v214 = vld [vmem:[#allocation7 + $0x360] sm:$0xff]
    %v215 = vld [vmem:[#allocation7 + $0x368] sm:$0xff]
    %v216 = vld [vmem:[#allocation7 + $0x370] sm:$0xff]
    %v217 = vld [vmem:[#allocation7 + $0x378] sm:$0xff]
    %v218 = vld [vmem:[#allocation7 + $0x380] sm:$0xff]
    %v219 = vld [vmem:[#allocation7 + $0x388] sm:$0xff]
    %v220 = vld [vmem:[#allocation7 + $0x390] sm:$0xff]
    %v221 = vld [vmem:[#allocation7 + $0x398] sm:$0xff]
    %v222 = vld [vmem:[#allocation7 + $0x3a0] sm:$0xff]
    %v223 = vld [vmem:[#allocation7 + $0x3a8] sm:$0xff]
    %v224 = vld [vmem:[#allocation7 + $0x3b0] sm:$0xff]
    %v225 = vld [vmem:[#allocation7 + $0x3b8] sm:$0xff]
    %v226 = vld [vmem:[#allocation7 + $0x3c0] sm:$0xff]
    %v227 = vld [vmem:[#allocation7 + $0x3c8] sm:$0xff]
    %v228 = vld [vmem:[#allocation7 + $0x3d0] sm:$0xff]
    %v229 = vld [vmem:[#allocation7 + $0x3d8] sm:$0xff]
    %v230 = vld [vmem:[#allocation7 + $0x3e0] sm:$0xff]
    %v231 = vld [vmem:[#allocation7 + $0x3e8] sm:$0xff]
    %v232 = vld [vmem:[#allocation7 + $0x3f0] sm:$0xff]
    %v233 = vld [vmem:[#allocation7 + $0x3f8] sm:$0xff]
    %v234 = vld [vmem:[#allocation9] sm:$0xff]
    %v235 = vld [vmem:[#allocation9 + $0x8] sm:$0xff]
    %v238 = vlaneseq
    %v239 = vshrl.u32 %v238, 7
    %v240 = vsub.s32 0, %v239
    %v241 = vrot.slane %v234, %v240
    %v242 = vlaneseq
    %v243 = vshrl.u32 %v242, 7
    %v244 = vsub.s32 1, %v243
    %v245 = vrot.slane %v234, %v244
    %v246 = vlaneseq
    %v247 = vshrl.u32 %v246, 7
    %v248 = vsub.s32 2, %v247
    %v249 = vrot.slane %v234, %v248
    %v250 = vlaneseq
    %v251 = vshrl.u32 %v250, 7
    %v252 = vsub.s32 3, %v251
    %v253 = vrot.slane %v234, %v252
    %v254 = vlaneseq
    %v255 = vshrl.u32 %v254, 7
    %v256 = vsub.s32 4, %v255
    %v257 = vrot.slane %v234, %v256
    %v258 = vlaneseq
    %v259 = vshrl.u32 %v258, 7
    %v260 = vsub.s32 5, %v259
    %v261 = vrot.slane %v234, %v260
    %v262 = vlaneseq
    %v263 = vshrl.u32 %v262, 7
    %v264 = vsub.s32 6, %v263
    %v265 = vrot.slane %v234, %v264
    %v266 = vlaneseq
    %v267 = vshrl.u32 %v266, 7
    %v268 = vsub.s32 7, %v267
    %v269 = vrot.slane %v234, %v268
    %v270 = vlaneseq
    %v271 = vshrl.u32 %v270, 7
    %v272 = vsub.s32 0, %v271
    %v273 = vrot.slane %v235, %v272
    %v274 = vlaneseq
    %v275 = vshrl.u32 %v274, 7
    %v276 = vsub.s32 1, %v275
    %v277 = vrot.slane %v235, %v276
    %v278 = vlaneseq
    %v279 = vshrl.u32 %v278, 7
    %v280 = vsub.s32 2, %v279
    %v281 = vrot.slane %v235, %v280
    %v282 = vlaneseq
    %v283 = vshrl.u32 %v282, 7
    %v284 = vsub.s32 3, %v283
    %v285 = vrot.slane %v235, %v284
    %v286 = vlaneseq
    %v287 = vshrl.u32 %v286, 7
    %v288 = vsub.s32 4, %v287
    %v289 = vrot.slane %v235, %v288
    %v290 = vlaneseq
    %v291 = vshrl.u32 %v290, 7
    %v292 = vsub.s32 5, %v291
    %v293 = vrot.slane %v235, %v292
    %v294 = vlaneseq
    %v295 = vshrl.u32 %v294, 7
    %v296 = vsub.s32 6, %v295
    %v297 = vrot.slane %v235, %v296
    %v298 = vlaneseq
    %v299 = vshrl.u32 %v298, 7
    %v300 = vsub.s32 7, %v299
    %v301 = vrot.slane %v235, %v300
    %v326 = vunpack.c.l.b16 %v98
    %v327 = vunpack.c.l.b16 %v99
    %v328 = vunpack.c.l.b16 %v100
    %v329 = vunpack.c.l.b16 %v101
    %v330 = vunpack.c.l.b16 %v102
    %v331 = vunpack.c.l.b16 %v103
    %v332 = vunpack.c.l.b16 %v104
    %v333 = vunpack.c.l.b16 %v105
    %v334 = vpack.c.b16 %v327, %v326
    %v335 = vpack.c.b16 %v329, %v328
    %v336 = vpack.c.b16 %v331, %v330
    %v337 = vpack.c.b16 %v333, %v332
    %v470 = vunpack.c.l.b16 %v106
    %v471 = vunpack.c.h.b16 %v106
    %v472 = vunpack.c.l.b16 %v107
    %v473 = vunpack.c.h.b16 %v107
    %v474 = vunpack.c.l.b16 %v108
    %v475 = vunpack.c.h.b16 %v108
    %v476 = vunpack.c.l.b16 %v109
    %v477 = vunpack.c.h.b16 %v109
    %v478 = vunpack.c.l.b16 %v110
    %v479 = vunpack.c.h.b16 %v110
    %v480 = vunpack.c.l.b16 %v111
    %v481 = vunpack.c.h.b16 %v111
    %v482 = vunpack.c.l.b16 %v112
    %v483 = vunpack.c.h.b16 %v112
    %v484 = vunpack.c.l.b16 %v113
    %v485 = vunpack.c.h.b16 %v113
    %v486 = vunpack.c.l.b16 %v114
    %v487 = vunpack.c.h.b16 %v114
    %v488 = vunpack.c.l.b16 %v115
    %v489 = vunpack.c.h.b16 %v115
    %v490 = vunpack.c.l.b16 %v116
    %v491 = vunpack.c.h.b16 %v116
    %v492 = vunpack.c.l.b16 %v117
    %v493 = vunpack.c.h.b16 %v117
    %v494 = vunpack.c.l.b16 %v118
    %v495 = vunpack.c.h.b16 %v118
    %v496 = vunpack.c.l.b16 %v119
    %v497 = vunpack.c.h.b16 %v119
    %v498 = vunpack.c.l.b16 %v120
    %v499 = vunpack.c.h.b16 %v120
    %v500 = vunpack.c.l.b16 %v121
    %v501 = vunpack.c.h.b16 %v121
    %v502 = vunpack.c.l.b16 %v122
    %v503 = vunpack.c.h.b16 %v122
    %v504 = vunpack.c.l.b16 %v123
    %v505 = vunpack.c.h.b16 %v123
    %v506 = vunpack.c.l.b16 %v124
    %v507 = vunpack.c.h.b16 %v124
    %v508 = vunpack.c.l.b16 %v125
    %v509 = vunpack.c.h.b16 %v125
    %v510 = vunpack.c.l.b16 %v126
    %v511 = vunpack.c.h.b16 %v126
    %v512 = vunpack.c.l.b16 %v127
    %v513 = vunpack.c.h.b16 %v127
    %v514 = vunpack.c.l.b16 %v128
    %v515 = vunpack.c.h.b16 %v128
    %v516 = vunpack.c.l.b16 %v129
    %v517 = vunpack.c.h.b16 %v129
    %v518 = vunpack.c.l.b16 %v130
    %v519 = vunpack.c.h.b16 %v130
    %v520 = vunpack.c.l.b16 %v131
    %v521 = vunpack.c.h.b16 %v131
    %v522 = vunpack.c.l.b16 %v132
    %v523 = vunpack.c.h.b16 %v132
    %v524 = vunpack.c.l.b16 %v133
    %v525 = vunpack.c.h.b16 %v133
    %v526 = vunpack.c.l.b16 %v134
    %v527 = vunpack.c.h.b16 %v134
    %v528 = vunpack.c.l.b16 %v135
    %v529 = vunpack.c.h.b16 %v135
    %v530 = vunpack.c.l.b16 %v136
    %v531 = vunpack.c.h.b16 %v136
    %v532 = vunpack.c.l.b16 %v137
    %v533 = vunpack.c.h.b16 %v137
    %v534 = vunpack.c.l.b16 %v138
    %v535 = vunpack.c.h.b16 %v138
    %v536 = vunpack.c.l.b16 %v139
    %v537 = vunpack.c.h.b16 %v139
    %v538 = vunpack.c.l.b16 %v140
    %v539 = vunpack.c.h.b16 %v140
    %v540 = vunpack.c.l.b16 %v141
    %v541 = vunpack.c.h.b16 %v141
    %v542 = vunpack.c.l.b16 %v142
    %v543 = vunpack.c.h.b16 %v142
    %v544 = vunpack.c.l.b16 %v143
    %v545 = vunpack.c.h.b16 %v143
    %v546 = vunpack.c.l.b16 %v144
    %v547 = vunpack.c.h.b16 %v144
    %v548 = vunpack.c.l.b16 %v145
    %v549 = vunpack.c.h.b16 %v145
    %v550 = vunpack.c.l.b16 %v146
    %v551 = vunpack.c.h.b16 %v146
    %v552 = vunpack.c.l.b16 %v147
    %v553 = vunpack.c.h.b16 %v147
    %v554 = vunpack.c.l.b16 %v148
    %v555 = vunpack.c.h.b16 %v148
    %v556 = vunpack.c.l.b16 %v149
    %v557 = vunpack.c.h.b16 %v149
    %v558 = vunpack.c.l.b16 %v150
    %v559 = vunpack.c.h.b16 %v150
    %v560 = vunpack.c.l.b16 %v151
    %v561 = vunpack.c.h.b16 %v151
    %v562 = vunpack.c.l.b16 %v152
    %v563 = vunpack.c.h.b16 %v152
    %v564 = vunpack.c.l.b16 %v153
    %v565 = vunpack.c.h.b16 %v153
    %v566 = vunpack.c.l.b16 %v154
    %v567 = vunpack.c.h.b16 %v154
    %v568 = vunpack.c.l.b16 %v155
    %v569 = vunpack.c.h.b16 %v155
    %v570 = vunpack.c.l.b16 %v156
    %v571 = vunpack.c.h.b16 %v156
    %v572 = vunpack.c.l.b16 %v157
    %v573 = vunpack.c.h.b16 %v157
    %v574 = vunpack.c.l.b16 %v158
    %v575 = vunpack.c.h.b16 %v158
    %v576 = vunpack.c.l.b16 %v159
    %v577 = vunpack.c.h.b16 %v159
    %v578 = vunpack.c.l.b16 %v160
    %v579 = vunpack.c.h.b16 %v160
    %v580 = vunpack.c.l.b16 %v161
    %v581 = vunpack.c.h.b16 %v161
    %v582 = vunpack.c.l.b16 %v162
    %v583 = vunpack.c.h.b16 %v162
    %v584 = vunpack.c.l.b16 %v163
    %v585 = vunpack.c.h.b16 %v163
    %v586 = vunpack.c.l.b16 %v164
    %v587 = vunpack.c.h.b16 %v164
    %v588 = vunpack.c.l.b16 %v165
    %v589 = vunpack.c.h.b16 %v165
    %v590 = vunpack.c.l.b16 %v166
    %v591 = vunpack.c.h.b16 %v166
    %v592 = vunpack.c.l.b16 %v167
    %v593 = vunpack.c.h.b16 %v167
    %v594 = vunpack.c.l.b16 %v168
    %v595 = vunpack.c.h.b16 %v168
    %v596 = vunpack.c.l.b16 %v169
    %v597 = vunpack.c.h.b16 %v169
    %v598 = vunpack.c.l.b16 %v170
    %v599 = vunpack.c.h.b16 %v170
    %v600 = vunpack.c.l.b16 %v171
    %v601 = vunpack.c.h.b16 %v171
    %v602 = vunpack.c.l.b16 %v172
    %v603 = vunpack.c.h.b16 %v172
    %v604 = vunpack.c.l.b16 %v173
    %v605 = vunpack.c.h.b16 %v173
    %v606 = vunpack.c.l.b16 %v174
    %v607 = vunpack.c.h.b16 %v174
    %v608 = vunpack.c.l.b16 %v175
    %v609 = vunpack.c.h.b16 %v175
    %v610 = vunpack.c.l.b16 %v176
    %v611 = vunpack.c.h.b16 %v176
    %v612 = vunpack.c.l.b16 %v177
    %v613 = vunpack.c.h.b16 %v177
    %v614 = vunpack.c.l.b16 %v178
    %v615 = vunpack.c.h.b16 %v178
    %v616 = vunpack.c.l.b16 %v179
    %v617 = vunpack.c.h.b16 %v179
    %v618 = vunpack.c.l.b16 %v180
    %v619 = vunpack.c.h.b16 %v180
    %v620 = vunpack.c.l.b16 %v181
    %v621 = vunpack.c.h.b16 %v181
    %v622 = vunpack.c.l.b16 %v182
    %v623 = vunpack.c.h.b16 %v182
    %v624 = vunpack.c.l.b16 %v183
    %v625 = vunpack.c.h.b16 %v183
    %v626 = vunpack.c.l.b16 %v184
    %v627 = vunpack.c.h.b16 %v184
    %v628 = vunpack.c.l.b16 %v185
    %v629 = vunpack.c.h.b16 %v185
    %v630 = vunpack.c.l.b16 %v186
    %v631 = vunpack.c.h.b16 %v186
    %v632 = vunpack.c.l.b16 %v187
    %v633 = vunpack.c.h.b16 %v187
    %v634 = vunpack.c.l.b16 %v188
    %v635 = vunpack.c.h.b16 %v188
    %v636 = vunpack.c.l.b16 %v189
    %v637 = vunpack.c.h.b16 %v189
    %v638 = vunpack.c.l.b16 %v190
    %v639 = vunpack.c.h.b16 %v190
    %v640 = vunpack.c.l.b16 %v191
    %v641 = vunpack.c.h.b16 %v191
    %v642 = vunpack.c.l.b16 %v192
    %v643 = vunpack.c.h.b16 %v192
    %v644 = vunpack.c.l.b16 %v193
    %v645 = vunpack.c.h.b16 %v193
    %v646 = vunpack.c.l.b16 %v194
    %v647 = vunpack.c.h.b16 %v194
    %v648 = vunpack.c.l.b16 %v195
    %v649 = vunpack.c.h.b16 %v195
    %v650 = vunpack.c.l.b16 %v196
    %v651 = vunpack.c.h.b16 %v196
    %v652 = vunpack.c.l.b16 %v197
    %v653 = vunpack.c.h.b16 %v197
    %v654 = vunpack.c.l.b16 %v198
    %v655 = vunpack.c.h.b16 %v198
    %v656 = vunpack.c.l.b16 %v199
    %v657 = vunpack.c.h.b16 %v199
    %v658 = vunpack.c.l.b16 %v200
    %v659 = vunpack.c.h.b16 %v200
    %v660 = vunpack.c.l.b16 %v201
    %v661 = vunpack.c.h.b16 %v201
    %v662 = vunpack.c.l.b16 %v202
    %v663 = vunpack.c.h.b16 %v202
    %v664 = vunpack.c.l.b16 %v203
    %v665 = vunpack.c.h.b16 %v203
    %v666 = vunpack.c.l.b16 %v204
    %v667 = vunpack.c.h.b16 %v204
    %v668 = vunpack.c.l.b16 %v205
    %v669 = vunpack.c.h.b16 %v205
    %v670 = vunpack.c.l.b16 %v206
    %v671 = vunpack.c.h.b16 %v206
    %v672 = vunpack.c.l.b16 %v207
    %v673 = vunpack.c.h.b16 %v207
    %v674 = vunpack.c.l.b16 %v208
    %v675 = vunpack.c.h.b16 %v208
    %v676 = vunpack.c.l.b16 %v209
    %v677 = vunpack.c.h.b16 %v209
    %v678 = vunpack.c.l.b16 %v210
    %v679 = vunpack.c.h.b16 %v210
    %v680 = vunpack.c.l.b16 %v211
    %v681 = vunpack.c.h.b16 %v211
    %v682 = vunpack.c.l.b16 %v212
    %v683 = vunpack.c.h.b16 %v212
    %v684 = vunpack.c.l.b16 %v213
    %v685 = vunpack.c.h.b16 %v213
    %v686 = vunpack.c.l.b16 %v214
    %v687 = vunpack.c.h.b16 %v214
    %v688 = vunpack.c.l.b16 %v215
    %v689 = vunpack.c.h.b16 %v215
    %v690 = vunpack.c.l.b16 %v216
    %v691 = vunpack.c.h.b16 %v216
    %v692 = vunpack.c.l.b16 %v217
    %v693 = vunpack.c.h.b16 %v217
    %v694 = vunpack.c.l.b16 %v218
    %v695 = vunpack.c.h.b16 %v218
    %v696 = vunpack.c.l.b16 %v219
    %v697 = vunpack.c.h.b16 %v219
    %v698 = vunpack.c.l.b16 %v220
    %v699 = vunpack.c.h.b16 %v220
    %v700 = vunpack.c.l.b16 %v221
    %v701 = vunpack.c.h.b16 %v221
    %v702 = vunpack.c.l.b16 %v222
    %v703 = vunpack.c.h.b16 %v222
    %v704 = vunpack.c.l.b16 %v223
    %v705 = vunpack.c.h.b16 %v223
    %v706 = vunpack.c.l.b16 %v224
    %v707 = vunpack.c.h.b16 %v224
    %v708 = vunpack.c.l.b16 %v225
    %v709 = vunpack.c.h.b16 %v225
    %v710 = vunpack.c.l.b16 %v226
    %v711 = vunpack.c.h.b16 %v226
    %v712 = vunpack.c.l.b16 %v227
    %v713 = vunpack.c.h.b16 %v227
    %v714 = vunpack.c.l.b16 %v228
    %v715 = vunpack.c.h.b16 %v228
    %v716 = vunpack.c.l.b16 %v229
    %v717 = vunpack.c.h.b16 %v229
    %v718 = vunpack.c.l.b16 %v230
    %v719 = vunpack.c.h.b16 %v230
    %v720 = vunpack.c.l.b16 %v231
    %v721 = vunpack.c.h.b16 %v231
    %v722 = vunpack.c.l.b16 %v232
    %v723 = vunpack.c.h.b16 %v232
    %v724 = vunpack.c.l.b16 %v233
    %v725 = vunpack.c.h.b16 %v233
    %v726 = vpack.c.b16 %v486, %v470
    %v727 = vpack.c.b16 %v487, %v471
    %v728 = vpack.c.b16 %v488, %v472
    %v729 = vpack.c.b16 %v489, %v473
    %v730 = vpack.c.b16 %v490, %v474
    %v731 = vpack.c.b16 %v491, %v475
    %v732 = vpack.c.b16 %v492, %v476
    %v733 = vpack.c.b16 %v493, %v477
    %v734 = vpack.c.b16 %v494, %v478
    %v735 = vpack.c.b16 %v495, %v479
    %v736 = vpack.c.b16 %v496, %v480
    %v737 = vpack.c.b16 %v497, %v481
    %v738 = vpack.c.b16 %v498, %v482
    %v739 = vpack.c.b16 %v499, %v483
    %v740 = vpack.c.b16 %v500, %v484
    %v741 = vpack.c.b16 %v501, %v485
    %v742 = vpack.c.b16 %v518, %v502
    %v743 = vpack.c.b16 %v519, %v503
    %v744 = vpack.c.b16 %v520, %v504
    %v745 = vpack.c.b16 %v521, %v505
    %v746 = vpack.c.b16 %v522, %v506
    %v747 = vpack.c.b16 %v523, %v507
    %v748 = vpack.c.b16 %v524, %v508
    %v749 = vpack.c.b16 %v525, %v509
    %v750 = vpack.c.b16 %v526, %v510
    %v751 = vpack.c.b16 %v527, %v511
    %v752 = vpack.c.b16 %v528, %v512
    %v753 = vpack.c.b16 %v529, %v513
    %v754 = vpack.c.b16 %v530, %v514
    %v755 = vpack.c.b16 %v531, %v515
    %v756 = vpack.c.b16 %v532, %v516
    %v757 = vpack.c.b16 %v533, %v517
    %v758 = vpack.c.b16 %v550, %v534
    %v759 = vpack.c.b16 %v551, %v535
    %v760 = vpack.c.b16 %v552, %v536
    %v761 = vpack.c.b16 %v553, %v537
    %v762 = vpack.c.b16 %v554, %v538
    %v763 = vpack.c.b16 %v555, %v539
    %v764 = vpack.c.b16 %v556, %v540
    %v765 = vpack.c.b16 %v557, %v541
    %v766 = vpack.c.b16 %v558, %v542
    %v767 = vpack.c.b16 %v559, %v543
    %v768 = vpack.c.b16 %v560, %v544
    %v769 = vpack.c.b16 %v561, %v545
    %v770 = vpack.c.b16 %v562, %v546
    %v771 = vpack.c.b16 %v563, %v547
    %v772 = vpack.c.b16 %v564, %v548
    %v773 = vpack.c.b16 %v565, %v549
    %v774 = vpack.c.b16 %v582, %v566
    %v775 = vpack.c.b16 %v583, %v567
    %v776 = vpack.c.b16 %v584, %v568
    %v777 = vpack.c.b16 %v585, %v569
    %v778 = vpack.c.b16 %v586, %v570
    %v779 = vpack.c.b16 %v587, %v571
    %v780 = vpack.c.b16 %v588, %v572
    %v781 = vpack.c.b16 %v589, %v573
    %v782 = vpack.c.b16 %v590, %v574
    %v783 = vpack.c.b16 %v591, %v575
    %v784 = vpack.c.b16 %v592, %v576
    %v785 = vpack.c.b16 %v593, %v577
    %v786 = vpack.c.b16 %v594, %v578
    %v787 = vpack.c.b16 %v595, %v579
    %v788 = vpack.c.b16 %v596, %v580
    %v789 = vpack.c.b16 %v597, %v581
    %v790 = vpack.c.b16 %v614, %v598
    %v791 = vpack.c.b16 %v615, %v599
    %v792 = vpack.c.b16 %v616, %v600
    %v793 = vpack.c.b16 %v617, %v601
    %v794 = vpack.c.b16 %v618, %v602
    %v795 = vpack.c.b16 %v619, %v603
    %v796 = vpack.c.b16 %v620, %v604
    %v797 = vpack.c.b16 %v621, %v605
    %v798 = vpack.c.b16 %v622, %v606
    %v799 = vpack.c.b16 %v623, %v607
    %v800 = vpack.c.b16 %v624, %v608
    %v801 = vpack.c.b16 %v625, %v609
    %v802 = vpack.c.b16 %v626, %v610
    %v803 = vpack.c.b16 %v627, %v611
    %v804 = vpack.c.b16 %v628, %v612
    %v805 = vpack.c.b16 %v629, %v613
    %v806 = vpack.c.b16 %v646, %v630
    %v807 = vpack.c.b16 %v647, %v631
    %v808 = vpack.c.b16 %v648, %v632
    %v809 = vpack.c.b16 %v649, %v633
    %v810 = vpack.c.b16 %v650, %v634
    %v811 = vpack.c.b16 %v651, %v635
    %v812 = vpack.c.b16 %v652, %v636
    %v813 = vpack.c.b16 %v653, %v637
    %v814 = vpack.c.b16 %v654, %v638
    %v815 = vpack.c.b16 %v655, %v639
    %v816 = vpack.c.b16 %v656, %v640
    %v817 = vpack.c.b16 %v657, %v641
    %v818 = vpack.c.b16 %v658, %v642
    %v819 = vpack.c.b16 %v659, %v643
    %v820 = vpack.c.b16 %v660, %v644
    %v821 = vpack.c.b16 %v661, %v645
    %v822 = vpack.c.b16 %v678, %v662
    %v823 = vpack.c.b16 %v679, %v663
    %v824 = vpack.c.b16 %v680, %v664
    %v825 = vpack.c.b16 %v681, %v665
    %v826 = vpack.c.b16 %v682, %v666
    %v827 = vpack.c.b16 %v683, %v667
    %v828 = vpack.c.b16 %v684, %v668
    %v829 = vpack.c.b16 %v685, %v669
    %v830 = vpack.c.b16 %v686, %v670
    %v831 = vpack.c.b16 %v687, %v671
    %v832 = vpack.c.b16 %v688, %v672
    %v833 = vpack.c.b16 %v689, %v673
    %v834 = vpack.c.b16 %v690, %v674
    %v835 = vpack.c.b16 %v691, %v675
    %v836 = vpack.c.b16 %v692, %v676
    %v837 = vpack.c.b16 %v693, %v677
    %v838 = vpack.c.b16 %v710, %v694
    %v839 = vpack.c.b16 %v711, %v695
    %v840 = vpack.c.b16 %v712, %v696
    %v841 = vpack.c.b16 %v713, %v697
    %v842 = vpack.c.b16 %v714, %v698
    %v843 = vpack.c.b16 %v715, %v699
    %v844 = vpack.c.b16 %v716, %v700
    %v845 = vpack.c.b16 %v717, %v701
    %v846 = vpack.c.b16 %v718, %v702
    %v847 = vpack.c.b16 %v719, %v703
    %v848 = vpack.c.b16 %v720, %v704
    %v849 = vpack.c.b16 %v721, %v705
    %v850 = vpack.c.b16 %v722, %v706
    %v851 = vpack.c.b16 %v723, %v707
    %v852 = vpack.c.b16 %v724, %v708
    %v853 = vpack.c.b16 %v725, %v709
    %982 = vmatprep.subr.bf16.mxu0 %v727
    %983 = vmatpush1.bf16.msra.mxu0 %v726
    %984 = vmatprep.subr.bf16.mxu0 %v743
    %985 = vmatpush1.bf16.msra.mxu0 %v742
    %986 = vmatprep.subr.bf16.mxu0 %v759
    %987 = vmatpush1.bf16.msra.mxu0 %v758
    %988 = vmatprep.subr.bf16.mxu0 %v775
    %989 = vmatpush1.bf16.msra.mxu0 %v774
    %990 = vmatprep.subr.bf16.mxu0 %v791
    %991 = vmatpush1.bf16.msra.mxu0 %v790
    %992 = vmatprep.subr.bf16.mxu0 %v807
    %993 = vmatpush1.bf16.msra.mxu0 %v806
    %994 = vmatprep.subr.bf16.mxu0 %v823
    %995 = vmatpush1.bf16.msra.mxu0 %v822
    %996 = vmatprep.subr.bf16.mxu0 %v839
    %997 = vmatpush1.bf16.msra.mxu0 %v838
    %998 = vmatprep.subr.bf16.mxu0 0
    %999 = vmatpush1.bf16.msra.mxu0 0
    %1000 = vmatprep.subr.bf16.mxu0 0
    %1001 = vmatpush1.bf16.msra.mxu0 0
    %1002 = vmatprep.subr.bf16.mxu0 0
    %1003 = vmatpush1.bf16.msra.mxu0 0
    %1004 = vmatprep.subr.bf16.mxu0 0
    %1005 = vmatpush1.bf16.msra.mxu0 0
    %1006 = vmatprep.subr.bf16.mxu0 0
    %1007 = vmatpush1.bf16.msra.mxu0 0
    %1008 = vmatprep.subr.bf16.mxu0 0
    %1009 = vmatpush1.bf16.msra.mxu0 0
    %1010 = vmatprep.subr.bf16.mxu0 0
    %1011 = vmatpush1.bf16.msra.mxu0 0
    %1012 = vmatprep.subr.bf16.mxu0 0
    %1013 = vmatpush1.bf16.msra.mxu0 0
    %1014 = vmatprep.mubr.bf16.mxu0 0
    %1015 = vmatmul.mubr.bf16.gmra.mrb[0].mxu0 %v334
    %v1016 = vpop.f32.mrb[0].mxu0
    %v1017 = vadd.f32 %v241, %v1016
    %v1018 = vpop.f32.mrb[0].mxu0
    %v1019 = vadd.f32 %v245, %v1018
    %v1020 = vpop.f32.mrb[0].mxu0
    %v1021 = vadd.f32 %v241, %v1020
    %v1022 = vpop.f32.mrb[0].mxu0
    %v1023 = vadd.f32 %v245, %v1022
    %1024 = vmatprep.mubr.bf16.mxu0 0
    %1025 = vmatmul.mubr.bf16.gmra.mrb[0].mxu0 %v335
    %v1026 = vpop.f32.mrb[0].mxu0
    %v1027 = vadd.f32 %v241, %v1026
    %v1028 = vpop.f32.mrb[0].mxu0
    %v1029 = vadd.f32 %v245, %v1028
    %v1030 = vpop.f32.mrb[0].mxu0
    %v1031 = vadd.f32 %v241, %v1030
    %v1032 = vpop.f32.mrb[0].mxu0
    %v1033 = vadd.f32 %v245, %v1032
    %1034 = vmatprep.mubr.bf16.mxu0 0
    %1035 = vmatmul.mubr.bf16.gmra.mrb[0].mxu0 %v336
    %v1036 = vpop.f32.mrb[0].mxu0
    %v1037 = vadd.f32 %v241, %v1036
    %v1038 = vpop.f32.mrb[0].mxu0
    %v1039 = vadd.f32 %v245, %v1038
    %v1040 = vpop.f32.mrb[0].mxu0
    %v1041 = vadd.f32 %v241, %v1040
    %v1042 = vpop.f32.mrb[0].mxu0
    %v1043 = vadd.f32 %v245, %v1042
    %1044 = vmatprep.mubr.bf16.mxu0 0
    %1045 = vmatmul.mubr.bf16.gmra.mrb[0].mxu0 %v337
    %v1046 = vpop.f32.mrb[0].mxu0
    %v1047 = vadd.f32 %v241, %v1046
    %v1048 = vpop.f32.mrb[0].mxu0
    %v1049 = vadd.f32 %v245, %v1048
    %v1050 = vpop.f32.mrb[0].mxu0
    %v1051 = vadd.f32 %v241, %v1050
    %v1052 = vpop.f32.mrb[0].mxu0
    %v1053 = vadd.f32 %v245, %v1052
    %1054 = vdwg.mxu0
    %1055 = vmatprep.subr.bf16.mxu0 %v729
    %1056 = vmatpush1.bf16.msra.mxu0 %v728
    %1057 = vmatprep.subr.bf16.mxu0 %v745
    %1058 = vmatpush1.bf16.msra.mxu0 %v744
    %1059 = vmatprep.subr.bf16.mxu0 %v761
    %1060 = vmatpush1.bf16.msra.mxu0 %v760
    %1061 = vmatprep.subr.bf16.mxu0 %v777
    %1062 = vmatpush1.bf16.msra.mxu0 %v776
    %1063 = vmatprep.subr.bf16.mxu0 %v793
    %1064 = vmatpush1.bf16.msra.mxu0 %v792
    %1065 = vmatprep.subr.bf16.mxu0 %v809
    %1066 = vmatpush1.bf16.msra.mxu0 %v808
    %1067 = vmatprep.subr.bf16.mxu0 %v825
    %1068 = vmatpush1.bf16.msra.mxu0 %v824
    %1069 = vmatprep.subr.bf16.mxu0 %v841
    %1070 = vmatpush1.bf16.msra.mxu0 %v840
    %1071 = vmatprep.subr.bf16.mxu0 0
    %1072 = vmatpush1.bf16.msra.mxu0 0
    %1073 = vmatprep.subr.bf16.mxu0 0
    %1074 = vmatpush1.bf16.msra.mxu0 0
    %1075 = vmatprep.subr.bf16.mxu0 0
    %1076 = vmatpush1.bf16.msra.mxu0 0
    %1077 = vmatprep.subr.bf16.mxu0 0
    %1078 = vmatpush1.bf16.msra.mxu0 0
    %1079 = vmatprep.subr.bf16.mxu0 0
    %1080 = vmatpush1.bf16.msra.mxu0 0
    %1081 = vmatprep.subr.bf16.mxu0 0
    %1082 = vmatpush1.bf16.msra.mxu0 0
    %1083 = vmatprep.subr.bf16.mxu0 0
    %1084 = vmatpush1.bf16.msra.mxu0 0
    %1085 = vmatprep.subr.bf16.mxu0 0
    %1086 = vmatpush1.bf16.msra.mxu0 0
    %1087 = vmatprep.mubr.bf16.mxu0 0
    %1088 = vmatmul.mubr.bf16.gmra.mrb[0].mxu0 %v334
    %v1089 = vpop.f32.mrb[0].mxu0
    %v1090 = vadd.f32 %v249, %v1089
    %v1091 = vpop.f32.mrb[0].mxu0
    %v1092 = vadd.f32 %v253, %v1091
    %v1093 = vpop.f32.mrb[0].mxu0
    %v1094 = vadd.f32 %v249, %v1093
    %v1095 = vpop.f32.mrb[0].mxu0
    %v1096 = vadd.f32 %v253, %v1095
    %1097 = vmatprep.mubr.bf16.mxu0 0
    %1098 = vmatmul.mubr.bf16.gmra.mrb[0].mxu0 %v335
    %v1099 = vpop.f32.mrb[0].mxu0
    %v1100 = vadd.f32 %v249, %v1099
    %v1101 = vpop.f32.mrb[0].mxu0
    %v1102 = vadd.f32 %v253, %v1101
    %v1103 = vpop.f32.mrb[0].mxu0
    %v1104 = vadd.f32 %v249, %v1103
    %v1105 = vpop.f32.mrb[0].mxu0
    %v1106 = vadd.f32 %v253, %v1105
    %1107 = vmatprep.mubr.bf16.mxu0 0
    %1108 = vmatmul.mubr.bf16.gmra.mrb[0].mxu0 %v336
    %v1109 = vpop.f32.mrb[0].mxu0
    %v1110 = vadd.f32 %v249, %v1109
    %v1111 = vpop.f32.mrb[0].mxu0
    %v1112 = vadd.f32 %v253, %v1111
    %v1113 = vpop.f32.mrb[0].mxu0
    %v1114 = vadd.f32 %v249, %v1113
    %v1115 = vpop.f32.mrb[0].mxu0
    %v1116 = vadd.f32 %v253, %v1115
    %1117 = vmatprep.mubr.bf16.mxu0 0
    %1118 = vmatmul.mubr.bf16.gmra.mrb[0].mxu0 %v337
    %v1119 = vpop.f32.mrb[0].mxu0
    %v1120 = vadd.f32 %v249, %v1119
    %v1121 = vpop.f32.mrb[0].mxu0
    %v1122 = vadd.f32 %v253, %v1121
    %v1123 = vpop.f32.mrb[0].mxu0
    %v1124 = vadd.f32 %v249, %v1123
    %v1125 = vpop.f32.mrb[0].mxu0
    %v1126 = vadd.f32 %v253, %v1125
    %1127 = vdwg.mxu0
    %1128 = vmatprep.subr.bf16.mxu0 %v731
    %1129 = vmatpush1.bf16.msra.mxu0 %v730
    %1130 = vmatprep.subr.bf16.mxu0 %v747
    %1131 = vmatpush1.bf16.msra.mxu0 %v746
    %1132 = vmatprep.subr.bf16.mxu0 %v763
    %1133 = vmatpush1.bf16.msra.mxu0 %v762
    %1134 = vmatprep.subr.bf16.mxu0 %v779
    %1135 = vmatpush1.bf16.msra.mxu0 %v778
    %1136 = vmatprep.subr.bf16.mxu0 %v795
    %1137 = vmatpush1.bf16.msra.mxu0 %v794
    %1138 = vmatprep.subr.bf16.mxu0 %v811
    %1139 = vmatpush1.bf16.msra.mxu0 %v810
    %1140 = vmatprep.subr.bf16.mxu0 %v827
    %1141 = vmatpush1.bf16.msra.mxu0 %v826
    %1142 = vmatprep.subr.bf16.mxu0 %v843
    %1143 = vmatpush1.bf16.msra.mxu0 %v842
    %1144 = vmatprep.subr.bf16.mxu0 0
    %1145 = vmatpush1.bf16.msra.mxu0 0
    %1146 = vmatprep.subr.bf16.mxu0 0
    %1147 = vmatpush1.bf16.msra.mxu0 0
    %1148 = vmatprep.subr.bf16.mxu0 0
    %1149 = vmatpush1.bf16.msra.mxu0 0
    %1150 = vmatprep.subr.bf16.mxu0 0
    %1151 = vmatpush1.bf16.msra.mxu0 0
    %1152 = vmatprep.subr.bf16.mxu0 0
    %1153 = vmatpush1.bf16.msra.mxu0 0
    %1154 = vmatprep.subr.bf16.mxu0 0
    %1155 = vmatpush1.bf16.msra.mxu0 0
    %1156 = vmatprep.subr.bf16.mxu0 0
    %1157 = vmatpush1.bf16.msra.mxu0 0
    %1158 = vmatprep.subr.bf16.mxu0 0
    %1159 = vmatpush1.bf16.msra.mxu0 0
    %1160 = vmatprep.mubr.bf16.mxu0 0
    %1161 = vmatmul.mubr.bf16.gmra.mrb[0].mxu0 %v334
    %v1162 = vpop.f32.mrb[0].mxu0
    %v1163 = vadd.f32 %v257, %v1162
    %v1164 = vpop.f32.mrb[0].mxu0
    %v1165 = vadd.f32 %v261, %v1164
    %v1166 = vpop.f32.mrb[0].mxu0
    %v1167 = vadd.f32 %v257, %v1166
    %v1168 = vpop.f32.mrb[0].mxu0
    %v1169 = vadd.f32 %v261, %v1168
    %1170 = vmatprep.mubr.bf16.mxu0 0
    %1171 = vmatmul.mubr.bf16.gmra.mrb[0].mxu0 %v335
    %v1172 = vpop.f32.mrb[0].mxu0
    %v1173 = vadd.f32 %v257, %v1172
    %v1174 = vpop.f32.mrb[0].mxu0
    %v1175 = vadd.f32 %v261, %v1174
    %v1176 = vpop.f32.mrb[0].mxu0
    %v1177 = vadd.f32 %v257, %v1176
    %v1178 = vpop.f32.mrb[0].mxu0
    %v1179 = vadd.f32 %v261, %v1178
    %1180 = vmatprep.mubr.bf16.mxu0 0
    %1181 = vmatmul.mubr.bf16.gmra.mrb[0].mxu0 %v336
    %v1182 = vpop.f32.mrb[0].mxu0
    %v1183 = vadd.f32 %v257, %v1182
    %v1184 = vpop.f32.mrb[0].mxu0
    %v1185 = vadd.f32 %v261, %v1184
    %v1186 = vpop.f32.mrb[0].mxu0
    %v1187 = vadd.f32 %v257, %v1186
    %v1188 = vpop.f32.mrb[0].mxu0
    %v1189 = vadd.f32 %v261, %v1188
    %1190 = vmatprep.mubr.bf16.mxu0 0
    %1191 = vmatmul.mubr.bf16.gmra.mrb[0].mxu0 %v337
    %v1192 = vpop.f32.mrb[0].mxu0
    %v1193 = vadd.f32 %v257, %v1192
    %v1194 = vpop.f32.mrb[0].mxu0
    %v1195 = vadd.f32 %v261, %v1194
    %v1196 = vpop.f32.mrb[0].mxu0
    %v1197 = vadd.f32 %v257, %v1196
    %v1198 = vpop.f32.mrb[0].mxu0
    %v1199 = vadd.f32 %v261, %v1198
    %1200 = vdwg.mxu0
    %1201 = vmatprep.subr.bf16.mxu0 %v733
    %1202 = vmatpush1.bf16.msra.mxu0 %v732
    %1203 = vmatprep.subr.bf16.mxu0 %v749
    %1204 = vmatpush1.bf16.msra.mxu0 %v748
    %1205 = vmatprep.subr.bf16.mxu0 %v765
    %1206 = vmatpush1.bf16.msra.mxu0 %v764
    %1207 = vmatprep.subr.bf16.mxu0 %v781
    %1208 = vmatpush1.bf16.msra.mxu0 %v780
    %1209 = vmatprep.subr.bf16.mxu0 %v797
    %1210 = vmatpush1.bf16.msra.mxu0 %v796
    %1211 = vmatprep.subr.bf16.mxu0 %v813
    %1212 = vmatpush1.bf16.msra.mxu0 %v812
    %1213 = vmatprep.subr.bf16.mxu0 %v829
    %1214 = vmatpush1.bf16.msra.mxu0 %v828
    %1215 = vmatprep.subr.bf16.mxu0 %v845
    %1216 = vmatpush1.bf16.msra.mxu0 %v844
    %1217 = vmatprep.subr.bf16.mxu0 0
    %1218 = vmatpush1.bf16.msra.mxu0 0
    %1219 = vmatprep.subr.bf16.mxu0 0
    %1220 = vmatpush1.bf16.msra.mxu0 0
    %1221 = vmatprep.subr.bf16.mxu0 0
    %1222 = vmatpush1.bf16.msra.mxu0 0
    %1223 = vmatprep.subr.bf16.mxu0 0
    %1224 = vmatpush1.bf16.msra.mxu0 0
    %1225 = vmatprep.subr.bf16.mxu0 0
    %1226 = vmatpush1.bf16.msra.mxu0 0
    %1227 = vmatprep.subr.bf16.mxu0 0
    %1228 = vmatpush1.bf16.msra.mxu0 0
    %1229 = vmatprep.subr.bf16.mxu0 0
    %1230 = vmatpush1.bf16.msra.mxu0 0
    %1231 = vmatprep.subr.bf16.mxu0 0
    %1232 = vmatpush1.bf16.msra.mxu0 0
    %1233 = vmatprep.mubr.bf16.mxu0 0
    %1234 = vmatmul.mubr.bf16.gmra.mrb[0].mxu0 %v334
    %v1235 = vpop.f32.mrb[0].mxu0
    %v1236 = vadd.f32 %v265, %v1235
    %v1237 = vpop.f32.mrb[0].mxu0
    %v1238 = vadd.f32 %v269, %v1237
    %v1239 = vpop.f32.mrb[0].mxu0
    %v1240 = vadd.f32 %v265, %v1239
    %v1241 = vpop.f32.mrb[0].mxu0
    %v1242 = vadd.f32 %v269, %v1241
    %1243 = vmatprep.mubr.bf16.mxu0 0
    %1244 = vmatmul.mubr.bf16.gmra.mrb[0].mxu0 %v335
    %v1245 = vpop.f32.mrb[0].mxu0
    %v1246 = vadd.f32 %v265, %v1245
    %v1247 = vpop.f32.mrb[0].mxu0
    %v1248 = vadd.f32 %v269, %v1247
    %v1249 = vpop.f32.mrb[0].mxu0
    %v1250 = vadd.f32 %v265, %v1249
    %v1251 = vpop.f32.mrb[0].mxu0
    %v1252 = vadd.f32 %v269, %v1251
    %1253 = vmatprep.mubr.bf16.mxu0 0
    %1254 = vmatmul.mubr.bf16.gmra.mrb[0].mxu0 %v336
    %v1255 = vpop.f32.mrb[0].mxu0
    %v1256 = vadd.f32 %v265, %v1255
    %v1257 = vpop.f32.mrb[0].mxu0
    %v1258 = vadd.f32 %v269, %v1257
    %v1259 = vpop.f32.mrb[0].mxu0
    %v1260 = vadd.f32 %v265, %v1259
    %v1261 = vpop.f32.mrb[0].mxu0
    %v1262 = vadd.f32 %v269, %v1261
    %1263 = vmatprep.mubr.bf16.mxu0 0
    %1264 = vmatmul.mubr.bf16.gmra.mrb[0].mxu0 %v337
    %v1265 = vpop.f32.mrb[0].mxu0
    %v1266 = vadd.f32 %v265, %v1265
    %v1267 = vpop.f32.mrb[0].mxu0
    %v1268 = vadd.f32 %v269, %v1267
    %v1269 = vpop.f32.mrb[0].mxu0
    %v1270 = vadd.f32 %v265, %v1269
    %v1271 = vpop.f32.mrb[0].mxu0
    %v1272 = vadd.f32 %v269, %v1271
    %1273 = vdwg.mxu0
    %1274 = vmatprep.subr.bf16.mxu0 %v735
    %1275 = vmatpush1.bf16.msra.mxu0 %v734
    %1276 = vmatprep.subr.bf16.mxu0 %v751
    %1277 = vmatpush1.bf16.msra.mxu0 %v750
    %1278 = vmatprep.subr.bf16.mxu0 %v767
    %1279 = vmatpush1.bf16.msra.mxu0 %v766
    %1280 = vmatprep.subr.bf16.mxu0 %v783
    %1281 = vmatpush1.bf16.msra.mxu0 %v782
    %1282 = vmatprep.subr.bf16.mxu0 %v799
    %1283 = vmatpush1.bf16.msra.mxu0 %v798
    %1284 = vmatprep.subr.bf16.mxu0 %v815
    %1285 = vmatpush1.bf16.msra.mxu0 %v814
    %1286 = vmatprep.subr.bf16.mxu0 %v831
    %1287 = vmatpush1.bf16.msra.mxu0 %v830
    %1288 = vmatprep.subr.bf16.mxu0 %v847
    %1289 = vmatpush1.bf16.msra.mxu0 %v846
    %1290 = vmatprep.subr.bf16.mxu0 0
    %1291 = vmatpush1.bf16.msra.mxu0 0
    %1292 = vmatprep.subr.bf16.mxu0 0
    %1293 = vmatpush1.bf16.msra.mxu0 0
    %1294 = vmatprep.subr.bf16.mxu0 0
    %1295 = vmatpush1.bf16.msra.mxu0 0
    %1296 = vmatprep.subr.bf16.mxu0 0
    %1297 = vmatpush1.bf16.msra.mxu0 0
    %1298 = vmatprep.subr.bf16.mxu0 0
    %1299 = vmatpush1.bf16.msra.mxu0 0
    %1300 = vmatprep.subr.bf16.mxu0 0
    %1301 = vmatpush1.bf16.msra.mxu0 0
    %1302 = vmatprep.subr.bf16.mxu0 0
    %1303 = vmatpush1.bf16.msra.mxu0 0
    %1304 = vmatprep.subr.bf16.mxu0 0
    %1305 = vmatpush1.bf16.msra.mxu0 0
    %1306 = vmatprep.mubr.bf16.mxu0 0
    %1307 = vmatmul.mubr.bf16.gmra.mrb[0].mxu0 %v334
    %v1308 = vpop.f32.mrb[0].mxu0
    %v1309 = vpop.f32.mrb[0].mxu0
    %v1310 = vpop.f32.mrb[0].mxu0
    %v1311 = vpop.f32.mrb[0].mxu0
    %1312 = vmatprep.mubr.bf16.mxu0 0
    %1313 = vmatmul.mubr.bf16.gmra.mrb[0].mxu0 %v335
    %v1314 = vpop.f32.mrb[0].mxu0
    %v1315 = vpop.f32.mrb[0].mxu0
    %v1316 = vpop.f32.mrb[0].mxu0
    %v1317 = vpop.f32.mrb[0].mxu0
    %1318 = vmatprep.mubr.bf16.mxu0 0
    %1319 = vmatmul.mubr.bf16.gmra.mrb[0].mxu0 %v336
    %v1320 = vpop.f32.mrb[0].mxu0
    %v1321 = vpop.f32.mrb[0].mxu0
    %v1322 = vpop.f32.mrb[0].mxu0
    %v1323 = vpop.f32.mrb[0].mxu0
    %1324 = vmatprep.mubr.bf16.mxu0 0
    %1325 = vmatmul.mubr.bf16.gmra.mrb[0].mxu0 %v337
    %v1326 = vpop.f32.mrb[0].mxu0
    %v1327 = vpop.f32.mrb[0].mxu0
    %v1328 = vpop.f32.mrb[0].mxu0
    %v1329 = vadd.f32 %v273, %v1328
    %v1330 = vpop.f32.mrb[0].mxu0
    %v1331 = vadd.f32 %v277, %v1330
    %1332 = vdwg.mxu0
    %1333 = vmatprep.subr.bf16.mxu0 %v737
    %1334 = vmatpush1.bf16.msra.mxu0 %v736
    %1335 = vmatprep.subr.bf16.mxu0 %v753
    %1336 = vmatpush1.bf16.msra.mxu0 %v752
    %1337 = vmatprep.subr.bf16.mxu0 %v769
    %1338 = vmatpush1.bf16.msra.mxu0 %v768
    %1339 = vmatprep.subr.bf16.mxu0 %v785
    %1340 = vmatpush1.bf16.msra.mxu0 %v784
    %1341 = vmatprep.subr.bf16.mxu0 %v801
    %1342 = vmatpush1.bf16.msra.mxu0 %v800
    %1343 = vmatprep.subr.bf16.mxu0 %v817
    %1344 = vmatpush1.bf16.msra.mxu0 %v816
    %1345 = vmatprep.subr.bf16.mxu0 %v833
    %1346 = vmatpush1.bf16.msra.mxu0 %v832
    %1347 = vmatprep.subr.bf16.mxu0 %v849
    %1348 = vmatpush1.bf16.msra.mxu0 %v848
    %1349 = vmatprep.subr.bf16.mxu0 0
    %1350 = vmatpush1.bf16.msra.mxu0 0
    %1351 = vmatprep.subr.bf16.mxu0 0
    %1352 = vmatpush1.bf16.msra.mxu0 0
    %1353 = vmatprep.subr.bf16.mxu0 0
    %1354 = vmatpush1.bf16.msra.mxu0 0
    %1355 = vmatprep.subr.bf16.mxu0 0
    %1356 = vmatpush1.bf16.msra.mxu0 0
    %1357 = vmatprep.subr.bf16.mxu0 0
    %1358 = vmatpush1.bf16.msra.mxu0 0
    %1359 = vmatprep.subr.bf16.mxu0 0
    %1360 = vmatpush1.bf16.msra.mxu0 0
    %1361 = vmatprep.subr.bf16.mxu0 0
    %1362 = vmatpush1.bf16.msra.mxu0 0
    %1363 = vmatprep.subr.bf16.mxu0 0
    %1364 = vmatpush1.bf16.msra.mxu0 0
    %1365 = vmatprep.mubr.bf16.mxu0 0
    %1366 = vmatmul.mubr.bf16.gmra.mrb[0].mxu0 %v334
    %v1367 = vpop.f32.mrb[0].mxu0
    %v1368 = vpop.f32.mrb[0].mxu0
    %v1369 = vpop.f32.mrb[0].mxu0
    %v1370 = vpop.f32.mrb[0].mxu0
    %1371 = vmatprep.mubr.bf16.mxu0 0
    %1372 = vmatmul.mubr.bf16.gmra.mrb[0].mxu0 %v335
    %v1373 = vpop.f32.mrb[0].mxu0
    %v1374 = vpop.f32.mrb[0].mxu0
    %v1375 = vpop.f32.mrb[0].mxu0
    %v1376 = vpop.f32.mrb[0].mxu0
    %1377 = vmatprep.mubr.bf16.mxu0 0
    %1378 = vmatmul.mubr.bf16.gmra.mrb[0].mxu0 %v336
    %v1379 = vpop.f32.mrb[0].mxu0
    %v1380 = vpop.f32.mrb[0].mxu0
    %v1381 = vpop.f32.mrb[0].mxu0
    %v1382 = vpop.f32.mrb[0].mxu0
    %1383 = vmatprep.mubr.bf16.mxu0 0
    %1384 = vmatmul.mubr.bf16.gmra.mrb[0].mxu0 %v337
    %v1385 = vpop.f32.mrb[0].mxu0
    %v1386 = vpop.f32.mrb[0].mxu0
    %v1387 = vpop.f32.mrb[0].mxu0
    %v1388 = vadd.f32 %v281, %v1387
    %v1389 = vpop.f32.mrb[0].mxu0
    %v1390 = vadd.f32 %v285, %v1389
    %1391 = vdwg.mxu0
    %1392 = vmatprep.subr.bf16.mxu0 %v739
    %1393 = vmatpush1.bf16.msra.mxu0 %v738
    %1394 = vmatprep.subr.bf16.mxu0 %v755
    %1395 = vmatpush1.bf16.msra.mxu0 %v754
    %1396 = vmatprep.subr.bf16.mxu0 %v771
    %1397 = vmatpush1.bf16.msra.mxu0 %v770
    %1398 = vmatprep.subr.bf16.mxu0 %v787
    %1399 = vmatpush1.bf16.msra.mxu0 %v786
    %1400 = vmatprep.subr.bf16.mxu0 %v803
    %1401 = vmatpush1.bf16.msra.mxu0 %v802
    %1402 = vmatprep.subr.bf16.mxu0 %v819
    %1403 = vmatpush1.bf16.msra.mxu0 %v818
    %1404 = vmatprep.subr.bf16.mxu0 %v835
    %1405 = vmatpush1.bf16.msra.mxu0 %v834
    %1406 = vmatprep.subr.bf16.mxu0 %v851
    %1407 = vmatpush1.bf16.msra.mxu0 %v850
    %1408 = vmatprep.subr.bf16.mxu0 0
    %1409 = vmatpush1.bf16.msra.mxu0 0
    %1410 = vmatprep.subr.bf16.mxu0 0
    %1411 = vmatpush1.bf16.msra.mxu0 0
    %1412 = vmatprep.subr.bf16.mxu0 0
    %1413 = vmatpush1.bf16.msra.mxu0 0
    %1414 = vmatprep.subr.bf16.mxu0 0
    %1415 = vmatpush1.bf16.msra.mxu0 0
    %1416 = vmatprep.subr.bf16.mxu0 0
    %1417 = vmatpush1.bf16.msra.mxu0 0
    %1418 = vmatprep.subr.bf16.mxu0 0
    %1419 = vmatpush1.bf16.msra.mxu0 0
    %1420 = vmatprep.subr.bf16.mxu0 0
    %1421 = vmatpush1.bf16.msra.mxu0 0
    %1422 = vmatprep.subr.bf16.mxu0 0
    %1423 = vmatpush1.bf16.msra.mxu0 0
    %1424 = vmatprep.mubr.bf16.mxu0 0
    %1425 = vmatmul.mubr.bf16.gmra.mrb[0].mxu0 %v334
    %v1426 = vpop.f32.mrb[0].mxu0
    %v1427 = vpop.f32.mrb[0].mxu0
    %v1428 = vpop.f32.mrb[0].mxu0
    %v1429 = vpop.f32.mrb[0].mxu0
    %1430 = vmatprep.mubr.bf16.mxu0 0
    %1431 = vmatmul.mubr.bf16.gmra.mrb[0].mxu0 %v335
    %v1432 = vpop.f32.mrb[0].mxu0
    %v1433 = vpop.f32.mrb[0].mxu0
    %v1434 = vpop.f32.mrb[0].mxu0
    %v1435 = vpop.f32.mrb[0].mxu0
    %1436 = vmatprep.mubr.bf16.mxu0 0
    %1437 = vmatmul.mubr.bf16.gmra.mrb[0].mxu0 %v336
    %v1438 = vpop.f32.mrb[0].mxu0
    %v1439 = vpop.f32.mrb[0].mxu0
    %v1440 = vpop.f32.mrb[0].mxu0
    %v1441 = vpop.f32.mrb[0].mxu0
    %1442 = vmatprep.mubr.bf16.mxu0 0
    %1443 = vmatmul.mubr.bf16.gmra.mrb[0].mxu0 %v337
    %v1444 = vpop.f32.mrb[0].mxu0
    %v1445 = vpop.f32.mrb[0].mxu0
    %v1446 = vpop.f32.mrb[0].mxu0
    %v1447 = vadd.f32 %v289, %v1446
    %v1448 = vpop.f32.mrb[0].mxu0
    %v1449 = vadd.f32 %v293, %v1448
    %1450 = vdwg.mxu0
    %1451 = vmatprep.subr.bf16.mxu0 %v741
    %1452 = vmatpush1.bf16.msra.mxu0 %v740
    %1453 = vmatprep.subr.bf16.mxu0 %v757
    %1454 = vmatpush1.bf16.msra.mxu0 %v756
    %1455 = vmatprep.subr.bf16.mxu0 %v773
    %1456 = vmatpush1.bf16.msra.mxu0 %v772
    %1457 = vmatprep.subr.bf16.mxu0 %v789
    %1458 = vmatpush1.bf16.msra.mxu0 %v788
    %1459 = vmatprep.subr.bf16.mxu0 %v805
    %1460 = vmatpush1.bf16.msra.mxu0 %v804
    %1461 = vmatprep.subr.bf16.mxu0 %v821
    %1462 = vmatpush1.bf16.msra.mxu0 %v820
    %1463 = vmatprep.subr.bf16.mxu0 %v837
    %1464 = vmatpush1.bf16.msra.mxu0 %v836
    %1465 = vmatprep.subr.bf16.mxu0 %v853
    %1466 = vmatpush1.bf16.msra.mxu0 %v852
    %1467 = vmatprep.subr.bf16.mxu0 0
    %1468 = vmatpush1.bf16.msra.mxu0 0
    %1469 = vmatprep.subr.bf16.mxu0 0
    %1470 = vmatpush1.bf16.msra.mxu0 0
    %1471 = vmatprep.subr.bf16.mxu0 0
    %1472 = vmatpush1.bf16.msra.mxu0 0
    %1473 = vmatprep.subr.bf16.mxu0 0
    %1474 = vmatpush1.bf16.msra.mxu0 0
    %1475 = vmatprep.subr.bf16.mxu0 0
    %1476 = vmatpush1.bf16.msra.mxu0 0
    %1477 = vmatprep.subr.bf16.mxu0 0
    %1478 = vmatpush1.bf16.msra.mxu0 0
    %1479 = vmatprep.subr.bf16.mxu0 0
    %1480 = vmatpush1.bf16.msra.mxu0 0
    %1481 = vmatprep.subr.bf16.mxu0 0
    %1482 = vmatpush1.bf16.msra.mxu0 0
    %1483 = vmatprep.mubr.bf16.mxu0 0
    %1484 = vmatmul.mubr.bf16.gmra.mrb[0].mxu0 %v334
    %v1485 = vpop.f32.mrb[0].mxu0
    %v1486 = vpop.f32.mrb[0].mxu0
    %v1487 = vpop.f32.mrb[0].mxu0
    %v1488 = vpop.f32.mrb[0].mxu0
    %1489 = vmatprep.mubr.bf16.mxu0 0
    %1490 = vmatmul.mubr.bf16.gmra.mrb[0].mxu0 %v335
    %v1491 = vpop.f32.mrb[0].mxu0
    %v1492 = vpop.f32.mrb[0].mxu0
    %v1493 = vpop.f32.mrb[0].mxu0
    %v1494 = vpop.f32.mrb[0].mxu0
    %1495 = vmatprep.mubr.bf16.mxu0 0
    %1496 = vmatmul.mubr.bf16.gmra.mrb[0].mxu0 %v336
    %v1497 = vpop.f32.mrb[0].mxu0
    %v1498 = vpop.f32.mrb[0].mxu0
    %v1499 = vpop.f32.mrb[0].mxu0
    %v1500 = vpop.f32.mrb[0].mxu0
    %1501 = vmatprep.mubr.bf16.mxu0 0
    %1502 = vmatmul.mubr.bf16.gmra.mrb[0].mxu0 %v337
    %v1503 = vpop.f32.mrb[0].mxu0
    %v1504 = vpop.f32.mrb[0].mxu0
    %v1505 = vpop.f32.mrb[0].mxu0
    %v1506 = vadd.f32 %v297, %v1505
    %v1507 = vpop.f32.mrb[0].mxu0
    %v1508 = vadd.f32 %v301, %v1507
    %1509 = vdwg.mxu0
    %s1510 = smul.u32 4, 32
    %s1511 = smul.u32 %s1510, 8
    %s1512 = sshll.u32 %s1511, 4
    %1513 = dma.done [#allocation3], %s1512
    %v1514 = vld [vmem:[#allocation2] sm:$0xff]
    %v1515 = vld [vmem:[#allocation2 + $0x8] sm:$0xff]
    %v1516 = vld [vmem:[#allocation2 + $0x10] sm:$0xff]
    %v1517 = vld [vmem:[#allocation2 + $0x18] sm:$0xff]
    %v1518 = vld [vmem:[#allocation2 + $0x20] sm:$0xff]
    %v1519 = vld [vmem:[#allocation2 + $0x28] sm:$0xff]
    %v1520 = vld [vmem:[#allocation2 + $0x30] sm:$0xff]
    %v1521 = vld [vmem:[#allocation2 + $0x38] sm:$0xff]
    %v1522 = vld [vmem:[#allocation2 + $0x40] sm:$0xff]
    %v1523 = vld [vmem:[#allocation2 + $0x48] sm:$0xff]
    %v1524 = vld [vmem:[#allocation2 + $0x50] sm:$0xff]
    %v1525 = vld [vmem:[#allocation2 + $0x58] sm:$0xff]
    %v1526 = vld [vmem:[#allocation2 + $0x60] sm:$0xff]
    %v1527 = vld [vmem:[#allocation2 + $0x68] sm:$0xff]
    %v1528 = vld [vmem:[#allocation2 + $0x70] sm:$0xff]
    %v1529 = vld [vmem:[#allocation2 + $0x78] sm:$0xff]
    %v1530 = vld [vmem:[#allocation2 + $0x80] sm:$0xff]
    %v1531 = vld [vmem:[#allocation2 + $0x88] sm:$0xff]
    %v1532 = vld [vmem:[#allocation2 + $0x90] sm:$0xff]
    %v1533 = vld [vmem:[#allocation2 + $0x98] sm:$0xff]
    %v1534 = vld [vmem:[#allocation2 + $0xa0] sm:$0xff]
    %v1535 = vld [vmem:[#allocation2 + $0xa8] sm:$0xff]
    %v1536 = vld [vmem:[#allocation2 + $0xb0] sm:$0xff]
    %v1537 = vld [vmem:[#allocation2 + $0xb8] sm:$0xff]
    %v1538 = vld [vmem:[#allocation2 + $0xc0] sm:$0xff]
    %v1539 = vld [vmem:[#allocation2 + $0xc8] sm:$0xff]
    %v1540 = vld [vmem:[#allocation2 + $0xd0] sm:$0xff]
    %v1541 = vld [vmem:[#allocation2 + $0xd8] sm:$0xff]
    %v1542 = vld [vmem:[#allocation2 + $0xe0] sm:$0xff]
    %v1543 = vld [vmem:[#allocation2 + $0xe8] sm:$0xff]
    %v1544 = vld [vmem:[#allocation2 + $0xf0] sm:$0xff]
    %v1545 = vld [vmem:[#allocation2 + $0xf8] sm:$0xff]
    %v1546 = vld [vmem:[#allocation2 + $0x100] sm:$0xff]
    %v1547 = vld [vmem:[#allocation2 + $0x108] sm:$0xff]
    %v1548 = vld [vmem:[#allocation2 + $0x110] sm:$0xff]
    %v1549 = vld [vmem:[#allocation2 + $0x118] sm:$0xff]
    %v1550 = vld [vmem:[#allocation2 + $0x120] sm:$0xff]
    %v1551 = vld [vmem:[#allocation2 + $0x128] sm:$0xff]
    %v1552 = vld [vmem:[#allocation2 + $0x130] sm:$0xff]
    %v1553 = vld [vmem:[#allocation2 + $0x138] sm:$0xff]
    %v1554 = vld [vmem:[#allocation2 + $0x140] sm:$0xff]
    %v1555 = vld [vmem:[#allocation2 + $0x148] sm:$0xff]
    %v1556 = vld [vmem:[#allocation2 + $0x150] sm:$0xff]
    %v1557 = vld [vmem:[#allocation2 + $0x158] sm:$0xff]
    %v1558 = vld [vmem:[#allocation2 + $0x160] sm:$0xff]
    %v1559 = vld [vmem:[#allocation2 + $0x168] sm:$0xff]
    %v1560 = vld [vmem:[#allocation2 + $0x170] sm:$0xff]
    %v1561 = vld [vmem:[#allocation2 + $0x178] sm:$0xff]
    %v1562 = vld [vmem:[#allocation2 + $0x180] sm:$0xff]
    %v1563 = vld [vmem:[#allocation2 + $0x188] sm:$0xff]
    %v1564 = vld [vmem:[#allocation2 + $0x190] sm:$0xff]
    %v1565 = vld [vmem:[#allocation2 + $0x198] sm:$0xff]
    %v1566 = vld [vmem:[#allocation2 + $0x1a0] sm:$0xff]
    %v1567 = vld [vmem:[#allocation2 + $0x1a8] sm:$0xff]
    %v1568 = vld [vmem:[#allocation2 + $0x1b0] sm:$0xff]
    %v1569 = vld [vmem:[#allocation2 + $0x1b8] sm:$0xff]
    %v1570 = vld [vmem:[#allocation2 + $0x1c0] sm:$0xff]
    %v1571 = vld [vmem:[#allocation2 + $0x1c8] sm:$0xff]
    %v1572 = vld [vmem:[#allocation2 + $0x1d0] sm:$0xff]
    %v1573 = vld [vmem:[#allocation2 + $0x1d8] sm:$0xff]
    %v1574 = vld [vmem:[#allocation2 + $0x1e0] sm:$0xff]
    %v1575 = vld [vmem:[#allocation2 + $0x1e8] sm:$0xff]
    %v1576 = vld [vmem:[#allocation2 + $0x1f0] sm:$0xff]
    %v1577 = vld [vmem:[#allocation2 + $0x1f8] sm:$0xff]
    %v1578 = vld [vmem:[#allocation2 + $0x200] sm:$0xff]
    %v1579 = vld [vmem:[#allocation2 + $0x208] sm:$0xff]
    %v1580 = vld [vmem:[#allocation2 + $0x210] sm:$0xff]
    %v1581 = vld [vmem:[#allocation2 + $0x218] sm:$0xff]
    %v1582 = vld [vmem:[#allocation2 + $0x220] sm:$0xff]
    %v1583 = vld [vmem:[#allocation2 + $0x228] sm:$0xff]
    %v1584 = vld [vmem:[#allocation2 + $0x230] sm:$0xff]
    %v1585 = vld [vmem:[#allocation2 + $0x238] sm:$0xff]
    %v1586 = vld [vmem:[#allocation2 + $0x240] sm:$0xff]
    %v1587 = vld [vmem:[#allocation2 + $0x248] sm:$0xff]
    %v1588 = vld [vmem:[#allocation2 + $0x250] sm:$0xff]
    %v1589 = vld [vmem:[#allocation2 + $0x258] sm:$0xff]
    %v1590 = vld [vmem:[#allocation2 + $0x260] sm:$0xff]
    %v1591 = vld [vmem:[#allocation2 + $0x268] sm:$0xff]
    %v1592 = vld [vmem:[#allocation2 + $0x270] sm:$0xff]
    %v1593 = vld [vmem:[#allocation2 + $0x278] sm:$0xff]
    %v1594 = vld [vmem:[#allocation2 + $0x280] sm:$0xff]
    %v1595 = vld [vmem:[#allocation2 + $0x288] sm:$0xff]
    %v1596 = vld [vmem:[#allocation2 + $0x290] sm:$0xff]
    %v1597 = vld [vmem:[#allocation2 + $0x298] sm:$0xff]
    %v1598 = vld [vmem:[#allocation2 + $0x2a0] sm:$0xff]
    %v1599 = vld [vmem:[#allocation2 + $0x2a8] sm:$0xff]
    %v1600 = vld [vmem:[#allocation2 + $0x2b0] sm:$0xff]
    %v1601 = vld [vmem:[#allocation2 + $0x2b8] sm:$0xff]
    %v1602 = vld [vmem:[#allocation2 + $0x2c0] sm:$0xff]
    %v1603 = vld [vmem:[#allocation2 + $0x2c8] sm:$0xff]
    %v1604 = vld [vmem:[#allocation2 + $0x2d0] sm:$0xff]
    %v1605 = vld [vmem:[#allocation2 + $0x2d8] sm:$0xff]
    %v1606 = vld [vmem:[#allocation2 + $0x2e0] sm:$0xff]
    %v1607 = vld [vmem:[#allocation2 + $0x2e8] sm:$0xff]
    %v1608 = vld [vmem:[#allocation2 + $0x2f0] sm:$0xff]
    %v1609 = vld [vmem:[#allocation2 + $0x2f8] sm:$0xff]
    %v1610 = vld [vmem:[#allocation2 + $0x300] sm:$0xff]
    %v1611 = vld [vmem:[#allocation2 + $0x308] sm:$0xff]
    %v1612 = vld [vmem:[#allocation2 + $0x310] sm:$0xff]
    %v1613 = vld [vmem:[#allocation2 + $0x318] sm:$0xff]
    %v1614 = vld [vmem:[#allocation2 + $0x320] sm:$0xff]
    %v1615 = vld [vmem:[#allocation2 + $0x328] sm:$0xff]
    %v1616 = vld [vmem:[#allocation2 + $0x330] sm:$0xff]
    %v1617 = vld [vmem:[#allocation2 + $0x338] sm:$0xff]
    %v1618 = vld [vmem:[#allocation2 + $0x340] sm:$0xff]
    %v1619 = vld [vmem:[#allocation2 + $0x348] sm:$0xff]
    %v1620 = vld [vmem:[#allocation2 + $0x350] sm:$0xff]
    %v1621 = vld [vmem:[#allocation2 + $0x358] sm:$0xff]
    %v1622 = vld [vmem:[#allocation2 + $0x360] sm:$0xff]
    %v1623 = vld [vmem:[#allocation2 + $0x368] sm:$0xff]
    %v1624 = vld [vmem:[#allocation2 + $0x370] sm:$0xff]
    %v1625 = vld [vmem:[#allocation2 + $0x378] sm:$0xff]
    %v1626 = vld [vmem:[#allocation2 + $0x380] sm:$0xff]
    %v1627 = vld [vmem:[#allocation2 + $0x388] sm:$0xff]
    %v1628 = vld [vmem:[#allocation2 + $0x390] sm:$0xff]
    %v1629 = vld [vmem:[#allocation2 + $0x398] sm:$0xff]
    %v1630 = vld [vmem:[#allocation2 + $0x3a0] sm:$0xff]
    %v1631 = vld [vmem:[#allocation2 + $0x3a8] sm:$0xff]
    %v1632 = vld [vmem:[#allocation2 + $0x3b0] sm:$0xff]
    %v1633 = vld [vmem:[#allocation2 + $0x3b8] sm:$0xff]
    %v1634 = vld [vmem:[#allocation2 + $0x3c0] sm:$0xff]
    %v1635 = vld [vmem:[#allocation2 + $0x3c8] sm:$0xff]
    %v1636 = vld [vmem:[#allocation2 + $0x3d0] sm:$0xff]
    %v1637 = vld [vmem:[#allocation2 + $0x3d8] sm:$0xff]
    %v1638 = vld [vmem:[#allocation2 + $0x3e0] sm:$0xff]
    %v1639 = vld [vmem:[#allocation2 + $0x3e8] sm:$0xff]
    %v1640 = vld [vmem:[#allocation2 + $0x3f0] sm:$0xff]
    %v1641 = vld [vmem:[#allocation2 + $0x3f8] sm:$0xff]
    %1642 = vmatprep.subr.bf16.mxu0 %v1515
    %1643 = vmatpush1.bf16.msra.mxu0 %v1514
    %1644 = vmatprep.subr.bf16.mxu0 %v1523
    %1645 = vmatpush1.bf16.msra.mxu0 %v1522
    %1646 = vmatprep.subr.bf16.mxu0 %v1531
    %1647 = vmatpush1.bf16.msra.mxu0 %v1530
    %1648 = vmatprep.subr.bf16.mxu0 %v1539
    %1649 = vmatpush1.bf16.msra.mxu0 %v1538
    %1650 = vmatprep.subr.bf16.mxu0 %v1547
    %1651 = vmatpush1.bf16.msra.mxu0 %v1546
    %1652 = vmatprep.subr.bf16.mxu0 %v1555
    %1653 = vmatpush1.bf16.msra.mxu0 %v1554
    %1654 = vmatprep.subr.bf16.mxu0 %v1563
    %1655 = vmatpush1.bf16.msra.mxu0 %v1562
    %1656 = vmatprep.subr.bf16.mxu0 %v1571
    %1657 = vmatpush1.bf16.msra.mxu0 %v1570
    %1658 = vmatprep.subr.bf16.mxu0 %v1579
    %1659 = vmatpush1.bf16.msra.mxu0 %v1578
    %1660 = vmatprep.subr.bf16.mxu0 %v1587
    %1661 = vmatpush1.bf16.msra.mxu0 %v1586
    %1662 = vmatprep.subr.bf16.mxu0 %v1595
    %1663 = vmatpush1.bf16.msra.mxu0 %v1594
    %1664 = vmatprep.subr.bf16.mxu0 %v1603
    %1665 = vmatpush1.bf16.msra.mxu0 %v1602
    %1666 = vmatprep.subr.bf16.mxu0 %v1611
    %1667 = vmatpush1.bf16.msra.mxu0 %v1610
    %1668 = vmatprep.subr.bf16.mxu0 %v1619
    %1669 = vmatpush1.bf16.msra.mxu0 %v1618
    %1670 = vmatprep.subr.bf16.mxu0 %v1627
    %1671 = vmatpush1.bf16.msra.mxu0 %v1626
    %1672 = vmatprep.subr.bf16.mxu0 %v1635
    %1673 = vmatpush1.bf16.msra.mxu0 %v1634
    %1674 = vmatprep.mubr.bf16.mxu0 0
    %1675 = vmatmul.mubr.bf16.gmra.mrb[0].mxu0 0
    %v1676 = vpop.f32.mrb[0].mxu0
    %v1677 = vadd.f32 0.0, %v1676
    %v1678 = vpop.f32.mrb[0].mxu0
    %v1679 = vadd.f32 0.0, %v1678
    %v1680 = vpop.f32.mrb[0].mxu0
    %v1681 = vpop.f32.mrb[0].mxu0
    %1682 = vdwg.mxu0
    %1683 = vmatprep.subr.bf16.mxu0 %v1517
    %1684 = vmatpush1.bf16.msra.mxu0 %v1516
    %1685 = vmatprep.subr.bf16.mxu0 %v1525
    %1686 = vmatpush1.bf16.msra.mxu0 %v1524
    %1687 = vmatprep.subr.bf16.mxu0 %v1533
    %1688 = vmatpush1.bf16.msra.mxu0 %v1532
    %1689 = vmatprep.subr.bf16.mxu0 %v1541
    %1690 = vmatpush1.bf16.msra.mxu0 %v1540
    %1691 = vmatprep.subr.bf16.mxu0 %v1549
    %1692 = vmatpush1.bf16.msra.mxu0 %v1548
    %1693 = vmatprep.subr.bf16.mxu0 %v1557
    %1694 = vmatpush1.bf16.msra.mxu0 %v1556
    %1695 = vmatprep.subr.bf16.mxu0 %v1565
    %1696 = vmatpush1.bf16.msra.mxu0 %v1564
    %1697 = vmatprep.subr.bf16.mxu0 %v1573
    %1698 = vmatpush1.bf16.msra.mxu0 %v1572
    %1699 = vmatprep.subr.bf16.mxu0 %v1581
    %1700 = vmatpush1.bf16.msra.mxu0 %v1580
    %1701 = vmatprep.subr.bf16.mxu0 %v1589
    %1702 = vmatpush1.bf16.msra.mxu0 %v1588
    %1703 = vmatprep.subr.bf16.mxu0 %v1597
    %1704 = vmatpush1.bf16.msra.mxu0 %v1596
    %1705 = vmatprep.subr.bf16.mxu0 %v1605
    %1706 = vmatpush1.bf16.msra.mxu0 %v1604
    %1707 = vmatprep.subr.bf16.mxu0 %v1613
    %1708 = vmatpush1.bf16.msra.mxu0 %v1612
    %1709 = vmatprep.subr.bf16.mxu0 %v1621
    %1710 = vmatpush1.bf16.msra.mxu0 %v1620
    %1711 = vmatprep.subr.bf16.mxu0 %v1629
    %1712 = vmatpush1.bf16.msra.mxu0 %v1628
    %1713 = vmatprep.subr.bf16.mxu0 %v1637
    %1714 = vmatpush1.bf16.msra.mxu0 %v1636
    %1715 = vmatprep.mubr.bf16.mxu0 0
    %1716 = vmatmul.mubr.bf16.gmra.mrb[0].mxu0 0
    %v1717 = vpop.f32.mrb[0].mxu0
    %v1718 = vadd.f32 0.0, %v1717
    %v1719 = vpop.f32.mrb[0].mxu0
    %v1720 = vadd.f32 0.0, %v1719
    %v1721 = vpop.f32.mrb[0].mxu0
    %v1722 = vpop.f32.mrb[0].mxu0
    %1723 = vdwg.mxu0
    %1724 = vmatprep.subr.bf16.mxu0 %v1519
    %1725 = vmatpush1.bf16.msra.mxu0 %v1518
    %1726 = vmatprep.subr.bf16.mxu0 %v1527
    %1727 = vmatpush1.bf16.msra.mxu0 %v1526
    %1728 = vmatprep.subr.bf16.mxu0 %v1535
    %1729 = vmatpush1.bf16.msra.mxu0 %v1534
    %1730 = vmatprep.subr.bf16.mxu0 %v1543
    %1731 = vmatpush1.bf16.msra.mxu0 %v1542
    %1732 = vmatprep.subr.bf16.mxu0 %v1551
    %1733 = vmatpush1.bf16.msra.mxu0 %v1550
    %1734 = vmatprep.subr.bf16.mxu0 %v1559
    %1735 = vmatpush1.bf16.msra.mxu0 %v1558
    %1736 = vmatprep.subr.bf16.mxu0 %v1567
    %1737 = vmatpush1.bf16.msra.mxu0 %v1566
    %1738 = vmatprep.subr.bf16.mxu0 %v1575
    %1739 = vmatpush1.bf16.msra.mxu0 %v1574
    %1740 = vmatprep.subr.bf16.mxu0 %v1583
    %1741 = vmatpush1.bf16.msra.mxu0 %v1582
    %1742 = vmatprep.subr.bf16.mxu0 %v1591
    %1743 = vmatpush1.bf16.msra.mxu0 %v1590
    %1744 = vmatprep.subr.bf16.mxu0 %v1599
    %1745 = vmatpush1.bf16.msra.mxu0 %v1598
    %1746 = vmatprep.subr.bf16.mxu0 %v1607
    %1747 = vmatpush1.bf16.msra.mxu0 %v1606
    %1748 = vmatprep.subr.bf16.mxu0 %v1615
    %1749 = vmatpush1.bf16.msra.mxu0 %v1614
    %1750 = vmatprep.subr.bf16.mxu0 %v1623
    %1751 = vmatpush1.bf16.msra.mxu0 %v1622
    %1752 = vmatprep.subr.bf16.mxu0 %v1631
    %1753 = vmatpush1.bf16.msra.mxu0 %v1630
    %1754 = vmatprep.subr.bf16.mxu0 %v1639
    %1755 = vmatpush1.bf16.msra.mxu0 %v1638
    %1756 = vmatprep.mubr.bf16.mxu0 0
    %1757 = vmatmul.mubr.bf16.gmra.mrb[0].mxu0 0
    %v1758 = vpop.f32.mrb[0].mxu0
    %v1759 = vadd.f32 0.0, %v1758
    %v1760 = vpop.f32.mrb[0].mxu0
    %v1761 = vadd.f32 0.0, %v1760
    %v1762 = vpop.f32.mrb[0].mxu0
    %v1763 = vpop.f32.mrb[0].mxu0
    %1764 = vdwg.mxu0
    %1765 = vmatprep.subr.bf16.mxu0 %v1521
    %1766 = vmatpush1.bf16.msra.mxu0 %v1520
    %1767 = vmatprep.subr.bf16.mxu0 %v1529
    %1768 = vmatpush1.bf16.msra.mxu0 %v1528
    %1769 = vmatprep.subr.bf16.mxu0 %v1537
    %1770 = vmatpush1.bf16.msra.mxu0 %v1536
    %1771 = vmatprep.subr.bf16.mxu0 %v1545
    %1772 = vmatpush1.bf16.msra.mxu0 %v1544
    %1773 = vmatprep.subr.bf16.mxu0 %v1553
    %1774 = vmatpush1.bf16.msra.mxu0 %v1552
    %1775 = vmatprep.subr.bf16.mxu0 %v1561
    %1776 = vmatpush1.bf16.msra.mxu0 %v1560
    %1777 = vmatprep.subr.bf16.mxu0 %v1569
    %1778 = vmatpush1.bf16.msra.mxu0 %v1568
    %1779 = vmatprep.subr.bf16.mxu0 %v1577
    %1780 = vmatpush1.bf16.msra.mxu0 %v1576
    %1781 = vmatprep.subr.bf16.mxu0 %v1585
    %1782 = vmatpush1.bf16.msra.mxu0 %v1584
    %1783 = vmatprep.subr.bf16.mxu0 %v1593
    %1784 = vmatpush1.bf16.msra.mxu0 %v1592
    %1785 = vmatprep.subr.bf16.mxu0 %v1601
    %1786 = vmatpush1.bf16.msra.mxu0 %v1600
    %1787 = vmatprep.subr.bf16.mxu0 %v1609
    %1788 = vmatpush1.bf16.msra.mxu0 %v1608
    %1789 = vmatprep.subr.bf16.mxu0 %v1617
    %1790 = vmatpush1.bf16.msra.mxu0 %v1616
    %1791 = vmatprep.subr.bf16.mxu0 %v1625
    %1792 = vmatpush1.bf16.msra.mxu0 %v1624
    %1793 = vmatprep.subr.bf16.mxu0 %v1633
    %1794 = vmatpush1.bf16.msra.mxu0 %v1632
    %1795 = vmatprep.subr.bf16.mxu0 %v1641
    %1796 = vmatpush1.bf16.msra.mxu0 %v1640
    %1797 = vmatprep.mubr.bf16.mxu0 0
    %1798 = vmatmul.mubr.bf16.gmra.mrb[0].mxu0 0
    %v1799 = vpop.f32.mrb[0].mxu0
    %v1800 = vadd.f32 0.0, %v1799
    %v1801 = vpop.f32.mrb[0].mxu0
    %v1802 = vadd.f32 0.0, %v1801
    %v1803 = vpop.f32.mrb[0].mxu0
    %v1804 = vpop.f32.mrb[0].mxu0
    %1805 = vdwg.mxu0
    %v1806 = vadd.f32 %v1017, %v1677
    %v1807 = vadd.f32 %v1019, %v1679
    %v1808 = vadd.f32 %v1090, %v1718
    %v1809 = vadd.f32 %v1092, %v1720
    %v1810 = vadd.f32 %v1163, %v1759
    %v1811 = vadd.f32 %v1165, %v1761
    %v1812 = vadd.f32 %v1236, %v1800
    %v1813 = vadd.f32 %v1238, %v1802
    %v1814 = vxor.u32 %v1806, 2147483648
    %v1815 = vxor.u32 %v1807, 2147483648
    %v1816 = vmul.f32 %v1814, 1.442695
    %v1817 = vpow.pop %v1816
    %v1818 = vmul.f32 %v1815, 1.442695
    %v1819 = vpow.pop %v1818
    %v1820 = vadd.f32 %v1817, 1.0
    %v1821 = vadd.f32 %v1819, 1.0
    %v1822 = vrcp.pop %v1820
    %v1823 = vmul.f32 1.0, %v1822
    %v1824 = vrcp.pop %v1821
    %v1825 = vmul.f32 1.0, %v1824
    %v1826 = vxor.u32 %v1808, 2147483648
    %v1827 = vxor.u32 %v1809, 2147483648
    %v1828 = vmul.f32 %v1826, 1.442695
    %v1829 = vpow.pop %v1828
    %v1830 = vmul.f32 %v1827, 1.442695
    %v1831 = vpow.pop %v1830
    %v1832 = vadd.f32 %v1829, 1.0
    %v1833 = vadd.f32 %v1831, 1.0
    %v1834 = vrcp.pop %v1832
    %v1835 = vmul.f32 1.0, %v1834
    %v1836 = vrcp.pop %v1833
    %v1837 = vmul.f32 1.0, %v1836
    %v1838 = vtanh.pop %v1810
    %v1839 = vtanh.pop %v1811
    %v1840 = vxor.u32 %v1812, 2147483648
    %v1841 = vxor.u32 %v1813, 2147483648
    %v1842 = vmul.f32 %v1840, 1.442695
    %v1843 = vpow.pop %v1842
    %v1844 = vmul.f32 %v1841, 1.442695
    %v1845 = vpow.pop %v1844
    %v1846 = vadd.f32 %v1843, 1.0
    %v1847 = vadd.f32 %v1845, 1.0
    %v1848 = vrcp.pop %v1846
    %v1849 = vmul.f32 1.0, %v1848
    %v1850 = vrcp.pop %v1847
    %v1851 = vmul.f32 1.0, %v1850
    %v1852 = vmul.f32 %v1835, 0.0
    %v1853 = vmul.f32 %v1837, 0.0
    %v1854 = vmul.f32 %v1823, %v1838
    %v1855 = vmul.f32 %v1825, %v1839
    %v1856 = vadd.f32 %v1852, %v1854
    %v1857 = vadd.f32 %v1853, %v1855
    %v1858 = vtanh.pop %v1856
    %v1859 = vtanh.pop %v1857
    %v1860 = vmul.f32 %v1849, %v1858
    %v1861 = vmul.f32 %v1851, %v1859
    %v1862 = vpack.c.bf16 %v1860, %v1860
    %v1863 = vpack.c.bf16 %v1861, %v1861
    %1864 = vmatprep.subr.bf16.mxu0 %v1515
    %1865 = vmatpush1.bf16.msra.mxu0 %v1514
    %1866 = vmatprep.subr.bf16.mxu0 %v1523
    %1867 = vmatpush1.bf16.msra.mxu0 %v1522
    %1868 = vmatprep.subr.bf16.mxu0 %v1531
    %1869 = vmatpush1.bf16.msra.mxu0 %v1530
    %1870 = vmatprep.subr.bf16.mxu0 %v1539
    %1871 = vmatpush1.bf16.msra.mxu0 %v1538
    %1872 = vmatprep.subr.bf16.mxu0 %v1547
    %1873 = vmatpush1.bf16.msra.mxu0 %v1546
    %1874 = vmatprep.subr.bf16.mxu0 %v1555
    %1875 = vmatpush1.bf16.msra.mxu0 %v1554
    %1876 = vmatprep.subr.bf16.mxu0 %v1563
    %1877 = vmatpush1.bf16.msra.mxu0 %v1562
    %1878 = vmatprep.subr.bf16.mxu0 %v1571
    %1879 = vmatpush1.bf16.msra.mxu0 %v1570
    %1880 = vmatprep.subr.bf16.mxu0 %v1579
    %1881 = vmatpush1.bf16.msra.mxu0 %v1578
    %1882 = vmatprep.subr.bf16.mxu0 %v1587
    %1883 = vmatpush1.bf16.msra.mxu0 %v1586
    %1884 = vmatprep.subr.bf16.mxu0 %v1595
    %1885 = vmatpush1.bf16.msra.mxu0 %v1594
    %1886 = vmatprep.subr.bf16.mxu0 %v1603
    %1887 = vmatpush1.bf16.msra.mxu0 %v1602
    %1888 = vmatprep.subr.bf16.mxu0 %v1611
    %1889 = vmatpush1.bf16.msra.mxu0 %v1610
    %1890 = vmatprep.subr.bf16.mxu0 %v1619
    %1891 = vmatpush1.bf16.msra.mxu0 %v1618
    %1892 = vmatprep.subr.bf16.mxu0 %v1627
    %1893 = vmatpush1.bf16.msra.mxu0 %v1626
    %1894 = vmatprep.subr.bf16.mxu0 %v1635
    %1895 = vmatpush1.bf16.msra.mxu0 %v1634
    %1896 = vmatprep.mubr.bf16.mxu0 %v1863
    %1897 = vmatmul.mubr.bf16.gmra.mrb[0].mxu0 %v1862
    %v1898 = vpop.f32.mrb[0].mxu0
    %v1899 = vadd.f32 0.0, %v1898
    %v1900 = vpop.f32.mrb[0].mxu0
    %v1901 = vadd.f32 0.0, %v1900
    %v1902 = vpop.f32.mrb[0].mxu0
    %v1903 = vpop.f32.mrb[0].mxu0
    %1904 = vdwg.mxu0
    %1905 = vmatprep.subr.bf16.mxu0 %v1517
    %1906 = vmatpush1.bf16.msra.mxu0 %v1516
    %1907 = vmatprep.subr.bf16.mxu0 %v1525
    %1908 = vmatpush1.bf16.msra.mxu0 %v1524
    %1909 = vmatprep.subr.bf16.mxu0 %v1533
    %1910 = vmatpush1.bf16.msra.mxu0 %v1532
    %1911 = vmatprep.subr.bf16.mxu0 %v1541
    %1912 = vmatpush1.bf16.msra.mxu0 %v1540
    %1913 = vmatprep.subr.bf16.mxu0 %v1549
    %1914 = vmatpush1.bf16.msra.mxu0 %v1548
    %1915 = vmatprep.subr.bf16.mxu0 %v1557
    %1916 = vmatpush1.bf16.msra.mxu0 %v1556
    %1917 = vmatprep.subr.bf16.mxu0 %v1565
    %1918 = vmatpush1.bf16.msra.mxu0 %v1564
    %1919 = vmatprep.subr.bf16.mxu0 %v1573
    %1920 = vmatpush1.bf16.msra.mxu0 %v1572
    %1921 = vmatprep.subr.bf16.mxu0 %v1581
    %1922 = vmatpush1.bf16.msra.mxu0 %v1580
    %1923 = vmatprep.subr.bf16.mxu0 %v1589
    %1924 = vmatpush1.bf16.msra.mxu0 %v1588
    %1925 = vmatprep.subr.bf16.mxu0 %v1597
    %1926 = vmatpush1.bf16.msra.mxu0 %v1596
    %1927 = vmatprep.subr.bf16.mxu0 %v1605
    %1928 = vmatpush1.bf16.msra.mxu0 %v1604
    %1929 = vmatprep.subr.bf16.mxu0 %v1613
    %1930 = vmatpush1.bf16.msra.mxu0 %v1612
    %1931 = vmatprep.subr.bf16.mxu0 %v1621
    %1932 = vmatpush1.bf16.msra.mxu0 %v1620
    %1933 = vmatprep.subr.bf16.mxu0 %v1629
    %1934 = vmatpush1.bf16.msra.mxu0 %v1628
    %1935 = vmatprep.subr.bf16.mxu0 %v1637
    %1936 = vmatpush1.bf16.msra.mxu0 %v1636
    %1937 = vmatprep.mubr.bf16.mxu0 %v1863
    %1938 = vmatmul.mubr.bf16.gmra.mrb[0].mxu0 %v1862
    %v1939 = vpop.f32.mrb[0].mxu0
    %v1940 = vadd.f32 0.0, %v1939
    %v1941 = vpop.f32.mrb[0].mxu0
    %v1942 = vadd.f32 0.0, %v1941
    %v1943 = vpop.f32.mrb[0].mxu0
    %v1944 = vpop.f32.mrb[0].mxu0
    %1945 = vdwg.mxu0
    %1946 = vmatprep.subr.bf16.mxu0 %v1519
    %1947 = vmatpush1.bf16.msra.mxu0 %v1518
    %1948 = vmatprep.subr.bf16.mxu0 %v1527
    %1949 = vmatpush1.bf16.msra.mxu0 %v1526
    %1950 = vmatprep.subr.bf16.mxu0 %v1535
    %1951 = vmatpush1.bf16.msra.mxu0 %v1534
    %1952 = vmatprep.subr.bf16.mxu0 %v1543
    %1953 = vmatpush1.bf16.msra.mxu0 %v1542
    %1954 = vmatprep.subr.bf16.mxu0 %v1551
    %1955 = vmatpush1.bf16.msra.mxu0 %v1550
    %1956 = vmatprep.subr.bf16.mxu0 %v1559
    %1957 = vmatpush1.bf16.msra.mxu0 %v1558
    %1958 = vmatprep.subr.bf16.mxu0 %v1567
    %1959 = vmatpush1.bf16.msra.mxu0 %v1566
    %1960 = vmatprep.subr.bf16.mxu0 %v1575
    %1961 = vmatpush1.bf16.msra.mxu0 %v1574
    %1962 = vmatprep.subr.bf16.mxu0 %v1583
    %1963 = vmatpush1.bf16.msra.mxu0 %v1582
    %1964 = vmatprep.subr.bf16.mxu0 %v1591
    %1965 = vmatpush1.bf16.msra.mxu0 %v1590
    %1966 = vmatprep.subr.bf16.mxu0 %v1599
    %1967 = vmatpush1.bf16.msra.mxu0 %v1598
    %1968 = vmatprep.subr.bf16.mxu0 %v1607
    %1969 = vmatpush1.bf16.msra.mxu0 %v1606
    %1970 = vmatprep.subr.bf16.mxu0 %v1615
    %1971 = vmatpush1.bf16.msra.mxu0 %v1614
    %1972 = vmatprep.subr.bf16.mxu0 %v1623
    %1973 = vmatpush1.bf16.msra.mxu0 %v1622
    %1974 = vmatprep.subr.bf16.mxu0 %v1631
    %1975 = vmatpush1.bf16.msra.mxu0 %v1630
    %1976 = vmatprep.subr.bf16.mxu0 %v1639
    %1977 = vmatpush1.bf16.msra.mxu0 %v1638
    %1978 = vmatprep.mubr.bf16.mxu0 %v1863
    %1979 = vmatmul.mubr.bf16.gmra.mrb[0].mxu0 %v1862
    %v1980 = vpop.f32.mrb[0].mxu0
    %v1981 = vadd.f32 0.0, %v1980
    %v1982 = vpop.f32.mrb[0].mxu0
    %v1983 = vadd.f32 0.0, %v1982
    %v1984 = vpop.f32.mrb[0].mxu0
    %v1985 = vpop.f32.mrb[0].mxu0
    %1986 = vdwg.mxu0
    %1987 = vmatprep.subr.bf16.mxu0 %v1521
    %1988 = vmatpush1.bf16.msra.mxu0 %v1520
    %1989 = vmatprep.subr.bf16.mxu0 %v1529
    %1990 = vmatpush1.bf16.msra.mxu0 %v1528
    %1991 = vmatprep.subr.bf16.mxu0 %v1537
    %1992 = vmatpush1.bf16.msra.mxu0 %v1536
    %1993 = vmatprep.subr.bf16.mxu0 %v1545
    %1994 = vmatpush1.bf16.msra.mxu0 %v1544
    %1995 = vmatprep.subr.bf16.mxu0 %v1553
    %1996 = vmatpush1.bf16.msra.mxu0 %v1552
    %1997 = vmatprep.subr.bf16.mxu0 %v1561
    %1998 = vmatpush1.bf16.msra.mxu0 %v1560
    %1999 = vmatprep.subr.bf16.mxu0 %v1569
    %2000 = vmatpush1.bf16.msra.mxu0 %v1568
    %2001 = vmatprep.subr.bf16.mxu0 %v1577
    %2002 = vmatpush1.bf16.msra.mxu0 %v1576
    %2003 = vmatprep.subr.bf16.mxu0 %v1585
    %2004 = vmatpush1.bf16.msra.mxu0 %v1584
    %2005 = vmatprep.subr.bf16.mxu0 %v1593
    %2006 = vmatpush1.bf16.msra.mxu0 %v1592
    %2007 = vmatprep.subr.bf16.mxu0 %v1601
    %2008 = vmatpush1.bf16.msra.mxu0 %v1600
    %2009 = vmatprep.subr.bf16.mxu0 %v1609
    %2010 = vmatpush1.bf16.msra.mxu0 %v1608
    %2011 = vmatprep.subr.bf16.mxu0 %v1617
    %2012 = vmatpush1.bf16.msra.mxu0 %v1616
    %2013 = vmatprep.subr.bf16.mxu0 %v1625
    %2014 = vmatpush1.bf16.msra.mxu0 %v1624
    %2015 = vmatprep.subr.bf16.mxu0 %v1633
    %2016 = vmatpush1.bf16.msra.mxu0 %v1632
    %2017 = vmatprep.subr.bf16.mxu0 %v1641
    %2018 = vmatpush1.bf16.msra.mxu0 %v1640
    %2019 = vmatprep.mubr.bf16.mxu0 %v1863
    %2020 = vmatmul.mubr.bf16.gmra.mrb[0].mxu0 %v1862
    %v2021 = vpop.f32.mrb[0].mxu0
    %v2022 = vadd.f32 0.0, %v2021
    %v2023 = vpop.f32.mrb[0].mxu0
    %v2024 = vadd.f32 0.0, %v2023
    %v2025 = vpop.f32.mrb[0].mxu0
    %v2026 = vpop.f32.mrb[0].mxu0
    %2027 = vdwg.mxu0
    %v2028 = vadd.f32 %v1021, %v1899
    %v2029 = vadd.f32 %v1023, %v1901
    %v2030 = vadd.f32 %v1094, %v1940
    %v2031 = vadd.f32 %v1096, %v1942
    %v2032 = vadd.f32 %v1167, %v1981
    %v2033 = vadd.f32 %v1169, %v1983
    %v2034 = vadd.f32 %v1240, %v2022
    %v2035 = vadd.f32 %v1242, %v2024
    %v2036 = vxor.u32 %v2028, 2147483648
    %v2037 = vxor.u32 %v2029, 2147483648
    %v2038 = vmul.f32 %v2036, 1.442695
    %v2039 = vpow.pop %v2038
    %v2040 = vmul.f32 %v2037, 1.442695
    %v2041 = vpow.pop %v2040
    %v2042 = vadd.f32 %v2039, 1.0
    %v2043 = vadd.f32 %v2041, 1.0
    %v2044 = vrcp.pop %v2042
    %v2045 = vmul.f32 1.0, %v2044
    %v2046 = vrcp.pop %v2043
    %v2047 = vmul.f32 1.0, %v2046
    %v2048 = vxor.u32 %v2030, 2147483648
    %v2049 = vxor.u32 %v2031, 2147483648
    %v2050 = vmul.f32 %v2048, 1.442695
    %v2051 = vpow.pop %v2050
    %v2052 = vmul.f32 %v2049, 1.442695
    %v2053 = vpow.pop %v2052
    %v2054 = vadd.f32 %v2051, 1.0
    %v2055 = vadd.f32 %v2053, 1.0
    %v2056 = vrcp.pop %v2054
    %v2057 = vmul.f32 1.0, %v2056
    %v2058 = vrcp.pop %v2055
    %v2059 = vmul.f32 1.0, %v2058
    %v2060 = vtanh.pop %v2032
    %v2061 = vtanh.pop %v2033
    %v2062 = vxor.u32 %v2034, 2147483648
    %v2063 = vxor.u32 %v2035, 2147483648
    %v2064 = vmul.f32 %v2062, 1.442695
    %v2065 = vpow.pop %v2064
    %v2066 = vmul.f32 %v2063, 1.442695
    %v2067 = vpow.pop %v2066
    %v2068 = vadd.f32 %v2065, 1.0
    %v2069 = vadd.f32 %v2067, 1.0
    %v2070 = vrcp.pop %v2068
    %v2071 = vmul.f32 1.0, %v2070
    %v2072 = vrcp.pop %v2069
    %v2073 = vmul.f32 1.0, %v2072
    %v2074 = vmul.f32 %v2057, %v1856
    %v2075 = vmul.f32 %v2059, %v1857
    %v2076 = vmul.f32 %v2045, %v2060
    %v2077 = vmul.f32 %v2047, %v2061
    %v2078 = vadd.f32 %v2074, %v2076
    %v2079 = vadd.f32 %v2075, %v2077
    %v2080 = vtanh.pop %v2078
    %v2081 = vtanh.pop %v2079
    %v2082 = vmul.f32 %v2071, %v2080
    %v2083 = vmul.f32 %v2073, %v2081
    %v2084 = vpack.c.bf16 %v2082, %v2082
    %v2085 = vpack.c.bf16 %v2083, %v2083
    %2086 = vmatprep.subr.bf16.mxu0 %v1515
    %2087 = vmatpush1.bf16.msra.mxu0 %v1514
    %2088 = vmatprep.subr.bf16.mxu0 %v1523
    %2089 = vmatpush1.bf16.msra.mxu0 %v1522
    %2090 = vmatprep.subr.bf16.mxu0 %v1531
    %2091 = vmatpush1.bf16.msra.mxu0 %v1530
    %2092 = vmatprep.subr.bf16.mxu0 %v1539
    %2093 = vmatpush1.bf16.msra.mxu0 %v1538
    %2094 = vmatprep.subr.bf16.mxu0 %v1547
    %2095 = vmatpush1.bf16.msra.mxu0 %v1546
    %2096 = vmatprep.subr.bf16.mxu0 %v1555
    %2097 = vmatpush1.bf16.msra.mxu0 %v1554
    %2098 = vmatprep.subr.bf16.mxu0 %v1563
    %2099 = vmatpush1.bf16.msra.mxu0 %v1562
    %2100 = vmatprep.subr.bf16.mxu0 %v1571
    %2101 = vmatpush1.bf16.msra.mxu0 %v1570
    %2102 = vmatprep.subr.bf16.mxu0 %v1579
    %2103 = vmatpush1.bf16.msra.mxu0 %v1578
    %2104 = vmatprep.subr.bf16.mxu0 %v1587
    %2105 = vmatpush1.bf16.msra.mxu0 %v1586
    %2106 = vmatprep.subr.bf16.mxu0 %v1595
    %2107 = vmatpush1.bf16.msra.mxu0 %v1594
    %2108 = vmatprep.subr.bf16.mxu0 %v1603
    %2109 = vmatpush1.bf16.msra.mxu0 %v1602
    %2110 = vmatprep.subr.bf16.mxu0 %v1611
    %2111 = vmatpush1.bf16.msra.mxu0 %v1610
    %2112 = vmatprep.subr.bf16.mxu0 %v1619
    %2113 = vmatpush1.bf16.msra.mxu0 %v1618
    %2114 = vmatprep.subr.bf16.mxu0 %v1627
    %2115 = vmatpush1.bf16.msra.mxu0 %v1626
    %2116 = vmatprep.subr.bf16.mxu0 %v1635
    %2117 = vmatpush1.bf16.msra.mxu0 %v1634
    %2118 = vmatprep.mubr.bf16.mxu0 %v2085
    %2119 = vmatmul.mubr.bf16.gmra.mrb[0].mxu0 %v2084
    %v2120 = vpop.f32.mrb[0].mxu0
    %v2121 = vadd.f32 0.0, %v2120
    %v2122 = vpop.f32.mrb[0].mxu0
    %v2123 = vadd.f32 0.0, %v2122
    %v2124 = vpop.f32.mrb[0].mxu0
    %v2125 = vpop.f32.mrb[0].mxu0
    %2126 = vdwg.mxu0
    %2127 = vmatprep.subr.bf16.mxu0 %v1517
    %2128 = vmatpush1.bf16.msra.mxu0 %v1516
    %2129 = vmatprep.subr.bf16.mxu0 %v1525
    %2130 = vmatpush1.bf16.msra.mxu0 %v1524
    %2131 = vmatprep.subr.bf16.mxu0 %v1533
    %2132 = vmatpush1.bf16.msra.mxu0 %v1532
    %2133 = vmatprep.subr.bf16.mxu0 %v1541
    %2134 = vmatpush1.bf16.msra.mxu0 %v1540
    %2135 = vmatprep.subr.bf16.mxu0 %v1549
    %2136 = vmatpush1.bf16.msra.mxu0 %v1548
    %2137 = vmatprep.subr.bf16.mxu0 %v1557
    %2138 = vmatpush1.bf16.msra.mxu0 %v1556
    %2139 = vmatprep.subr.bf16.mxu0 %v1565
    %2140 = vmatpush1.bf16.msra.mxu0 %v1564
    %2141 = vmatprep.subr.bf16.mxu0 %v1573
    %2142 = vmatpush1.bf16.msra.mxu0 %v1572
    %2143 = vmatprep.subr.bf16.mxu0 %v1581
    %2144 = vmatpush1.bf16.msra.mxu0 %v1580
    %2145 = vmatprep.subr.bf16.mxu0 %v1589
    %2146 = vmatpush1.bf16.msra.mxu0 %v1588
    %2147 = vmatprep.subr.bf16.mxu0 %v1597
    %2148 = vmatpush1.bf16.msra.mxu0 %v1596
    %2149 = vmatprep.subr.bf16.mxu0 %v1605
    %2150 = vmatpush1.bf16.msra.mxu0 %v1604
    %2151 = vmatprep.subr.bf16.mxu0 %v1613
    %2152 = vmatpush1.bf16.msra.mxu0 %v1612
    %2153 = vmatprep.subr.bf16.mxu0 %v1621
    %2154 = vmatpush1.bf16.msra.mxu0 %v1620
    %2155 = vmatprep.subr.bf16.mxu0 %v1629
    %2156 = vmatpush1.bf16.msra.mxu0 %v1628
    %2157 = vmatprep.subr.bf16.mxu0 %v1637
    %2158 = vmatpush1.bf16.msra.mxu0 %v1636
    %2159 = vmatprep.mubr.bf16.mxu0 %v2085
    %2160 = vmatmul.mubr.bf16.gmra.mrb[0].mxu0 %v2084
    %v2161 = vpop.f32.mrb[0].mxu0
    %v2162 = vadd.f32 0.0, %v2161
    %v2163 = vpop.f32.mrb[0].mxu0
    %v2164 = vadd.f32 0.0, %v2163
    %v2165 = vpop.f32.mrb[0].mxu0
    %v2166 = vpop.f32.mrb[0].mxu0
    %2167 = vdwg.mxu0
    %2168 = vmatprep.subr.bf16.mxu0 %v1519
    %2169 = vmatpush1.bf16.msra.mxu0 %v1518
    %2170 = vmatprep.subr.bf16.mxu0 %v1527
    %2171 = vmatpush1.bf16.msra.mxu0 %v1526
    %2172 = vmatprep.subr.bf16.mxu0 %v1535
    %2173 = vmatpush1.bf16.msra.mxu0 %v1534
    %2174 = vmatprep.subr.bf16.mxu0 %v1543
    %2175 = vmatpush1.bf16.msra.mxu0 %v1542
    %2176 = vmatprep.subr.bf16.mxu0 %v1551
    %2177 = vmatpush1.bf16.msra.mxu0 %v1550
    %2178 = vmatprep.subr.bf16.mxu0 %v1559
    %2179 = vmatpush1.bf16.msra.mxu0 %v1558
    %2180 = vmatprep.subr.bf16.mxu0 %v1567
    %2181 = vmatpush1.bf16.msra.mxu0 %v1566
    %2182 = vmatprep.subr.bf16.mxu0 %v1575
    %2183 = vmatpush1.bf16.msra.mxu0 %v1574
    %2184 = vmatprep.subr.bf16.mxu0 %v1583
    %2185 = vmatpush1.bf16.msra.mxu0 %v1582
    %2186 = vmatprep.subr.bf16.mxu0 %v1591
    %2187 = vmatpush1.bf16.msra.mxu0 %v1590
    %2188 = vmatprep.subr.bf16.mxu0 %v1599
    %2189 = vmatpush1.bf16.msra.mxu0 %v1598
    %2190 = vmatprep.subr.bf16.mxu0 %v1607
    %2191 = vmatpush1.bf16.msra.mxu0 %v1606
    %2192 = vmatprep.subr.bf16.mxu0 %v1615
    %2193 = vmatpush1.bf16.msra.mxu0 %v1614
    %2194 = vmatprep.subr.bf16.mxu0 %v1623
    %2195 = vmatpush1.bf16.msra.mxu0 %v1622
    %2196 = vmatprep.subr.bf16.mxu0 %v1631
    %2197 = vmatpush1.bf16.msra.mxu0 %v1630
    %2198 = vmatprep.subr.bf16.mxu0 %v1639
    %2199 = vmatpush1.bf16.msra.mxu0 %v1638
    %2200 = vmatprep.mubr.bf16.mxu0 %v2085
    %2201 = vmatmul.mubr.bf16.gmra.mrb[0].mxu0 %v2084
    %v2202 = vpop.f32.mrb[0].mxu0
    %v2203 = vadd.f32 0.0, %v2202
    %v2204 = vpop.f32.mrb[0].mxu0
    %v2205 = vadd.f32 0.0, %v2204
    %v2206 = vpop.f32.mrb[0].mxu0
    %v2207 = vpop.f32.mrb[0].mxu0
    %2208 = vdwg.mxu0
    %2209 = vmatprep.subr.bf16.mxu0 %v1521
    %2210 = vmatpush1.bf16.msra.mxu0 %v1520
    %2211 = vmatprep.subr.bf16.mxu0 %v1529
    %2212 = vmatpush1.bf16.msra.mxu0 %v1528
    %2213 = vmatprep.subr.bf16.mxu0 %v1537
    %2214 = vmatpush1.bf16.msra.mxu0 %v1536
    %2215 = vmatprep.subr.bf16.mxu0 %v1545
    %2216 = vmatpush1.bf16.msra.mxu0 %v1544
    %2217 = vmatprep.subr.bf16.mxu0 %v1553
    %2218 = vmatpush1.bf16.msra.mxu0 %v1552
    %2219 = vmatprep.subr.bf16.mxu0 %v1561
    %2220 = vmatpush1.bf16.msra.mxu0 %v1560
    %2221 = vmatprep.subr.bf16.mxu0 %v1569
    %2222 = vmatpush1.bf16.msra.mxu0 %v1568
    %2223 = vmatprep.subr.bf16.mxu0 %v1577
    %2224 = vmatpush1.bf16.msra.mxu0 %v1576
    %2225 = vmatprep.subr.bf16.mxu0 %v1585
    %2226 = vmatpush1.bf16.msra.mxu0 %v1584
    %2227 = vmatprep.subr.bf16.mxu0 %v1593
    %2228 = vmatpush1.bf16.msra.mxu0 %v1592
    %2229 = vmatprep.subr.bf16.mxu0 %v1601
    %2230 = vmatpush1.bf16.msra.mxu0 %v1600
    %2231 = vmatprep.subr.bf16.mxu0 %v1609
    %2232 = vmatpush1.bf16.msra.mxu0 %v1608
    %2233 = vmatprep.subr.bf16.mxu0 %v1617
    %2234 = vmatpush1.bf16.msra.mxu0 %v1616
    %2235 = vmatprep.subr.bf16.mxu0 %v1625
    %2236 = vmatpush1.bf16.msra.mxu0 %v1624
    %2237 = vmatprep.subr.bf16.mxu0 %v1633
    %2238 = vmatpush1.bf16.msra.mxu0 %v1632
    %2239 = vmatprep.subr.bf16.mxu0 %v1641
    %2240 = vmatpush1.bf16.msra.mxu0 %v1640
    %2241 = vmatprep.mubr.bf16.mxu0 %v2085
    %2242 = vmatmul.mubr.bf16.gmra.mrb[0].mxu0 %v2084
    %v2243 = vpop.f32.mrb[0].mxu0
    %v2244 = vadd.f32 0.0, %v2243
    %v2245 = vpop.f32.mrb[0].mxu0
    %v2246 = vadd.f32 0.0, %v2245
    %v2247 = vpop.f32.mrb[0].mxu0
    %v2248 = vpop.f32.mrb[0].mxu0
    %2249 = vdwg.mxu0
    %v2250 = vadd.f32 %v1027, %v2121
    %v2251 = vadd.f32 %v1029, %v2123
    %v2252 = vadd.f32 %v1100, %v2162
    %v2253 = vadd.f32 %v1102, %v2164
    %v2254 = vadd.f32 %v1173, %v2203
    %v2255 = vadd.f32 %v1175, %v2205
    %v2256 = vadd.f32 %v1246, %v2244
    %v2257 = vadd.f32 %v1248, %v2246
    %v2258 = vxor.u32 %v2250, 2147483648
    %v2259 = vxor.u32 %v2251, 2147483648
    %v2260 = vmul.f32 %v2258, 1.442695
    %v2261 = vpow.pop %v2260
    %v2262 = vmul.f32 %v2259, 1.442695
    %v2263 = vpow.pop %v2262
    %v2264 = vadd.f32 %v2261, 1.0
    %v2265 = vadd.f32 %v2263, 1.0
    %v2266 = vrcp.pop %v2264
    %v2267 = vmul.f32 1.0, %v2266
    %v2268 = vrcp.pop %v2265
    %v2269 = vmul.f32 1.0, %v2268
    %v2270 = vxor.u32 %v2252, 2147483648
    %v2271 = vxor.u32 %v2253, 2147483648
    %v2272 = vmul.f32 %v2270, 1.442695
    %v2273 = vpow.pop %v2272
    %v2274 = vmul.f32 %v2271, 1.442695
    %v2275 = vpow.pop %v2274
    %v2276 = vadd.f32 %v2273, 1.0
    %v2277 = vadd.f32 %v2275, 1.0
    %v2278 = vrcp.pop %v2276
    %v2279 = vmul.f32 1.0, %v2278
    %v2280 = vrcp.pop %v2277
    %v2281 = vmul.f32 1.0, %v2280
    %v2282 = vtanh.pop %v2254
    %v2283 = vtanh.pop %v2255
    %v2284 = vxor.u32 %v2256, 2147483648
    %v2285 = vxor.u32 %v2257, 2147483648
    %v2286 = vmul.f32 %v2284, 1.442695
    %v2287 = vpow.pop %v2286
    %v2288 = vmul.f32 %v2285, 1.442695
    %v2289 = vpow.pop %v2288
    %v2290 = vadd.f32 %v2287, 1.0
    %v2291 = vadd.f32 %v2289, 1.0
    %v2292 = vrcp.pop %v2290
    %v2293 = vmul.f32 1.0, %v2292
    %v2294 = vrcp.pop %v2291
    %v2295 = vmul.f32 1.0, %v2294
    %v2296 = vmul.f32 %v2279, %v2078
    %v2297 = vmul.f32 %v2281, %v2079
    %v2298 = vmul.f32 %v2267, %v2282
    %v2299 = vmul.f32 %v2269, %v2283
    %v2300 = vadd.f32 %v2296, %v2298
    %v2301 = vadd.f32 %v2297, %v2299
    %v2302 = vtanh.pop %v2300
    %v2303 = vtanh.pop %v2301
    %v2304 = vmul.f32 %v2293, %v2302
    %v2305 = vmul.f32 %v2295, %v2303
    %v2306 = vpack.c.bf16 %v2304, %v2304
    %v2307 = vpack.c.bf16 %v2305, %v2305
    %2308 = vmatprep.subr.bf16.mxu0 %v1515
    %2309 = vmatpush1.bf16.msra.mxu0 %v1514
    %2310 = vmatprep.subr.bf16.mxu0 %v1523
    %2311 = vmatpush1.bf16.msra.mxu0 %v1522
    %2312 = vmatprep.subr.bf16.mxu0 %v1531
    %2313 = vmatpush1.bf16.msra.mxu0 %v1530
    %2314 = vmatprep.subr.bf16.mxu0 %v1539
    %2315 = vmatpush1.bf16.msra.mxu0 %v1538
    %2316 = vmatprep.subr.bf16.mxu0 %v1547
    %2317 = vmatpush1.bf16.msra.mxu0 %v1546
    %2318 = vmatprep.subr.bf16.mxu0 %v1555
    %2319 = vmatpush1.bf16.msra.mxu0 %v1554
    %2320 = vmatprep.subr.bf16.mxu0 %v1563
    %2321 = vmatpush1.bf16.msra.mxu0 %v1562
    %2322 = vmatprep.subr.bf16.mxu0 %v1571
    %2323 = vmatpush1.bf16.msra.mxu0 %v1570
    %2324 = vmatprep.subr.bf16.mxu0 %v1579
    %2325 = vmatpush1.bf16.msra.mxu0 %v1578
    %2326 = vmatprep.subr.bf16.mxu0 %v1587
    %2327 = vmatpush1.bf16.msra.mxu0 %v1586
    %2328 = vmatprep.subr.bf16.mxu0 %v1595
    %2329 = vmatpush1.bf16.msra.mxu0 %v1594
    %2330 = vmatprep.subr.bf16.mxu0 %v1603
    %2331 = vmatpush1.bf16.msra.mxu0 %v1602
    %2332 = vmatprep.subr.bf16.mxu0 %v1611
    %2333 = vmatpush1.bf16.msra.mxu0 %v1610
    %2334 = vmatprep.subr.bf16.mxu0 %v1619
    %2335 = vmatpush1.bf16.msra.mxu0 %v1618
    %2336 = vmatprep.subr.bf16.mxu0 %v1627
    %2337 = vmatpush1.bf16.msra.mxu0 %v1626
    %2338 = vmatprep.subr.bf16.mxu0 %v1635
    %2339 = vmatpush1.bf16.msra.mxu0 %v1634
    %2340 = vmatprep.mubr.bf16.mxu0 %v2307
    %2341 = vmatmul.mubr.bf16.gmra.mrb[0].mxu0 %v2306
    %v2342 = vpop.f32.mrb[0].mxu0
    %v2343 = vadd.f32 0.0, %v2342
    %v2344 = vpop.f32.mrb[0].mxu0
    %v2345 = vadd.f32 0.0, %v2344
    %v2346 = vpop.f32.mrb[0].mxu0
    %v2347 = vpop.f32.mrb[0].mxu0
    %2348 = vdwg.mxu0
    %2349 = vmatprep.subr.bf16.mxu0 %v1517
    %2350 = vmatpush1.bf16.msra.mxu0 %v1516
    %2351 = vmatprep.subr.bf16.mxu0 %v1525
    %2352 = vmatpush1.bf16.msra.mxu0 %v1524
    %2353 = vmatprep.subr.bf16.mxu0 %v1533
    %2354 = vmatpush1.bf16.msra.mxu0 %v1532
    %2355 = vmatprep.subr.bf16.mxu0 %v1541
    %2356 = vmatpush1.bf16.msra.mxu0 %v1540
    %2357 = vmatprep.subr.bf16.mxu0 %v1549
    %2358 = vmatpush1.bf16.msra.mxu0 %v1548
    %2359 = vmatprep.subr.bf16.mxu0 %v1557
    %2360 = vmatpush1.bf16.msra.mxu0 %v1556
    %2361 = vmatprep.subr.bf16.mxu0 %v1565
    %2362 = vmatpush1.bf16.msra.mxu0 %v1564
    %2363 = vmatprep.subr.bf16.mxu0 %v1573
    %2364 = vmatpush1.bf16.msra.mxu0 %v1572
    %2365 = vmatprep.subr.bf16.mxu0 %v1581
    %2366 = vmatpush1.bf16.msra.mxu0 %v1580
    %2367 = vmatprep.subr.bf16.mxu0 %v1589
    %2368 = vmatpush1.bf16.msra.mxu0 %v1588
    %2369 = vmatprep.subr.bf16.mxu0 %v1597
    %2370 = vmatpush1.bf16.msra.mxu0 %v1596
    %2371 = vmatprep.subr.bf16.mxu0 %v1605
    %2372 = vmatpush1.bf16.msra.mxu0 %v1604
    %2373 = vmatprep.subr.bf16.mxu0 %v1613
    %2374 = vmatpush1.bf16.msra.mxu0 %v1612
    %2375 = vmatprep.subr.bf16.mxu0 %v1621
    %2376 = vmatpush1.bf16.msra.mxu0 %v1620
    %2377 = vmatprep.subr.bf16.mxu0 %v1629
    %2378 = vmatpush1.bf16.msra.mxu0 %v1628
    %2379 = vmatprep.subr.bf16.mxu0 %v1637
    %2380 = vmatpush1.bf16.msra.mxu0 %v1636
    %2381 = vmatprep.mubr.bf16.mxu0 %v2307
    %2382 = vmatmul.mubr.bf16.gmra.mrb[0].mxu0 %v2306
    %v2383 = vpop.f32.mrb[0].mxu0
    %v2384 = vadd.f32 0.0, %v2383
    %v2385 = vpop.f32.mrb[0].mxu0
    %v2386 = vadd.f32 0.0, %v2385
    %v2387 = vpop.f32.mrb[0].mxu0
    %v2388 = vpop.f32.mrb[0].mxu0
    %2389 = vdwg.mxu0
    %2390 = vmatprep.subr.bf16.mxu0 %v1519
    %2391 = vmatpush1.bf16.msra.mxu0 %v1518
    %2392 = vmatprep.subr.bf16.mxu0 %v1527
    %2393 = vmatpush1.bf16.msra.mxu0 %v1526
    %2394 = vmatprep.subr.bf16.mxu0 %v1535
    %2395 = vmatpush1.bf16.msra.mxu0 %v1534
    %2396 = vmatprep.subr.bf16.mxu0 %v1543
    %2397 = vmatpush1.bf16.msra.mxu0 %v1542
    %2398 = vmatprep.subr.bf16.mxu0 %v1551
    %2399 = vmatpush1.bf16.msra.mxu0 %v1550
    %2400 = vmatprep.subr.bf16.mxu0 %v1559
    %2401 = vmatpush1.bf16.msra.mxu0 %v1558
    %2402 = vmatprep.subr.bf16.mxu0 %v1567
    %2403 = vmatpush1.bf16.msra.mxu0 %v1566
    %2404 = vmatprep.subr.bf16.mxu0 %v1575
    %2405 = vmatpush1.bf16.msra.mxu0 %v1574
    %2406 = vmatprep.subr.bf16.mxu0 %v1583
    %2407 = vmatpush1.bf16.msra.mxu0 %v1582
    %2408 = vmatprep.subr.bf16.mxu0 %v1591
    %2409 = vmatpush1.bf16.msra.mxu0 %v1590
    %2410 = vmatprep.subr.bf16.mxu0 %v1599
    %2411 = vmatpush1.bf16.msra.mxu0 %v1598
    %2412 = vmatprep.subr.bf16.mxu0 %v1607
    %2413 = vmatpush1.bf16.msra.mxu0 %v1606
    %2414 = vmatprep.subr.bf16.mxu0 %v1615
    %2415 = vmatpush1.bf16.msra.mxu0 %v1614
    %2416 = vmatprep.subr.bf16.mxu0 %v1623
    %2417 = vmatpush1.bf16.msra.mxu0 %v1622
    %2418 = vmatprep.subr.bf16.mxu0 %v1631
    %2419 = vmatpush1.bf16.msra.mxu0 %v1630
    %2420 = vmatprep.subr.bf16.mxu0 %v1639
    %2421 = vmatpush1.bf16.msra.mxu0 %v1638
    %2422 = vmatprep.mubr.bf16.mxu0 %v2307
    %2423 = vmatmul.mubr.bf16.gmra.mrb[0].mxu0 %v2306
    %v2424 = vpop.f32.mrb[0].mxu0
    %v2425 = vadd.f32 0.0, %v2424
    %v2426 = vpop.f32.mrb[0].mxu0
    %v2427 = vadd.f32 0.0, %v2426
    %v2428 = vpop.f32.mrb[0].mxu0
    %v2429 = vpop.f32.mrb[0].mxu0
    %2430 = vdwg.mxu0
    %2431 = vmatprep.subr.bf16.mxu0 %v1521
    %2432 = vmatpush1.bf16.msra.mxu0 %v1520
    %2433 = vmatprep.subr.bf16.mxu0 %v1529
    %2434 = vmatpush1.bf16.msra.mxu0 %v1528
    %2435 = vmatprep.subr.bf16.mxu0 %v1537
    %2436 = vmatpush1.bf16.msra.mxu0 %v1536
    %2437 = vmatprep.subr.bf16.mxu0 %v1545
    %2438 = vmatpush1.bf16.msra.mxu0 %v1544
    %2439 = vmatprep.subr.bf16.mxu0 %v1553
    %2440 = vmatpush1.bf16.msra.mxu0 %v1552
    %2441 = vmatprep.subr.bf16.mxu0 %v1561
    %2442 = vmatpush1.bf16.msra.mxu0 %v1560
    %2443 = vmatprep.subr.bf16.mxu0 %v1569
    %2444 = vmatpush1.bf16.msra.mxu0 %v1568
    %2445 = vmatprep.subr.bf16.mxu0 %v1577
    %2446 = vmatpush1.bf16.msra.mxu0 %v1576
    %2447 = vmatprep.subr.bf16.mxu0 %v1585
    %2448 = vmatpush1.bf16.msra.mxu0 %v1584
    %2449 = vmatprep.subr.bf16.mxu0 %v1593
    %2450 = vmatpush1.bf16.msra.mxu0 %v1592
    %2451 = vmatprep.subr.bf16.mxu0 %v1601
    %2452 = vmatpush1.bf16.msra.mxu0 %v1600
    %2453 = vmatprep.subr.bf16.mxu0 %v1609
    %2454 = vmatpush1.bf16.msra.mxu0 %v1608
    %2455 = vmatprep.subr.bf16.mxu0 %v1617
    %2456 = vmatpush1.bf16.msra.mxu0 %v1616
    %2457 = vmatprep.subr.bf16.mxu0 %v1625
    %2458 = vmatpush1.bf16.msra.mxu0 %v1624
    %2459 = vmatprep.subr.bf16.mxu0 %v1633
    %2460 = vmatpush1.bf16.msra.mxu0 %v1632
    %2461 = vmatprep.subr.bf16.mxu0 %v1641
    %2462 = vmatpush1.bf16.msra.mxu0 %v1640
    %2463 = vmatprep.mubr.bf16.mxu0 %v2307
    %2464 = vmatmul.mubr.bf16.gmra.mrb[0].mxu0 %v2306
    %v2465 = vpop.f32.mrb[0].mxu0
    %v2466 = vadd.f32 0.0, %v2465
    %v2467 = vpop.f32.mrb[0].mxu0
    %v2468 = vadd.f32 0.0, %v2467
    %v2469 = vpop.f32.mrb[0].mxu0
    %v2470 = vpop.f32.mrb[0].mxu0
    %2471 = vdwg.mxu0
    %v2472 = vadd.f32 %v1031, %v2343
    %v2473 = vadd.f32 %v1033, %v2345
    %v2474 = vadd.f32 %v1104, %v2384
    %v2475 = vadd.f32 %v1106, %v2386
    %v2476 = vadd.f32 %v1177, %v2425
    %v2477 = vadd.f32 %v1179, %v2427
    %v2478 = vadd.f32 %v1250, %v2466
    %v2479 = vadd.f32 %v1252, %v2468
    %v2480 = vxor.u32 %v2472, 2147483648
    %v2481 = vxor.u32 %v2473, 2147483648
    %v2482 = vmul.f32 %v2480, 1.442695
    %v2483 = vpow.pop %v2482
    %v2484 = vmul.f32 %v2481, 1.442695
    %v2485 = vpow.pop %v2484
    %v2486 = vadd.f32 %v2483, 1.0
    %v2487 = vadd.f32 %v2485, 1.0
    %v2488 = vrcp.pop %v2486
    %v2489 = vmul.f32 1.0, %v2488
    %v2490 = vrcp.pop %v2487
    %v2491 = vmul.f32 1.0, %v2490
    %v2492 = vxor.u32 %v2474, 2147483648
    %v2493 = vxor.u32 %v2475, 2147483648
    %v2494 = vmul.f32 %v2492, 1.442695
    %v2495 = vpow.pop %v2494
    %v2496 = vmul.f32 %v2493, 1.442695
    %v2497 = vpow.pop %v2496
    %v2498 = vadd.f32 %v2495, 1.0
    %v2499 = vadd.f32 %v2497, 1.0
    %v2500 = vrcp.pop %v2498
    %v2501 = vmul.f32 1.0, %v2500
    %v2502 = vrcp.pop %v2499
    %v2503 = vmul.f32 1.0, %v2502
    %v2504 = vtanh.pop %v2476
    %v2505 = vtanh.pop %v2477
    %v2506 = vxor.u32 %v2478, 2147483648
    %v2507 = vxor.u32 %v2479, 2147483648
    %v2508 = vmul.f32 %v2506, 1.442695
    %v2509 = vpow.pop %v2508
    %v2510 = vmul.f32 %v2507, 1.442695
    %v2511 = vpow.pop %v2510
    %v2512 = vadd.f32 %v2509, 1.0
    %v2513 = vadd.f32 %v2511, 1.0
    %v2514 = vrcp.pop %v2512
    %v2515 = vmul.f32 1.0, %v2514
    %v2516 = vrcp.pop %v2513
    %v2517 = vmul.f32 1.0, %v2516
    %v2518 = vmul.f32 %v2501, %v2300
    %v2519 = vmul.f32 %v2503, %v2301
    %v2520 = vmul.f32 %v2489, %v2504
    %v2521 = vmul.f32 %v2491, %v2505
    %v2522 = vadd.f32 %v2518, %v2520
    %v2523 = vadd.f32 %v2519, %v2521
    %v2524 = vtanh.pop %v2522
    %v2525 = vtanh.pop %v2523
    %v2526 = vmul.f32 %v2515, %v2524
    %v2527 = vmul.f32 %v2517, %v2525
    %v2528 = vpack.c.bf16 %v2526, %v2526
    %v2529 = vpack.c.bf16 %v2527, %v2527
    %2530 = vmatprep.subr.bf16.mxu0 %v1515
    %2531 = vmatpush1.bf16.msra.mxu0 %v1514
    %2532 = vmatprep.subr.bf16.mxu0 %v1523
    %2533 = vmatpush1.bf16.msra.mxu0 %v1522
    %2534 = vmatprep.subr.bf16.mxu0 %v1531
    %2535 = vmatpush1.bf16.msra.mxu0 %v1530
    %2536 = vmatprep.subr.bf16.mxu0 %v1539
    %2537 = vmatpush1.bf16.msra.mxu0 %v1538
    %2538 = vmatprep.subr.bf16.mxu0 %v1547
    %2539 = vmatpush1.bf16.msra.mxu0 %v1546
    %2540 = vmatprep.subr.bf16.mxu0 %v1555
    %2541 = vmatpush1.bf16.msra.mxu0 %v1554
    %2542 = vmatprep.subr.bf16.mxu0 %v1563
    %2543 = vmatpush1.bf16.msra.mxu0 %v1562
    %2544 = vmatprep.subr.bf16.mxu0 %v1571
    %2545 = vmatpush1.bf16.msra.mxu0 %v1570
    %2546 = vmatprep.subr.bf16.mxu0 %v1579
    %2547 = vmatpush1.bf16.msra.mxu0 %v1578
    %2548 = vmatprep.subr.bf16.mxu0 %v1587
    %2549 = vmatpush1.bf16.msra.mxu0 %v1586
    %2550 = vmatprep.subr.bf16.mxu0 %v1595
    %2551 = vmatpush1.bf16.msra.mxu0 %v1594
    %2552 = vmatprep.subr.bf16.mxu0 %v1603
    %2553 = vmatpush1.bf16.msra.mxu0 %v1602
    %2554 = vmatprep.subr.bf16.mxu0 %v1611
    %2555 = vmatpush1.bf16.msra.mxu0 %v1610
    %2556 = vmatprep.subr.bf16.mxu0 %v1619
    %2557 = vmatpush1.bf16.msra.mxu0 %v1618
    %2558 = vmatprep.subr.bf16.mxu0 %v1627
    %2559 = vmatpush1.bf16.msra.mxu0 %v1626
    %2560 = vmatprep.subr.bf16.mxu0 %v1635
    %2561 = vmatpush1.bf16.msra.mxu0 %v1634
    %2562 = vmatprep.mubr.bf16.mxu0 %v2529
    %2563 = vmatmul.mubr.bf16.gmra.mrb[0].mxu0 %v2528
    %v2564 = vpop.f32.mrb[0].mxu0
    %v2565 = vadd.f32 0.0, %v2564
    %v2566 = vpop.f32.mrb[0].mxu0
    %v2567 = vadd.f32 0.0, %v2566
    %v2568 = vpop.f32.mrb[0].mxu0
    %v2569 = vpop.f32.mrb[0].mxu0
    %2570 = vdwg.mxu0
    %2571 = vmatprep.subr.bf16.mxu0 %v1517
    %2572 = vmatpush1.bf16.msra.mxu0 %v1516
    %2573 = vmatprep.subr.bf16.mxu0 %v1525
    %2574 = vmatpush1.bf16.msra.mxu0 %v1524
    %2575 = vmatprep.subr.bf16.mxu0 %v1533
    %2576 = vmatpush1.bf16.msra.mxu0 %v1532
    %2577 = vmatprep.subr.bf16.mxu0 %v1541
    %2578 = vmatpush1.bf16.msra.mxu0 %v1540
    %2579 = vmatprep.subr.bf16.mxu0 %v1549
    %2580 = vmatpush1.bf16.msra.mxu0 %v1548
    %2581 = vmatprep.subr.bf16.mxu0 %v1557
    %2582 = vmatpush1.bf16.msra.mxu0 %v1556
    %2583 = vmatprep.subr.bf16.mxu0 %v1565
    %2584 = vmatpush1.bf16.msra.mxu0 %v1564
    %2585 = vmatprep.subr.bf16.mxu0 %v1573
    %2586 = vmatpush1.bf16.msra.mxu0 %v1572
    %2587 = vmatprep.subr.bf16.mxu0 %v1581
    %2588 = vmatpush1.bf16.msra.mxu0 %v1580
    %2589 = vmatprep.subr.bf16.mxu0 %v1589
    %2590 = vmatpush1.bf16.msra.mxu0 %v1588
    %2591 = vmatprep.subr.bf16.mxu0 %v1597
    %2592 = vmatpush1.bf16.msra.mxu0 %v1596
    %2593 = vmatprep.subr.bf16.mxu0 %v1605
    %2594 = vmatpush1.bf16.msra.mxu0 %v1604
    %2595 = vmatprep.subr.bf16.mxu0 %v1613
    %2596 = vmatpush1.bf16.msra.mxu0 %v1612
    %2597 = vmatprep.subr.bf16.mxu0 %v1621
    %2598 = vmatpush1.bf16.msra.mxu0 %v1620
    %2599 = vmatprep.subr.bf16.mxu0 %v1629
    %2600 = vmatpush1.bf16.msra.mxu0 %v1628
    %2601 = vmatprep.subr.bf16.mxu0 %v1637
    %2602 = vmatpush1.bf16.msra.mxu0 %v1636
    %2603 = vmatprep.mubr.bf16.mxu0 %v2529
    %2604 = vmatmul.mubr.bf16.gmra.mrb[0].mxu0 %v2528
    %v2605 = vpop.f32.mrb[0].mxu0
    %v2606 = vadd.f32 0.0, %v2605
    %v2607 = vpop.f32.mrb[0].mxu0
    %v2608 = vadd.f32 0.0, %v2607
    %v2609 = vpop.f32.mrb[0].mxu0
    %v2610 = vpop.f32.mrb[0].mxu0
    %2611 = vdwg.mxu0
    %2612 = vmatprep.subr.bf16.mxu0 %v1519
    %2613 = vmatpush1.bf16.msra.mxu0 %v1518
    %2614 = vmatprep.subr.bf16.mxu0 %v1527
    %2615 = vmatpush1.bf16.msra.mxu0 %v1526
    %2616 = vmatprep.subr.bf16.mxu0 %v1535
    %2617 = vmatpush1.bf16.msra.mxu0 %v1534
    %2618 = vmatprep.subr.bf16.mxu0 %v1543
    %2619 = vmatpush1.bf16.msra.mxu0 %v1542
    %2620 = vmatprep.subr.bf16.mxu0 %v1551
    %2621 = vmatpush1.bf16.msra.mxu0 %v1550
    %2622 = vmatprep.subr.bf16.mxu0 %v1559
    %2623 = vmatpush1.bf16.msra.mxu0 %v1558
    %2624 = vmatprep.subr.bf16.mxu0 %v1567
    %2625 = vmatpush1.bf16.msra.mxu0 %v1566
    %2626 = vmatprep.subr.bf16.mxu0 %v1575
    %2627 = vmatpush1.bf16.msra.mxu0 %v1574
    %2628 = vmatprep.subr.bf16.mxu0 %v1583
    %2629 = vmatpush1.bf16.msra.mxu0 %v1582
    %2630 = vmatprep.subr.bf16.mxu0 %v1591
    %2631 = vmatpush1.bf16.msra.mxu0 %v1590
    %2632 = vmatprep.subr.bf16.mxu0 %v1599
    %2633 = vmatpush1.bf16.msra.mxu0 %v1598
    %2634 = vmatprep.subr.bf16.mxu0 %v1607
    %2635 = vmatpush1.bf16.msra.mxu0 %v1606
    %2636 = vmatprep.subr.bf16.mxu0 %v1615
    %2637 = vmatpush1.bf16.msra.mxu0 %v1614
    %2638 = vmatprep.subr.bf16.mxu0 %v1623
    %2639 = vmatpush1.bf16.msra.mxu0 %v1622
    %2640 = vmatprep.subr.bf16.mxu0 %v1631
    %2641 = vmatpush1.bf16.msra.mxu0 %v1630
    %2642 = vmatprep.subr.bf16.mxu0 %v1639
    %2643 = vmatpush1.bf16.msra.mxu0 %v1638
    %2644 = vmatprep.mubr.bf16.mxu0 %v2529
    %2645 = vmatmul.mubr.bf16.gmra.mrb[0].mxu0 %v2528
    %v2646 = vpop.f32.mrb[0].mxu0
    %v2647 = vadd.f32 0.0, %v2646
    %v2648 = vpop.f32.mrb[0].mxu0
    %v2649 = vadd.f32 0.0, %v2648
    %v2650 = vpop.f32.mrb[0].mxu0
    %v2651 = vpop.f32.mrb[0].mxu0
    %2652 = vdwg.mxu0
    %2653 = vmatprep.subr.bf16.mxu0 %v1521
    %2654 = vmatpush1.bf16.msra.mxu0 %v1520
    %2655 = vmatprep.subr.bf16.mxu0 %v1529
    %2656 = vmatpush1.bf16.msra.mxu0 %v1528
    %2657 = vmatprep.subr.bf16.mxu0 %v1537
    %2658 = vmatpush1.bf16.msra.mxu0 %v1536
    %2659 = vmatprep.subr.bf16.mxu0 %v1545
    %2660 = vmatpush1.bf16.msra.mxu0 %v1544
    %2661 = vmatprep.subr.bf16.mxu0 %v1553
    %2662 = vmatpush1.bf16.msra.mxu0 %v1552
    %2663 = vmatprep.subr.bf16.mxu0 %v1561
    %2664 = vmatpush1.bf16.msra.mxu0 %v1560
    %2665 = vmatprep.subr.bf16.mxu0 %v1569
    %2666 = vmatpush1.bf16.msra.mxu0 %v1568
    %2667 = vmatprep.subr.bf16.mxu0 %v1577
    %2668 = vmatpush1.bf16.msra.mxu0 %v1576
    %2669 = vmatprep.subr.bf16.mxu0 %v1585
    %2670 = vmatpush1.bf16.msra.mxu0 %v1584
    %2671 = vmatprep.subr.bf16.mxu0 %v1593
    %2672 = vmatpush1.bf16.msra.mxu0 %v1592
    %2673 = vmatprep.subr.bf16.mxu0 %v1601
    %2674 = vmatpush1.bf16.msra.mxu0 %v1600
    %2675 = vmatprep.subr.bf16.mxu0 %v1609
    %2676 = vmatpush1.bf16.msra.mxu0 %v1608
    %2677 = vmatprep.subr.bf16.mxu0 %v1617
    %2678 = vmatpush1.bf16.msra.mxu0 %v1616
    %2679 = vmatprep.subr.bf16.mxu0 %v1625
    %2680 = vmatpush1.bf16.msra.mxu0 %v1624
    %2681 = vmatprep.subr.bf16.mxu0 %v1633
    %2682 = vmatpush1.bf16.msra.mxu0 %v1632
    %2683 = vmatprep.subr.bf16.mxu0 %v1641
    %2684 = vmatpush1.bf16.msra.mxu0 %v1640
    %2685 = vmatprep.mubr.bf16.mxu0 %v2529
    %2686 = vmatmul.mubr.bf16.gmra.mrb[0].mxu0 %v2528
    %v2687 = vpop.f32.mrb[0].mxu0
    %v2688 = vadd.f32 0.0, %v2687
    %v2689 = vpop.f32.mrb[0].mxu0
    %v2690 = vadd.f32 0.0, %v2689
    %v2691 = vpop.f32.mrb[0].mxu0
    %v2692 = vpop.f32.mrb[0].mxu0
    %2693 = vdwg.mxu0
    %v2694 = vadd.f32 %v1037, %v2565
    %v2695 = vadd.f32 %v1039, %v2567
    %v2696 = vadd.f32 %v1110, %v2606
    %v2697 = vadd.f32 %v1112, %v2608
    %v2698 = vadd.f32 %v1183, %v2647
    %v2699 = vadd.f32 %v1185, %v2649
    %v2700 = vadd.f32 %v1256, %v2688
    %v2701 = vadd.f32 %v1258, %v2690
    %v2702 = vxor.u32 %v2694, 2147483648
    %v2703 = vxor.u32 %v2695, 2147483648
    %v2704 = vmul.f32 %v2702, 1.442695
    %v2705 = vpow.pop %v2704
    %v2706 = vmul.f32 %v2703, 1.442695
    %v2707 = vpow.pop %v2706
    %v2708 = vadd.f32 %v2705, 1.0
    %v2709 = vadd.f32 %v2707, 1.0
    %v2710 = vrcp.pop %v2708
    %v2711 = vmul.f32 1.0, %v2710
    %v2712 = vrcp.pop %v2709
    %v2713 = vmul.f32 1.0, %v2712
    %v2714 = vxor.u32 %v2696, 2147483648
    %v2715 = vxor.u32 %v2697, 2147483648
    %v2716 = vmul.f32 %v2714, 1.442695
    %v2717 = vpow.pop %v2716
    %v2718 = vmul.f32 %v2715, 1.442695
    %v2719 = vpow.pop %v2718
    %v2720 = vadd.f32 %v2717, 1.0
    %v2721 = vadd.f32 %v2719, 1.0
    %v2722 = vrcp.pop %v2720
    %v2723 = vmul.f32 1.0, %v2722
    %v2724 = vrcp.pop %v2721
    %v2725 = vmul.f32 1.0, %v2724
    %v2726 = vtanh.pop %v2698
    %v2727 = vtanh.pop %v2699
    %v2728 = vxor.u32 %v2700, 2147483648
    %v2729 = vxor.u32 %v2701, 2147483648
    %v2730 = vmul.f32 %v2728, 1.442695
    %v2731 = vpow.pop %v2730
    %v2732 = vmul.f32 %v2729, 1.442695
    %v2733 = vpow.pop %v2732
    %v2734 = vadd.f32 %v2731, 1.0
    %v2735 = vadd.f32 %v2733, 1.0
    %v2736 = vrcp.pop %v2734
    %v2737 = vmul.f32 1.0, %v2736
    %v2738 = vrcp.pop %v2735
    %v2739 = vmul.f32 1.0, %v2738
    %v2740 = vmul.f32 %v2723, %v2522
    %v2741 = vmul.f32 %v2725, %v2523
    %v2742 = vmul.f32 %v2711, %v2726
    %v2743 = vmul.f32 %v2713, %v2727
    %v2744 = vadd.f32 %v2740, %v2742
    %v2745 = vadd.f32 %v2741, %v2743
    %v2746 = vtanh.pop %v2744
    %v2747 = vtanh.pop %v2745
    %v2748 = vmul.f32 %v2737, %v2746
    %v2749 = vmul.f32 %v2739, %v2747
    %v2750 = vpack.c.bf16 %v2748, %v2748
    %v2751 = vpack.c.bf16 %v2749, %v2749
    %2752 = vmatprep.subr.bf16.mxu0 %v1515
    %2753 = vmatpush1.bf16.msra.mxu0 %v1514
    %2754 = vmatprep.subr.bf16.mxu0 %v1523
    %2755 = vmatpush1.bf16.msra.mxu0 %v1522
    %2756 = vmatprep.subr.bf16.mxu0 %v1531
    %2757 = vmatpush1.bf16.msra.mxu0 %v1530
    %2758 = vmatprep.subr.bf16.mxu0 %v1539
    %2759 = vmatpush1.bf16.msra.mxu0 %v1538
    %2760 = vmatprep.subr.bf16.mxu0 %v1547
    %2761 = vmatpush1.bf16.msra.mxu0 %v1546
    %2762 = vmatprep.subr.bf16.mxu0 %v1555
    %2763 = vmatpush1.bf16.msra.mxu0 %v1554
    %2764 = vmatprep.subr.bf16.mxu0 %v1563
    %2765 = vmatpush1.bf16.msra.mxu0 %v1562
    %2766 = vmatprep.subr.bf16.mxu0 %v1571
    %2767 = vmatpush1.bf16.msra.mxu0 %v1570
    %2768 = vmatprep.subr.bf16.mxu0 %v1579
    %2769 = vmatpush1.bf16.msra.mxu0 %v1578
    %2770 = vmatprep.subr.bf16.mxu0 %v1587
    %2771 = vmatpush1.bf16.msra.mxu0 %v1586
    %2772 = vmatprep.subr.bf16.mxu0 %v1595
    %2773 = vmatpush1.bf16.msra.mxu0 %v1594
    %2774 = vmatprep.subr.bf16.mxu0 %v1603
    %2775 = vmatpush1.bf16.msra.mxu0 %v1602
    %2776 = vmatprep.subr.bf16.mxu0 %v1611
    %2777 = vmatpush1.bf16.msra.mxu0 %v1610
    %2778 = vmatprep.subr.bf16.mxu0 %v1619
    %2779 = vmatpush1.bf16.msra.mxu0 %v1618
    %2780 = vmatprep.subr.bf16.mxu0 %v1627
    %2781 = vmatpush1.bf16.msra.mxu0 %v1626
    %2782 = vmatprep.subr.bf16.mxu0 %v1635
    %2783 = vmatpush1.bf16.msra.mxu0 %v1634
    %2784 = vmatprep.mubr.bf16.mxu0 %v2751
    %2785 = vmatmul.mubr.bf16.gmra.mrb[0].mxu0 %v2750
    %v2786 = vpop.f32.mrb[0].mxu0
    %v2787 = vadd.f32 0.0, %v2786
    %v2788 = vpop.f32.mrb[0].mxu0
    %v2789 = vadd.f32 0.0, %v2788
    %v2790 = vpop.f32.mrb[0].mxu0
    %v2791 = vpop.f32.mrb[0].mxu0
    %2792 = vdwg.mxu0
    %2793 = vmatprep.subr.bf16.mxu0 %v1517
    %2794 = vmatpush1.bf16.msra.mxu0 %v1516
    %2795 = vmatprep.subr.bf16.mxu0 %v1525
    %2796 = vmatpush1.bf16.msra.mxu0 %v1524
    %2797 = vmatprep.subr.bf16.mxu0 %v1533
    %2798 = vmatpush1.bf16.msra.mxu0 %v1532
    %2799 = vmatprep.subr.bf16.mxu0 %v1541
    %2800 = vmatpush1.bf16.msra.mxu0 %v1540
    %2801 = vmatprep.subr.bf16.mxu0 %v1549
    %2802 = vmatpush1.bf16.msra.mxu0 %v1548
    %2803 = vmatprep.subr.bf16.mxu0 %v1557
    %2804 = vmatpush1.bf16.msra.mxu0 %v1556
    %2805 = vmatprep.subr.bf16.mxu0 %v1565
    %2806 = vmatpush1.bf16.msra.mxu0 %v1564
    %2807 = vmatprep.subr.bf16.mxu0 %v1573
    %2808 = vmatpush1.bf16.msra.mxu0 %v1572
    %2809 = vmatprep.subr.bf16.mxu0 %v1581
    %2810 = vmatpush1.bf16.msra.mxu0 %v1580
    %2811 = vmatprep.subr.bf16.mxu0 %v1589
    %2812 = vmatpush1.bf16.msra.mxu0 %v1588
    %2813 = vmatprep.subr.bf16.mxu0 %v1597
    %2814 = vmatpush1.bf16.msra.mxu0 %v1596
    %2815 = vmatprep.subr.bf16.mxu0 %v1605
    %2816 = vmatpush1.bf16.msra.mxu0 %v1604
    %2817 = vmatprep.subr.bf16.mxu0 %v1613
    %2818 = vmatpush1.bf16.msra.mxu0 %v1612
    %2819 = vmatprep.subr.bf16.mxu0 %v1621
    %2820 = vmatpush1.bf16.msra.mxu0 %v1620
    %2821 = vmatprep.subr.bf16.mxu0 %v1629
    %2822 = vmatpush1.bf16.msra.mxu0 %v1628
    %2823 = vmatprep.subr.bf16.mxu0 %v1637
    %2824 = vmatpush1.bf16.msra.mxu0 %v1636
    %2825 = vmatprep.mubr.bf16.mxu0 %v2751
    %2826 = vmatmul.mubr.bf16.gmra.mrb[0].mxu0 %v2750
    %v2827 = vpop.f32.mrb[0].mxu0
    %v2828 = vadd.f32 0.0, %v2827
    %v2829 = vpop.f32.mrb[0].mxu0
    %v2830 = vadd.f32 0.0, %v2829
    %v2831 = vpop.f32.mrb[0].mxu0
    %v2832 = vpop.f32.mrb[0].mxu0
    %2833 = vdwg.mxu0
    %2834 = vmatprep.subr.bf16.mxu0 %v1519
    %2835 = vmatpush1.bf16.msra.mxu0 %v1518
    %2836 = vmatprep.subr.bf16.mxu0 %v1527
    %2837 = vmatpush1.bf16.msra.mxu0 %v1526
    %2838 = vmatprep.subr.bf16.mxu0 %v1535
    %2839 = vmatpush1.bf16.msra.mxu0 %v1534
    %2840 = vmatprep.subr.bf16.mxu0 %v1543
    %2841 = vmatpush1.bf16.msra.mxu0 %v1542
    %2842 = vmatprep.subr.bf16.mxu0 %v1551
    %2843 = vmatpush1.bf16.msra.mxu0 %v1550
    %2844 = vmatprep.subr.bf16.mxu0 %v1559
    %2845 = vmatpush1.bf16.msra.mxu0 %v1558
    %2846 = vmatprep.subr.bf16.mxu0 %v1567
    %2847 = vmatpush1.bf16.msra.mxu0 %v1566
    %2848 = vmatprep.subr.bf16.mxu0 %v1575
    %2849 = vmatpush1.bf16.msra.mxu0 %v1574
    %2850 = vmatprep.subr.bf16.mxu0 %v1583
    %2851 = vmatpush1.bf16.msra.mxu0 %v1582
    %2852 = vmatprep.subr.bf16.mxu0 %v1591
    %2853 = vmatpush1.bf16.msra.mxu0 %v1590
    %2854 = vmatprep.subr.bf16.mxu0 %v1599
    %2855 = vmatpush1.bf16.msra.mxu0 %v1598
    %2856 = vmatprep.subr.bf16.mxu0 %v1607
    %2857 = vmatpush1.bf16.msra.mxu0 %v1606
    %2858 = vmatprep.subr.bf16.mxu0 %v1615
    %2859 = vmatpush1.bf16.msra.mxu0 %v1614
    %2860 = vmatprep.subr.bf16.mxu0 %v1623
    %2861 = vmatpush1.bf16.msra.mxu0 %v1622
    %2862 = vmatprep.subr.bf16.mxu0 %v1631
    %2863 = vmatpush1.bf16.msra.mxu0 %v1630
    %2864 = vmatprep.subr.bf16.mxu0 %v1639
    %2865 = vmatpush1.bf16.msra.mxu0 %v1638
    %2866 = vmatprep.mubr.bf16.mxu0 %v2751
    %2867 = vmatmul.mubr.bf16.gmra.mrb[0].mxu0 %v2750
    %v2868 = vpop.f32.mrb[0].mxu0
    %v2869 = vadd.f32 0.0, %v2868
    %v2870 = vpop.f32.mrb[0].mxu0
    %v2871 = vadd.f32 0.0, %v2870
    %v2872 = vpop.f32.mrb[0].mxu0
    %v2873 = vpop.f32.mrb[0].mxu0
    %2874 = vdwg.mxu0
    %2875 = vmatprep.subr.bf16.mxu0 %v1521
    %2876 = vmatpush1.bf16.msra.mxu0 %v1520
    %2877 = vmatprep.subr.bf16.mxu0 %v1529
    %2878 = vmatpush1.bf16.msra.mxu0 %v1528
    %2879 = vmatprep.subr.bf16.mxu0 %v1537
    %2880 = vmatpush1.bf16.msra.mxu0 %v1536
    %2881 = vmatprep.subr.bf16.mxu0 %v1545
    %2882 = vmatpush1.bf16.msra.mxu0 %v1544
    %2883 = vmatprep.subr.bf16.mxu0 %v1553
    %2884 = vmatpush1.bf16.msra.mxu0 %v1552
    %2885 = vmatprep.subr.bf16.mxu0 %v1561
    %2886 = vmatpush1.bf16.msra.mxu0 %v1560
    %2887 = vmatprep.subr.bf16.mxu0 %v1569
    %2888 = vmatpush1.bf16.msra.mxu0 %v1568
    %2889 = vmatprep.subr.bf16.mxu0 %v1577
    %2890 = vmatpush1.bf16.msra.mxu0 %v1576
    %2891 = vmatprep.subr.bf16.mxu0 %v1585
    %2892 = vmatpush1.bf16.msra.mxu0 %v1584
    %2893 = vmatprep.subr.bf16.mxu0 %v1593
    %2894 = vmatpush1.bf16.msra.mxu0 %v1592
    %2895 = vmatprep.subr.bf16.mxu0 %v1601
    %2896 = vmatpush1.bf16.msra.mxu0 %v1600
    %2897 = vmatprep.subr.bf16.mxu0 %v1609
    %2898 = vmatpush1.bf16.msra.mxu0 %v1608
    %2899 = vmatprep.subr.bf16.mxu0 %v1617
    %2900 = vmatpush1.bf16.msra.mxu0 %v1616
    %2901 = vmatprep.subr.bf16.mxu0 %v1625
    %2902 = vmatpush1.bf16.msra.mxu0 %v1624
    %2903 = vmatprep.subr.bf16.mxu0 %v1633
    %2904 = vmatpush1.bf16.msra.mxu0 %v1632
    %2905 = vmatprep.subr.bf16.mxu0 %v1641
    %2906 = vmatpush1.bf16.msra.mxu0 %v1640
    %2907 = vmatprep.mubr.bf16.mxu0 %v2751
    %2908 = vmatmul.mubr.bf16.gmra.mrb[0].mxu0 %v2750
    %v2909 = vpop.f32.mrb[0].mxu0
    %v2910 = vadd.f32 0.0, %v2909
    %v2911 = vpop.f32.mrb[0].mxu0
    %v2912 = vadd.f32 0.0, %v2911
    %v2913 = vpop.f32.mrb[0].mxu0
    %v2914 = vpop.f32.mrb[0].mxu0
    %2915 = vdwg.mxu0
    %v2916 = vadd.f32 %v1041, %v2787
    %v2917 = vadd.f32 %v1043, %v2789
    %v2918 = vadd.f32 %v1114, %v2828
    %v2919 = vadd.f32 %v1116, %v2830
    %v2920 = vadd.f32 %v1187, %v2869
    %v2921 = vadd.f32 %v1189, %v2871
    %v2922 = vadd.f32 %v1260, %v2910
    %v2923 = vadd.f32 %v1262, %v2912
    %v2924 = vxor.u32 %v2916, 2147483648
    %v2925 = vxor.u32 %v2917, 2147483648
    %v2926 = vmul.f32 %v2924, 1.442695
    %v2927 = vpow.pop %v2926
    %v2928 = vmul.f32 %v2925, 1.442695
    %v2929 = vpow.pop %v2928
    %v2930 = vadd.f32 %v2927, 1.0
    %v2931 = vadd.f32 %v2929, 1.0
    %v2932 = vrcp.pop %v2930
    %v2933 = vmul.f32 1.0, %v2932
    %v2934 = vrcp.pop %v2931
    %v2935 = vmul.f32 1.0, %v2934
    %v2936 = vxor.u32 %v2918, 2147483648
    %v2937 = vxor.u32 %v2919, 2147483648
    %v2938 = vmul.f32 %v2936, 1.442695
    %v2939 = vpow.pop %v2938
    %v2940 = vmul.f32 %v2937, 1.442695
    %v2941 = vpow.pop %v2940
    %v2942 = vadd.f32 %v2939, 1.0
    %v2943 = vadd.f32 %v2941, 1.0
    %v2944 = vrcp.pop %v2942
    %v2945 = vmul.f32 1.0, %v2944
    %v2946 = vrcp.pop %v2943
    %v2947 = vmul.f32 1.0, %v2946
    %v2948 = vtanh.pop %v2920
    %v2949 = vtanh.pop %v2921
    %v2950 = vxor.u32 %v2922, 2147483648
    %v2951 = vxor.u32 %v2923, 2147483648
    %v2952 = vmul.f32 %v2950, 1.442695
    %v2953 = vpow.pop %v2952
    %v2954 = vmul.f32 %v2951, 1.442695
    %v2955 = vpow.pop %v2954
    %v2956 = vadd.f32 %v2953, 1.0
    %v2957 = vadd.f32 %v2955, 1.0
    %v2958 = vrcp.pop %v2956
    %v2959 = vmul.f32 1.0, %v2958
    %v2960 = vrcp.pop %v2957
    %v2961 = vmul.f32 1.0, %v2960
    %v2962 = vmul.f32 %v2945, %v2744
    %v2963 = vmul.f32 %v2947, %v2745
    %v2964 = vmul.f32 %v2933, %v2948
    %v2965 = vmul.f32 %v2935, %v2949
    %v2966 = vadd.f32 %v2962, %v2964
    %v2967 = vadd.f32 %v2963, %v2965
    %v2968 = vtanh.pop %v2966
    %v2969 = vtanh.pop %v2967
    %v2970 = vmul.f32 %v2959, %v2968
    %v2971 = vmul.f32 %v2961, %v2969
    %v2972 = vpack.c.bf16 %v2970, %v2970
    %v2973 = vpack.c.bf16 %v2971, %v2971
    %2974 = vmatprep.subr.bf16.mxu0 %v1515
    %2975 = vmatpush1.bf16.msra.mxu0 %v1514
    %2976 = vmatprep.subr.bf16.mxu0 %v1523
    %2977 = vmatpush1.bf16.msra.mxu0 %v1522
    %2978 = vmatprep.subr.bf16.mxu0 %v1531
    %2979 = vmatpush1.bf16.msra.mxu0 %v1530
    %2980 = vmatprep.subr.bf16.mxu0 %v1539
    %2981 = vmatpush1.bf16.msra.mxu0 %v1538
    %2982 = vmatprep.subr.bf16.mxu0 %v1547
    %2983 = vmatpush1.bf16.msra.mxu0 %v1546
    %2984 = vmatprep.subr.bf16.mxu0 %v1555
    %2985 = vmatpush1.bf16.msra.mxu0 %v1554
    %2986 = vmatprep.subr.bf16.mxu0 %v1563
    %2987 = vmatpush1.bf16.msra.mxu0 %v1562
    %2988 = vmatprep.subr.bf16.mxu0 %v1571
    %2989 = vmatpush1.bf16.msra.mxu0 %v1570
    %2990 = vmatprep.subr.bf16.mxu0 %v1579
    %2991 = vmatpush1.bf16.msra.mxu0 %v1578
    %2992 = vmatprep.subr.bf16.mxu0 %v1587
    %2993 = vmatpush1.bf16.msra.mxu0 %v1586
    %2994 = vmatprep.subr.bf16.mxu0 %v1595
    %2995 = vmatpush1.bf16.msra.mxu0 %v1594
    %2996 = vmatprep.subr.bf16.mxu0 %v1603
    %2997 = vmatpush1.bf16.msra.mxu0 %v1602
    %2998 = vmatprep.subr.bf16.mxu0 %v1611
    %2999 = vmatpush1.bf16.msra.mxu0 %v1610
    %3000 = vmatprep.subr.bf16.mxu0 %v1619
    %3001 = vmatpush1.bf16.msra.mxu0 %v1618
    %3002 = vmatprep.subr.bf16.mxu0 %v1627
    %3003 = vmatpush1.bf16.msra.mxu0 %v1626
    %3004 = vmatprep.subr.bf16.mxu0 %v1635
    %3005 = vmatpush1.bf16.msra.mxu0 %v1634
    %3006 = vmatprep.mubr.bf16.mxu0 %v2973
    %3007 = vmatmul.mubr.bf16.gmra.mrb[0].mxu0 %v2972
    %v3008 = vpop.f32.mrb[0].mxu0
    %v3009 = vadd.f32 0.0, %v3008
    %v3010 = vpop.f32.mrb[0].mxu0
    %v3011 = vadd.f32 0.0, %v3010
    %v3012 = vpop.f32.mrb[0].mxu0
    %v3013 = vpop.f32.mrb[0].mxu0
    %3014 = vdwg.mxu0
    %3015 = vmatprep.subr.bf16.mxu0 %v1517
    %3016 = vmatpush1.bf16.msra.mxu0 %v1516
    %3017 = vmatprep.subr.bf16.mxu0 %v1525
    %3018 = vmatpush1.bf16.msra.mxu0 %v1524
    %3019 = vmatprep.subr.bf16.mxu0 %v1533
    %3020 = vmatpush1.bf16.msra.mxu0 %v1532
    %3021 = vmatprep.subr.bf16.mxu0 %v1541
    %3022 = vmatpush1.bf16.msra.mxu0 %v1540
    %3023 = vmatprep.subr.bf16.mxu0 %v1549
    %3024 = vmatpush1.bf16.msra.mxu0 %v1548
    %3025 = vmatprep.subr.bf16.mxu0 %v1557
    %3026 = vmatpush1.bf16.msra.mxu0 %v1556
    %3027 = vmatprep.subr.bf16.mxu0 %v1565
    %3028 = vmatpush1.bf16.msra.mxu0 %v1564
    %3029 = vmatprep.subr.bf16.mxu0 %v1573
    %3030 = vmatpush1.bf16.msra.mxu0 %v1572
    %3031 = vmatprep.subr.bf16.mxu0 %v1581
    %3032 = vmatpush1.bf16.msra.mxu0 %v1580
    %3033 = vmatprep.subr.bf16.mxu0 %v1589
    %3034 = vmatpush1.bf16.msra.mxu0 %v1588
    %3035 = vmatprep.subr.bf16.mxu0 %v1597
    %3036 = vmatpush1.bf16.msra.mxu0 %v1596
    %3037 = vmatprep.subr.bf16.mxu0 %v1605
    %3038 = vmatpush1.bf16.msra.mxu0 %v1604
    %3039 = vmatprep.subr.bf16.mxu0 %v1613
    %3040 = vmatpush1.bf16.msra.mxu0 %v1612
    %3041 = vmatprep.subr.bf16.mxu0 %v1621
    %3042 = vmatpush1.bf16.msra.mxu0 %v1620
    %3043 = vmatprep.subr.bf16.mxu0 %v1629
    %3044 = vmatpush1.bf16.msra.mxu0 %v1628
    %3045 = vmatprep.subr.bf16.mxu0 %v1637
    %3046 = vmatpush1.bf16.msra.mxu0 %v1636
    %3047 = vmatprep.mubr.bf16.mxu0 %v2973
    %3048 = vmatmul.mubr.bf16.gmra.mrb[0].mxu0 %v2972
    %v3049 = vpop.f32.mrb[0].mxu0
    %v3050 = vadd.f32 0.0, %v3049
    %v3051 = vpop.f32.mrb[0].mxu0
    %v3052 = vadd.f32 0.0, %v3051
    %v3053 = vpop.f32.mrb[0].mxu0
    %v3054 = vpop.f32.mrb[0].mxu0
    %3055 = vdwg.mxu0
    %3056 = vmatprep.subr.bf16.mxu0 %v1519
    %3057 = vmatpush1.bf16.msra.mxu0 %v1518
    %3058 = vmatprep.subr.bf16.mxu0 %v1527
    %3059 = vmatpush1.bf16.msra.mxu0 %v1526
    %3060 = vmatprep.subr.bf16.mxu0 %v1535
    %3061 = vmatpush1.bf16.msra.mxu0 %v1534
    %3062 = vmatprep.subr.bf16.mxu0 %v1543
    %3063 = vmatpush1.bf16.msra.mxu0 %v1542
    %3064 = vmatprep.subr.bf16.mxu0 %v1551
    %3065 = vmatpush1.bf16.msra.mxu0 %v1550
    %3066 = vmatprep.subr.bf16.mxu0 %v1559
    %3067 = vmatpush1.bf16.msra.mxu0 %v1558
    %3068 = vmatprep.subr.bf16.mxu0 %v1567
    %3069 = vmatpush1.bf16.msra.mxu0 %v1566
    %3070 = vmatprep.subr.bf16.mxu0 %v1575
    %3071 = vmatpush1.bf16.msra.mxu0 %v1574
    %3072 = vmatprep.subr.bf16.mxu0 %v1583
    %3073 = vmatpush1.bf16.msra.mxu0 %v1582
    %3074 = vmatprep.subr.bf16.mxu0 %v1591
    %3075 = vmatpush1.bf16.msra.mxu0 %v1590
    %3076 = vmatprep.subr.bf16.mxu0 %v1599
    %3077 = vmatpush1.bf16.msra.mxu0 %v1598
    %3078 = vmatprep.subr.bf16.mxu0 %v1607
    %3079 = vmatpush1.bf16.msra.mxu0 %v1606
    %3080 = vmatprep.subr.bf16.mxu0 %v1615
    %3081 = vmatpush1.bf16.msra.mxu0 %v1614
    %3082 = vmatprep.subr.bf16.mxu0 %v1623
    %3083 = vmatpush1.bf16.msra.mxu0 %v1622
    %3084 = vmatprep.subr.bf16.mxu0 %v1631
    %3085 = vmatpush1.bf16.msra.mxu0 %v1630
    %3086 = vmatprep.subr.bf16.mxu0 %v1639
    %3087 = vmatpush1.bf16.msra.mxu0 %v1638
    %3088 = vmatprep.mubr.bf16.mxu0 %v2973
    %3089 = vmatmul.mubr.bf16.gmra.mrb[0].mxu0 %v2972
    %v3090 = vpop.f32.mrb[0].mxu0
    %v3091 = vadd.f32 0.0, %v3090
    %v3092 = vpop.f32.mrb[0].mxu0
    %v3093 = vadd.f32 0.0, %v3092
    %v3094 = vpop.f32.mrb[0].mxu0
    %v3095 = vpop.f32.mrb[0].mxu0
    %3096 = vdwg.mxu0
    %3097 = vmatprep.subr.bf16.mxu0 %v1521
    %3098 = vmatpush1.bf16.msra.mxu0 %v1520
    %3099 = vmatprep.subr.bf16.mxu0 %v1529
    %3100 = vmatpush1.bf16.msra.mxu0 %v1528
    %3101 = vmatprep.subr.bf16.mxu0 %v1537
    %3102 = vmatpush1.bf16.msra.mxu0 %v1536
    %3103 = vmatprep.subr.bf16.mxu0 %v1545
    %3104 = vmatpush1.bf16.msra.mxu0 %v1544
    %3105 = vmatprep.subr.bf16.mxu0 %v1553
    %3106 = vmatpush1.bf16.msra.mxu0 %v1552
    %3107 = vmatprep.subr.bf16.mxu0 %v1561
    %3108 = vmatpush1.bf16.msra.mxu0 %v1560
    %3109 = vmatprep.subr.bf16.mxu0 %v1569
    %3110 = vmatpush1.bf16.msra.mxu0 %v1568
    %3111 = vmatprep.subr.bf16.mxu0 %v1577
    %3112 = vmatpush1.bf16.msra.mxu0 %v1576
    %3113 = vmatprep.subr.bf16.mxu0 %v1585
    %3114 = vmatpush1.bf16.msra.mxu0 %v1584
    %3115 = vmatprep.subr.bf16.mxu0 %v1593
    %3116 = vmatpush1.bf16.msra.mxu0 %v1592
    %3117 = vmatprep.subr.bf16.mxu0 %v1601
    %3118 = vmatpush1.bf16.msra.mxu0 %v1600
    %3119 = vmatprep.subr.bf16.mxu0 %v1609
    %3120 = vmatpush1.bf16.msra.mxu0 %v1608
    %3121 = vmatprep.subr.bf16.mxu0 %v1617
    %3122 = vmatpush1.bf16.msra.mxu0 %v1616
    %3123 = vmatprep.subr.bf16.mxu0 %v1625
    %3124 = vmatpush1.bf16.msra.mxu0 %v1624
    %3125 = vmatprep.subr.bf16.mxu0 %v1633
    %3126 = vmatpush1.bf16.msra.mxu0 %v1632
    %3127 = vmatprep.subr.bf16.mxu0 %v1641
    %3128 = vmatpush1.bf16.msra.mxu0 %v1640
    %3129 = vmatprep.mubr.bf16.mxu0 %v2973
    %3130 = vmatmul.mubr.bf16.gmra.mrb[0].mxu0 %v2972
    %v3131 = vpop.f32.mrb[0].mxu0
    %v3132 = vadd.f32 0.0, %v3131
    %v3133 = vpop.f32.mrb[0].mxu0
    %v3134 = vadd.f32 0.0, %v3133
    %v3135 = vpop.f32.mrb[0].mxu0
    %v3136 = vpop.f32.mrb[0].mxu0
    %3137 = vdwg.mxu0
    %v3138 = vadd.f32 %v1047, %v3009
    %v3139 = vadd.f32 %v1049, %v3011
    %v3140 = vadd.f32 %v1120, %v3050
    %v3141 = vadd.f32 %v1122, %v3052
    %v3142 = vadd.f32 %v1193, %v3091
    %v3143 = vadd.f32 %v1195, %v3093
    %v3144 = vadd.f32 %v1266, %v3132
    %v3145 = vadd.f32 %v1268, %v3134
    %v3146 = vxor.u32 %v3138, 2147483648
    %v3147 = vxor.u32 %v3139, 2147483648
    %v3148 = vmul.f32 %v3146, 1.442695
    %v3149 = vpow.pop %v3148
    %v3150 = vmul.f32 %v3147, 1.442695
    %v3151 = vpow.pop %v3150
    %v3152 = vadd.f32 %v3149, 1.0
    %v3153 = vadd.f32 %v3151, 1.0
    %v3154 = vrcp.pop %v3152
    %v3155 = vmul.f32 1.0, %v3154
    %v3156 = vrcp.pop %v3153
    %v3157 = vmul.f32 1.0, %v3156
    %v3158 = vxor.u32 %v3140, 2147483648
    %v3159 = vxor.u32 %v3141, 2147483648
    %v3160 = vmul.f32 %v3158, 1.442695
    %v3161 = vpow.pop %v3160
    %v3162 = vmul.f32 %v3159, 1.442695
    %v3163 = vpow.pop %v3162
    %v3164 = vadd.f32 %v3161, 1.0
    %v3165 = vadd.f32 %v3163, 1.0
    %v3166 = vrcp.pop %v3164
    %v3167 = vmul.f32 1.0, %v3166
    %v3168 = vrcp.pop %v3165
    %v3169 = vmul.f32 1.0, %v3168
    %v3170 = vtanh.pop %v3142
    %v3171 = vtanh.pop %v3143
    %v3172 = vxor.u32 %v3144, 2147483648
    %v3173 = vxor.u32 %v3145, 2147483648
    %v3174 = vmul.f32 %v3172, 1.442695
    %v3175 = vpow.pop %v3174
    %v3176 = vmul.f32 %v3173, 1.442695
    %v3177 = vpow.pop %v3176
    %v3178 = vadd.f32 %v3175, 1.0
    %v3179 = vadd.f32 %v3177, 1.0
    %v3180 = vrcp.pop %v3178
    %v3181 = vmul.f32 1.0, %v3180
    %v3182 = vrcp.pop %v3179
    %v3183 = vmul.f32 1.0, %v3182
    %v3184 = vmul.f32 %v3167, %v2966
    %v3185 = vmul.f32 %v3169, %v2967
    %v3186 = vmul.f32 %v3155, %v3170
    %v3187 = vmul.f32 %v3157, %v3171
    %v3188 = vadd.f32 %v3184, %v3186
    %v3189 = vadd.f32 %v3185, %v3187
    %v3190 = vtanh.pop %v3188
    %v3191 = vtanh.pop %v3189
    %v3192 = vmul.f32 %v3181, %v3190
    %v3193 = vmul.f32 %v3183, %v3191
    %v3194 = vpack.c.bf16 %v3192, %v3192
    %v3195 = vpack.c.bf16 %v3193, %v3193
    %3196 = vmatprep.subr.bf16.mxu0 %v1515
    %3197 = vmatpush1.bf16.msra.mxu0 %v1514
    %3198 = vmatprep.subr.bf16.mxu0 %v1523
    %3199 = vmatpush1.bf16.msra.mxu0 %v1522
    %3200 = vmatprep.subr.bf16.mxu0 %v1531
    %3201 = vmatpush1.bf16.msra.mxu0 %v1530
    %3202 = vmatprep.subr.bf16.mxu0 %v1539
    %3203 = vmatpush1.bf16.msra.mxu0 %v1538
    %3204 = vmatprep.subr.bf16.mxu0 %v1547
    %3205 = vmatpush1.bf16.msra.mxu0 %v1546
    %3206 = vmatprep.subr.bf16.mxu0 %v1555
    %3207 = vmatpush1.bf16.msra.mxu0 %v1554
    %3208 = vmatprep.subr.bf16.mxu0 %v1563
    %3209 = vmatpush1.bf16.msra.mxu0 %v1562
    %3210 = vmatprep.subr.bf16.mxu0 %v1571
    %3211 = vmatpush1.bf16.msra.mxu0 %v1570
    %3212 = vmatprep.subr.bf16.mxu0 %v1579
    %3213 = vmatpush1.bf16.msra.mxu0 %v1578
    %3214 = vmatprep.subr.bf16.mxu0 %v1587
    %3215 = vmatpush1.bf16.msra.mxu0 %v1586
    %3216 = vmatprep.subr.bf16.mxu0 %v1595
    %3217 = vmatpush1.bf16.msra.mxu0 %v1594
    %3218 = vmatprep.subr.bf16.mxu0 %v1603
    %3219 = vmatpush1.bf16.msra.mxu0 %v1602
    %3220 = vmatprep.subr.bf16.mxu0 %v1611
    %3221 = vmatpush1.bf16.msra.mxu0 %v1610
    %3222 = vmatprep.subr.bf16.mxu0 %v1619
    %3223 = vmatpush1.bf16.msra.mxu0 %v1618
    %3224 = vmatprep.subr.bf16.mxu0 %v1627
    %3225 = vmatpush1.bf16.msra.mxu0 %v1626
    %3226 = vmatprep.subr.bf16.mxu0 %v1635
    %3227 = vmatpush1.bf16.msra.mxu0 %v1634
    %3228 = vmatprep.mubr.bf16.mxu0 %v3195
    %3229 = vmatmul.mubr.bf16.gmra.mrb[0].mxu0 %v3194
    %v3230 = vpop.f32.mrb[0].mxu0
    %v3231 = vadd.f32 0.0, %v3230
    %v3232 = vpop.f32.mrb[0].mxu0
    %v3233 = vadd.f32 0.0, %v3232
    %v3234 = vpop.f32.mrb[0].mxu0
    %v3235 = vpop.f32.mrb[0].mxu0
    %3236 = vdwg.mxu0
    %3237 = vmatprep.subr.bf16.mxu0 %v1517
    %3238 = vmatpush1.bf16.msra.mxu0 %v1516
    %3239 = vmatprep.subr.bf16.mxu0 %v1525
    %3240 = vmatpush1.bf16.msra.mxu0 %v1524
    %3241 = vmatprep.subr.bf16.mxu0 %v1533
    %3242 = vmatpush1.bf16.msra.mxu0 %v1532
    %3243 = vmatprep.subr.bf16.mxu0 %v1541
    %3244 = vmatpush1.bf16.msra.mxu0 %v1540
    %3245 = vmatprep.subr.bf16.mxu0 %v1549
    %3246 = vmatpush1.bf16.msra.mxu0 %v1548
    %3247 = vmatprep.subr.bf16.mxu0 %v1557
    %3248 = vmatpush1.bf16.msra.mxu0 %v1556
    %3249 = vmatprep.subr.bf16.mxu0 %v1565
    %3250 = vmatpush1.bf16.msra.mxu0 %v1564
    %3251 = vmatprep.subr.bf16.mxu0 %v1573
    %3252 = vmatpush1.bf16.msra.mxu0 %v1572
    %3253 = vmatprep.subr.bf16.mxu0 %v1581
    %3254 = vmatpush1.bf16.msra.mxu0 %v1580
    %3255 = vmatprep.subr.bf16.mxu0 %v1589
    %3256 = vmatpush1.bf16.msra.mxu0 %v1588
    %3257 = vmatprep.subr.bf16.mxu0 %v1597
    %3258 = vmatpush1.bf16.msra.mxu0 %v1596
    %3259 = vmatprep.subr.bf16.mxu0 %v1605
    %3260 = vmatpush1.bf16.msra.mxu0 %v1604
    %3261 = vmatprep.subr.bf16.mxu0 %v1613
    %3262 = vmatpush1.bf16.msra.mxu0 %v1612
    %3263 = vmatprep.subr.bf16.mxu0 %v1621
    %3264 = vmatpush1.bf16.msra.mxu0 %v1620
    %3265 = vmatprep.subr.bf16.mxu0 %v1629
    %3266 = vmatpush1.bf16.msra.mxu0 %v1628
    %3267 = vmatprep.subr.bf16.mxu0 %v1637
    %3268 = vmatpush1.bf16.msra.mxu0 %v1636
    %3269 = vmatprep.mubr.bf16.mxu0 %v3195
    %3270 = vmatmul.mubr.bf16.gmra.mrb[0].mxu0 %v3194
    %v3271 = vpop.f32.mrb[0].mxu0
    %v3272 = vadd.f32 0.0, %v3271
    %v3273 = vpop.f32.mrb[0].mxu0
    %v3274 = vadd.f32 0.0, %v3273
    %v3275 = vpop.f32.mrb[0].mxu0
    %v3276 = vpop.f32.mrb[0].mxu0
    %3277 = vdwg.mxu0
    %3278 = vmatprep.subr.bf16.mxu0 %v1519
    %3279 = vmatpush1.bf16.msra.mxu0 %v1518
    %3280 = vmatprep.subr.bf16.mxu0 %v1527
    %3281 = vmatpush1.bf16.msra.mxu0 %v1526
    %3282 = vmatprep.subr.bf16.mxu0 %v1535
    %3283 = vmatpush1.bf16.msra.mxu0 %v1534
    %3284 = vmatprep.subr.bf16.mxu0 %v1543
    %3285 = vmatpush1.bf16.msra.mxu0 %v1542
    %3286 = vmatprep.subr.bf16.mxu0 %v1551
    %3287 = vmatpush1.bf16.msra.mxu0 %v1550
    %3288 = vmatprep.subr.bf16.mxu0 %v1559
    %3289 = vmatpush1.bf16.msra.mxu0 %v1558
    %3290 = vmatprep.subr.bf16.mxu0 %v1567
    %3291 = vmatpush1.bf16.msra.mxu0 %v1566
    %3292 = vmatprep.subr.bf16.mxu0 %v1575
    %3293 = vmatpush1.bf16.msra.mxu0 %v1574
    %3294 = vmatprep.subr.bf16.mxu0 %v1583
    %3295 = vmatpush1.bf16.msra.mxu0 %v1582
    %3296 = vmatprep.subr.bf16.mxu0 %v1591
    %3297 = vmatpush1.bf16.msra.mxu0 %v1590
    %3298 = vmatprep.subr.bf16.mxu0 %v1599
    %3299 = vmatpush1.bf16.msra.mxu0 %v1598
    %3300 = vmatprep.subr.bf16.mxu0 %v1607
    %3301 = vmatpush1.bf16.msra.mxu0 %v1606
    %3302 = vmatprep.subr.bf16.mxu0 %v1615
    %3303 = vmatpush1.bf16.msra.mxu0 %v1614
    %3304 = vmatprep.subr.bf16.mxu0 %v1623
    %3305 = vmatpush1.bf16.msra.mxu0 %v1622
    %3306 = vmatprep.subr.bf16.mxu0 %v1631
    %3307 = vmatpush1.bf16.msra.mxu0 %v1630
    %3308 = vmatprep.subr.bf16.mxu0 %v1639
    %3309 = vmatpush1.bf16.msra.mxu0 %v1638
    %3310 = vmatprep.mubr.bf16.mxu0 %v3195
    %3311 = vmatmul.mubr.bf16.gmra.mrb[0].mxu0 %v3194
    %v3312 = vpop.f32.mrb[0].mxu0
    %v3313 = vadd.f32 0.0, %v3312
    %v3314 = vpop.f32.mrb[0].mxu0
    %v3315 = vadd.f32 0.0, %v3314
    %v3316 = vpop.f32.mrb[0].mxu0
    %v3317 = vpop.f32.mrb[0].mxu0
    %3318 = vdwg.mxu0
    %3319 = vmatprep.subr.bf16.mxu0 %v1521
    %3320 = vmatpush1.bf16.msra.mxu0 %v1520
    %3321 = vmatprep.subr.bf16.mxu0 %v1529
    %3322 = vmatpush1.bf16.msra.mxu0 %v1528
    %3323 = vmatprep.subr.bf16.mxu0 %v1537
    %3324 = vmatpush1.bf16.msra.mxu0 %v1536
    %3325 = vmatprep.subr.bf16.mxu0 %v1545
    %3326 = vmatpush1.bf16.msra.mxu0 %v1544
    %3327 = vmatprep.subr.bf16.mxu0 %v1553
    %3328 = vmatpush1.bf16.msra.mxu0 %v1552
    %3329 = vmatprep.subr.bf16.mxu0 %v1561
    %3330 = vmatpush1.bf16.msra.mxu0 %v1560
    %3331 = vmatprep.subr.bf16.mxu0 %v1569
    %3332 = vmatpush1.bf16.msra.mxu0 %v1568
    %3333 = vmatprep.subr.bf16.mxu0 %v1577
    %3334 = vmatpush1.bf16.msra.mxu0 %v1576
    %3335 = vmatprep.subr.bf16.mxu0 %v1585
    %3336 = vmatpush1.bf16.msra.mxu0 %v1584
    %3337 = vmatprep.subr.bf16.mxu0 %v1593
    %3338 = vmatpush1.bf16.msra.mxu0 %v1592
    %3339 = vmatprep.subr.bf16.mxu0 %v1601
    %3340 = vmatpush1.bf16.msra.mxu0 %v1600
    %3341 = vmatprep.subr.bf16.mxu0 %v1609
    %3342 = vmatpush1.bf16.msra.mxu0 %v1608
    %3343 = vmatprep.subr.bf16.mxu0 %v1617
    %3344 = vmatpush1.bf16.msra.mxu0 %v1616
    %3345 = vmatprep.subr.bf16.mxu0 %v1625
    %3346 = vmatpush1.bf16.msra.mxu0 %v1624
    %3347 = vmatprep.subr.bf16.mxu0 %v1633
    %3348 = vmatpush1.bf16.msra.mxu0 %v1632
    %3349 = vmatprep.subr.bf16.mxu0 %v1641
    %3350 = vmatpush1.bf16.msra.mxu0 %v1640
    %3351 = vmatprep.mubr.bf16.mxu0 %v3195
    %3352 = vmatmul.mubr.bf16.gmra.mrb[0].mxu0 %v3194
    %v3353 = vpop.f32.mrb[0].mxu0
    %v3354 = vadd.f32 0.0, %v3353
    %v3355 = vpop.f32.mrb[0].mxu0
    %v3356 = vadd.f32 0.0, %v3355
    %v3357 = vpop.f32.mrb[0].mxu0
    %v3358 = vpop.f32.mrb[0].mxu0
    %3359 = vdwg.mxu0
    %v3360 = vadd.f32 %v1051, %v3231
    %v3361 = vadd.f32 %v1053, %v3233
    %v3362 = vadd.f32 %v1124, %v3272
    %v3363 = vadd.f32 %v1126, %v3274
    %v3364 = vadd.f32 %v1197, %v3313
    %v3365 = vadd.f32 %v1199, %v3315
    %v3366 = vadd.f32 %v1270, %v3354
    %v3367 = vadd.f32 %v1272, %v3356
    %v3368 = vxor.u32 %v3360, 2147483648
    %v3369 = vxor.u32 %v3361, 2147483648
    %v3370 = vmul.f32 %v3368, 1.442695
    %v3371 = vpow.pop %v3370
    %v3372 = vmul.f32 %v3369, 1.442695
    %v3373 = vpow.pop %v3372
    %v3374 = vadd.f32 %v3371, 1.0
    %v3375 = vadd.f32 %v3373, 1.0
    %v3376 = vrcp.pop %v3374
    %v3377 = vmul.f32 1.0, %v3376
    %v3378 = vrcp.pop %v3375
    %v3379 = vmul.f32 1.0, %v3378
    %v3380 = vxor.u32 %v3362, 2147483648
    %v3381 = vxor.u32 %v3363, 2147483648
    %v3382 = vmul.f32 %v3380, 1.442695
    %v3383 = vpow.pop %v3382
    %v3384 = vmul.f32 %v3381, 1.442695
    %v3385 = vpow.pop %v3384
    %v3386 = vadd.f32 %v3383, 1.0
    %v3387 = vadd.f32 %v3385, 1.0
    %v3388 = vrcp.pop %v3386
    %v3389 = vmul.f32 1.0, %v3388
    %v3390 = vrcp.pop %v3387
    %v3391 = vmul.f32 1.0, %v3390
    %v3392 = vtanh.pop %v3364
    %v3393 = vtanh.pop %v3365
    %v3394 = vxor.u32 %v3366, 2147483648
    %v3395 = vxor.u32 %v3367, 2147483648
    %v3396 = vmul.f32 %v3394, 1.442695
    %v3397 = vpow.pop %v3396
    %v3398 = vmul.f32 %v3395, 1.442695
    %v3399 = vpow.pop %v3398
    %v3400 = vadd.f32 %v3397, 1.0
    %v3401 = vadd.f32 %v3399, 1.0
    %v3402 = vrcp.pop %v3400
    %v3403 = vmul.f32 1.0, %v3402
    %v3404 = vrcp.pop %v3401
    %v3405 = vmul.f32 1.0, %v3404
    %v3406 = vmul.f32 %v3389, %v3188
    %v3407 = vmul.f32 %v3391, %v3189
    %v3408 = vmul.f32 %v3377, %v3392
    %v3409 = vmul.f32 %v3379, %v3393
    %v3410 = vadd.f32 %v3406, %v3408
    %v3411 = vadd.f32 %v3407, %v3409
    %v3412 = vtanh.pop %v3410
    %v3413 = vtanh.pop %v3411
    %v3414 = vmul.f32 %v3403, %v3412
    %v3415 = vmul.f32 %v3405, %v3413
    %v3416 = vxor.u32 %v1329, 2147483648
    %v3417 = vxor.u32 %v1331, 2147483648
    %v3418 = vmul.f32 %v3416, 1.442695
    %v3419 = vpow.pop %v3418
    %v3420 = vmul.f32 %v3417, 1.442695
    %v3421 = vpow.pop %v3420
    %v3422 = vadd.f32 %v3419, 1.0
    %v3423 = vadd.f32 %v3421, 1.0
    %v3424 = vrcp.pop %v3422
    %v3425 = vmul.f32 1.0, %v3424
    %v3426 = vrcp.pop %v3423
    %v3427 = vmul.f32 1.0, %v3426
    %v3428 = vxor.u32 %v1388, 2147483648
    %v3429 = vxor.u32 %v1390, 2147483648
    %v3430 = vmul.f32 %v3428, 1.442695
    %v3431 = vpow.pop %v3430
    %v3432 = vmul.f32 %v3429, 1.442695
    %v3433 = vpow.pop %v3432
    %v3434 = vadd.f32 %v3431, 1.0
    %v3435 = vadd.f32 %v3433, 1.0
    %v3436 = vrcp.pop %v3434
    %v3437 = vmul.f32 1.0, %v3436
    %v3438 = vrcp.pop %v3435
    %v3439 = vmul.f32 1.0, %v3438
    %v3440 = vtanh.pop %v1447
    %v3441 = vtanh.pop %v1449
    %v3442 = vxor.u32 %v1506, 2147483648
    %v3443 = vxor.u32 %v1508, 2147483648
    %v3444 = vmul.f32 %v3442, 1.442695
    %v3445 = vpow.pop %v3444
    %v3446 = vmul.f32 %v3443, 1.442695
    %v3447 = vpow.pop %v3446
    %v3448 = vadd.f32 %v3445, 1.0
    %v3449 = vadd.f32 %v3447, 1.0
    %v3450 = vrcp.pop %v3448
    %v3451 = vmul.f32 1.0, %v3450
    %v3452 = vrcp.pop %v3449
    %v3453 = vmul.f32 1.0, %v3452
    %v3454 = vmul.f32 %v3437, 0.0
    %v3455 = vmul.f32 %v3439, 0.0
    %v3456 = vmul.f32 %v3425, %v3440
    %v3457 = vmul.f32 %v3427, %v3441
    %v3458 = vadd.f32 %v3454, %v3456
    %v3459 = vadd.f32 %v3455, %v3457
    %v3460 = vtanh.pop %v3458
    %v3461 = vtanh.pop %v3459
    %v3462 = vmul.f32 %v3451, %v3460
    %v3463 = vmul.f32 %v3453, %v3461
    %v3464 = vld [vmem:[%s4] sm:$0x3]
    %v3466 = vlaneseq
    %v3467 = vshrl.u32 %v3466, 7
    %v3468 = vsub.s32 0, %v3467
    %v3469 = vrot.slane %v3464, %v3468
    %v3470 = vlaneseq
    %v3471 = vshrl.u32 %v3470, 7
    %v3472 = vsub.s32 1, %v3471
    %v3473 = vrot.slane %v3464, %v3472
    %v3476 = vmul.f32 %v3414, %v3469
    %v3477 = vmul.f32 %v3415, %v3473
    %v3478 = vadd.f32 %v3476, %v3477
    %3479 = vadd.xlane.f32.xlu0 %v3478
    %v3480 = vpop.xlane.xlu0 %3479
    %v3481 = vld [vmem:[%s4 + $0x2] sm:$0x3]
    %v3483 = vlaneseq
    %v3484 = vshrl.u32 %v3483, 7
    %v3485 = vsub.s32 0, %v3484
    %v3486 = vrot.slane %v3481, %v3485
    %v3487 = vlaneseq
    %v3488 = vshrl.u32 %v3487, 7
    %v3489 = vsub.s32 1, %v3488
    %v3490 = vrot.slane %v3481, %v3489
    %v3493 = vmul.f32 %v3462, %v3486
    %v3494 = vmul.f32 %v3463, %v3490
    %v3495 = vadd.f32 %v3493, %v3494
    %3496 = vadd.xlane.f32.xlu0 %v3495
    %v3497 = vpop.xlane.xlu0 %3496
    %v3498 = vadd.f32 %v3480, %v3497
    %v3499 = vld [vmem:[#allocation4] sm:$0x1]
    %v3501 = vlaneseq
    %v3502 = vshrl.u32 %v3501, 7
    %v3503 = vsub.s32 0, %v3502
    %v3504 = vrot.slane %v3499, %v3503
    %v3506 = vadd.f32 %v3498, %v3504
    %vm3507 = vcmask 7168
    %3508 = vst.msk [vmem:[%s6] sm:$0xff] %vm3507, %v3506
    // Predicated region
    $region34: #{tpu_custom_call.1} parent=1 // pred_check
      _
    $region35: #{tpu_custom_call.1} parent=1 // pred_check_branch
      %3510 = sbr.rel (0) target = $region37
    $region36: #{tpu_custom_call.1} parent=1 // pred_region
      _
    $region37: #{tpu_custom_call.1} parent=1 // pred_fallthru
      _
    // Predicated region
    $region38: #{tpu_custom_call.1} parent=1 // pred_check
      _
    $region39: #{tpu_custom_call.1} parent=1 // pred_check_branch
      %3512 = sbr.rel (0) target = $region41
    $region40: #{tpu_custom_call.1} parent=1 // pred_region
      _
    $region41: #{tpu_custom_call.1} parent=1 // pred_fallthru
      _
    %3513 = vsyncpa [#allocation6], 1
    %3514 = vsyncpa [#allocation8], 1
  %3515 = vsyncmov [#allocation3]
  %s3516 = vpop.sfrf %3515
  %p3517 = scmp.eq.s32.totalorder %s3516, 0
  %p3518 = pneg %p3517
  %3520 = shalt.err (%p3518)

</llo_original>
